<compile_context>
chip_gen: v7x
topology: tpu7x:2x2x1
jax: 0.10.0
libtpu: 0.0.40
codegen_flags: <defaults>
</compile_context>

<pallas_src>
import functools

import jax
import jax.numpy as jnp
from jax import lax
from jax.experimental import pallas as pl
from jax.experimental.pallas import tpu as pltpu


# Static LeNet-5 geometry (32x32, single input channel).
H0, W0 = 32, 32                           # input spatial
K = 5                                     # all conv kernels are 5x5
C1, C2, C3 = 6, 16, 120                   # conv channel widths
H1, W1 = H0 - K + 1, W0 - K + 1           # 28, 28  (conv1 out)
P1H, P1W = H1 // 2, W1 // 2               # 14, 14  (pool1 out)
H2, W2 = P1H - K + 1, P1W - K + 1         # 10, 10  (conv2 out)
P2H, P2W = H2 // 2, W2 // 2               # 5, 5    (pool2 out)
N1 = P1W * C1                             # 84  real lanes of stage-1 activations
N2 = P2W * C2                             # 80  real lanes of stage-2 activations
FC1_IN, FC1_OUT = C3, 84                  # Linear(120, 84)
LANES = 128                               # padded lane width used everywhere


# ---------------------------------------------------------------------------
# The fused kernel: one grid step == TB images, everything stays in VMEM.
# ---------------------------------------------------------------------------
def _lenet5_kernel(x_ref, w1_ref, b1_ref, w2_ref, b2_ref, w3_ref, b3_ref,
                   w4_ref, b4_ref, w5_ref, b5_ref, o_ref, acc1_ref, acc2_ref):
    f32, bf16 = jnp.float32, jnp.bfloat16
    TB = o_ref.shape[0]

    # ---- stage 1: conv1 (1->6, 5x5) + ReLU + 2x2 max-pool ---------------------
    # x_ref block is H-major [H0, TB, W0]; merge (H, TB) -> rows (layout-free).
    xb = x_ref[...].astype(bf16).reshape(H0 * TB, W0)              # hoisted cast
    for kh in range(K):
        xs = xb[kh * TB:(kh + H1) * TB]                            # [H1*TB, 32]
        contrib = jnp.dot(xs, w1_ref[kh], preferred_element_type=f32)  # [H1*TB, 256]
        if kh == 0:
            acc1_ref[...] = contrib
        else:
            acc1_ref[...] += contrib
    acc = acc1_ref[...]
    # W-pool = max of even/odd 128-lane halves; bias identical for both parities.
    z = jnp.maximum(jnp.maximum(acc[:, :LANES], acc[:, LANES:]) + b1_ref[...], 0.0)
    z = z.reshape(P1H, 2, TB, LANES)                               # layout-free split
    a1 = jnp.maximum(z[:, 0], z[:, 1]).astype(bf16).reshape(P1H * TB, LANES)

    # ---- stage 2: conv2 (6->16, 5x5) + ReLU + 2x2 max-pool --------------------
    for kh in range(K):
        xs = a1[kh * TB:(kh + H2) * TB]                            # [H2*TB, 128]
        contrib = jnp.dot(xs, w2_ref[kh], preferred_element_type=f32)  # [H2*TB, 256]
        if kh == 0:
            acc2_ref[...] = contrib
        else:
            acc2_ref[...] += contrib
    acc = acc2_ref[...]
    z = jnp.maximum(jnp.maximum(acc[:, :LANES], acc[:, LANES:]) + b2_ref[...], 0.0)
    z = z.reshape(P2H, 2, TB, LANES)
    a2 = jnp.maximum(z[:, 0], z[:, 1]).astype(bf16)                # [P2H, TB, 128]

    # ---- stage 3: conv3 (16->120, 5x5) on the 5x5 map == full contraction -----
    # Batched over TB: 5 dots of [TB,128] x [128,128] accumulate the feature rows.
    feat = jnp.dot(a2[0], w3_ref[0], preferred_element_type=f32)
    for kh in range(1, K):
        feat = feat + jnp.dot(a2[kh], w3_ref[kh], preferred_element_type=f32)
    feat = jnp.maximum(feat + b3_ref[...], 0.0)                    # [TB, 128]
    # TODO(synk): return_features=True would expose feat[:, :120] as a second output;
    # only the default (logits-only) path is wired here.

    # ---- fc1 + ReLU, fc2 (both batched, lane-dense) ---------------------------
    h = jnp.dot(feat.astype(bf16), w4_ref[...], preferred_element_type=f32) + b4_ref[...]
    h = jnp.maximum(h, 0.0)                                        # [TB, 128]
    o_ref[...] = (jnp.dot(h.astype(bf16), w5_ref[...], preferred_element_type=f32)
                  + b5_ref[...])                                   # [TB, n5]


# ---------------------------------------------------------------------------
# Weight preprocessing (one-time, outside the kernel).
# ---------------------------------------------------------------------------
def _pool_band(w_hwio, in_w, parity):
    """Block-Toeplitz conv weights restricted to output columns of one parity,
    so the 2x2 pool's W-direction becomes a plain elementwise max in-kernel."""
    kh, kw, cin, cout = w_hwio.shape
    out_w = in_w - kw + 1
    pw = out_w // 2
    w_idx = jnp.arange(in_w)[:, None, None]
    p_idx = jnp.arange(pw)[None, :, None]
    k_idx = jnp.arange(kw)[None, None, :]
    sel = (w_idx == 2 * p_idx + parity + k_idx).astype(w_hwio.dtype)  # [in_w, pw, kw]
    band = jnp.einsum('wpk,hkio->hwipo', sel, w_hwio)                 # [kh,in_w,cin,pw,cout]
    return band.reshape(kh, in_w * cin, pw * cout)


def _fused_pool_band(w_hwio, in_w, in_pad, out_pad):
    """[K, in_pad, 2*out_pad]: even-parity band in lanes [0,out_pad), odd band after."""
    kh = w_hwio.shape[0]
    halves = []
    for parity in (0, 1):
        b = _pool_band(w_hwio, in_w, parity)
        n_in, n_out = b.shape[1], b.shape[2]
        halves.append(jnp.zeros((kh, in_pad, out_pad), jnp.float32)
                      .at[:, :n_in, :n_out].set(b))
    return jnp.concatenate(halves, axis=-1)


def _pad_lanes(v, n):
    return jnp.zeros((n,), jnp.float32).at[:v.shape[0]].set(v)


def init_params(key, num_classes=10):
    """Deterministic init in native PyTorch layouts (OIHW convs, [out,in] linears)."""
    ks = jax.random.split(key, 10)

    def u(k, shape, fan_in):
        b = 1.0 / jnp.sqrt(fan_in)
        return jax.random.uniform(k, shape, jnp.float32, -b, b)

    return {
        "conv1_w": u(ks[0], (C1, 1, K, K), 1 * K * K), "conv1_b": u(ks[1], (C1,), 1 * K * K),
        "conv2_w": u(ks[2], (C2, C1, K, K), C1 * K * K), "conv2_b": u(ks[3], (C2,), C1 * K * K),
        "conv3_w": u(ks[4], (C3, C2, K, K), C2 * K * K), "conv3_b": u(ks[5], (C3,), C2 * K * K),
        "fc1_w": u(ks[6], (FC1_OUT, FC1_IN), FC1_IN), "fc1_b": u(ks[7], (FC1_OUT,), FC1_IN),
        "fc2_w": u(ks[8], (num_classes, FC1_OUT), FC1_OUT), "fc2_b": u(ks[9], (num_classes,), FC1_OUT),
    }


def prepare_params(p, num_classes=10):
    """Pure layout preprocessing: HWIO transposes, fused pool-parity bands, 128-lane pads."""
    bf16 = jnp.bfloat16
    w1 = jnp.transpose(p["conv1_w"], (2, 3, 1, 0))                    # [K,K,1,C1]
    w2 = jnp.transpose(p["conv2_w"], (2, 3, 1, 0))                    # [K,K,C1,C2]
    w3 = jnp.transpose(p["conv3_w"], (2, 3, 1, 0))                    # [K,K,C2,C3]
    n5 = max(LANES, ((num_classes + LANES - 1) // LANES) * LANES)

    w3p = jnp.zeros((K, LANES, LANES), jnp.float32).at[:, :K * C2, :C3].set(
        w3.reshape(K, K * C2, C3))
    w4p = jnp.zeros((LANES, LANES), jnp.float32).at[:FC1_IN, :FC1_OUT].set(p["fc1_w"].T)
    w5p = jnp.zeros((LANES, n5), jnp.float32).at[:FC1_OUT, :num_classes].set(p["fc2_w"].T)

    return {
        "w1": _fused_pool_band(w1, W0, W0, LANES).astype(bf16),       # [K, 32, 256]
        "b1": _pad_lanes(jnp.tile(p["conv1_b"], P1W), LANES)[None, :],  # [1, 128]
        "w2": _fused_pool_band(w2, P1W, LANES, LANES).astype(bf16),   # [K, 128, 256]
        "b2": _pad_lanes(jnp.tile(p["conv2_b"], P2W), LANES)[None, :],  # [1, 128]
        "w3": w3p.astype(bf16),                                       # [K, 128, 128]
        "b3": _pad_lanes(p["conv3_b"], LANES)[None, :],                # [1, 128]
        "w4": w4p.astype(bf16),                                       # [128, 128]
        "b4": _pad_lanes(p["fc1_b"], LANES)[None, :],                  # [1, 128]
        "w5": w5p.astype(bf16),                                       # [128, n5]
        "b5": _pad_lanes(p["fc2_b"], n5)[None, :],                     # [1, n5]
    }


# ---------------------------------------------------------------------------
# Forward pass (== LeNet5.forward, return_features=False)
# ---------------------------------------------------------------------------
@functools.partial(jax.jit, static_argnames=("num_classes", "tb"))
def lenet5_forward(x_nchw, kp, *, num_classes=10, tb=8):
    B, nc, h, w = x_nchw.shape
    assert (nc, h, w) == (1, H0, W0), "LeNet5 expects [B, 1, 32, 32] input"
    assert tb % 8 == 0, "batch block must be a multiple of 8 (sublane count)"
    n5 = kp["w5"].shape[1]

    Bp = pl.cdiv(B, tb) * tb
    x = x_nchw.reshape(B, H0, W0)
    if Bp != B:
        x = jnp.pad(x, ((0, Bp - B), (0, 0), (0, 0)))
    x_t = jnp.transpose(x, (1, 0, 2))                                 # [H0, Bp, W0] H-major
    steps = Bp // tb

    flops = 2 * Bp * (K * H1 * W0 * 2 * LANES + K * H2 * LANES * 2 * LANES
                      + K * LANES * LANES + LANES * LANES + LANES * n5)
    bytes_accessed = int(x_t.size * 4 + Bp * n5 * 4
                         + sum(int(v.size) * v.dtype.itemsize for v in kp.values()))
    cost = pl.CostEstimate(flops=flops, transcendentals=0, bytes_accessed=bytes_accessed)

    inv3 = lambda i: (0, 0, 0)        # loop-invariant 3-D weight blocks
    inv2 = lambda i: (0, 0)           # loop-invariant 2-D blocks

    out = pl.pallas_call(
        _lenet5_kernel,
        out_shape=jax.ShapeDtypeStruct((Bp, n5), jnp.float32),
        grid=(steps,),
        in_specs=[
            pl.BlockSpec((H0, tb, W0), lambda i: (0, i, 0)),          # image block (H-major)
            pl.BlockSpec((K, W0, 2 * LANES), inv3),                   # w1 fused even/odd band
            pl.BlockSpec((1, LANES), inv2),                           # b1 (tiled, padded)
            pl.BlockSpec((K, LANES, 2 * LANES), inv3),                # w2 fused even/odd band
            pl.BlockSpec((1, LANES), inv2),                           # b2
            pl.BlockSpec((K, LANES, LANES), inv3),                    # w3
            pl.BlockSpec((1, LANES), inv2),                           # b3
            pl.BlockSpec((LANES, LANES), inv2),                       # w4
            pl.BlockSpec((1, LANES), inv2),                           # b4
            pl.BlockSpec((LANES, n5), inv2),                          # w5 (lane-padded)
            pl.BlockSpec((1, n5), inv2),                              # b5 (lane-padded)
        ],
        out_specs=pl.BlockSpec((tb, n5), lambda i: (i, 0)),
        scratch_shapes=[
            pltpu.VMEM((H1 * tb, 2 * LANES), jnp.float32),            # conv1 accumulator
            pltpu.VMEM((H2 * tb, 2 * LANES), jnp.float32),            # conv2 accumulator
        ],
        compiler_params=pltpu.CompilerParams(
            dimension_semantics=("parallel",)),
        cost_estimate=cost,
    )(x_t, kp["w1"], kp["b1"], kp["w2"], kp["b2"], kp["w3"], kp["b3"],
      kp["w4"], kp["b4"], kp["w5"], kp["b5"])

    return out[:B, :num_classes]


# ---------------------------------------------------------------------------
# Pure-JAX reference (mirrors the PyTorch module exactly) for a sanity check.
# ---------------------------------------------------------------------------
@jax.jit
def _ref_forward(x_nchw, p):
    dn = ('NCHW', 'OIHW', 'NCHW')
    y = lax.conv_general_dilated(x_nchw, p["conv1_w"], (1, 1), 'VALID', dimension_numbers=dn)
    y = jax.nn.relu(y + p["conv1_b"][None, :, None, None])
    y = lax.reduce_window(y, -jnp.inf, lax.max, (1, 1, 2, 2), (1, 1, 2, 2), 'VALID')
    y = lax.conv_general_dilated(y, p["conv2_w"], (1, 1), 'VALID', dimension_numbers=dn)
    y = jax.nn.relu(y + p["conv2_b"][None, :, None, None])
    y = lax.reduce_window(y, -jnp.inf, lax.max, (1, 1, 2, 2), (1, 1, 2, 2), 'VALID')
    y = lax.conv_general_dilated(y, p["conv3_w"], (1, 1), 'VALID', dimension_numbers=dn)
    y = jax.nn.relu(y + p["conv3_b"][None, :, None, None])
    f = y.reshape(y.shape[0], C3)
    f = jax.nn.relu(f @ p["fc1_w"].T + p["fc1_b"])
    return f @ p["fc2_w"].T + p["fc2_b"]


if __name__ == "__main__":
    key = jax.random.PRNGKey(0)
    k_x, k_p = jax.random.split(key)
    # Classic LeNet-5 input: [B, 1, 32, 32]. B=16 with tb=8 -> 2 grid steps (v7x-friendly).
    B = 16
    x = jax.random.normal(k_x, (B, 1, 32, 32), jnp.float32)
    params = init_params(k_p, num_classes=10)
    kparams = prepare_params(params, num_classes=10)

    out = lenet5_forward(x, kparams, num_classes=10, tb=8)
    jax.block_until_ready(out)
    assert out.shape == (B, 10), out.shape

    # Loose tolerance: kernel uses bf16 MXU operands with f32 accumulation.
    ref = _ref_forward(x, params)
    import numpy as np
    np.testing.assert_allclose(np.asarray(out), np.asarray(ref), rtol=0.1, atol=0.05)

    print("KERNEL_OK")
</pallas_src>

<mosaic_0001>
module attributes {stable_mosaic.version = 11 : i64} {
  func.func @_lenet5_kernel(%arg0: i32, %arg1: memref<32x8x32xf32, #tpu.memory_space<vmem>>, %arg2: memref<5x32x256xbf16, #tpu.memory_space<vmem>>, %arg3: memref<1x128xf32, #tpu.memory_space<vmem>>, %arg4: memref<5x128x256xbf16, #tpu.memory_space<vmem>>, %arg5: memref<1x128xf32, #tpu.memory_space<vmem>>, %arg6: memref<5x128x128xbf16, #tpu.memory_space<vmem>>, %arg7: memref<1x128xf32, #tpu.memory_space<vmem>>, %arg8: memref<128x128xbf16, #tpu.memory_space<vmem>>, %arg9: memref<1x128xf32, #tpu.memory_space<vmem>>, %arg10: memref<128x128xbf16, #tpu.memory_space<vmem>>, %arg11: memref<1x128xf32, #tpu.memory_space<vmem>>, %arg12: memref<8x128xf32, #tpu.memory_space<vmem>>, %arg13: memref<224x256xf32, #tpu.memory_space<vmem>>, %arg14: memref<80x256xf32, #tpu.memory_space<vmem>>) attributes {dimension_semantics = [#tpu.dimension_semantics<parallel>], iteration_bounds = array<i64: 2>, scalar_prefetch = 0 : i64, scratch_operands = 2 : i64, tpu.core_type = #tpu.core_type<tc>, window_params = [{transform_indices = @transform_0, window_bounds = array<i64: 32, 8, 32>}, {pipeline_mode = #tpu.pipeline_mode<synchronous>, transform_indices = @transform_1, window_bounds = array<i64: 5, 32, 256>}, {pipeline_mode = #tpu.pipeline_mode<synchronous>, transform_indices = @transform_2, window_bounds = array<i64: 1, 128>}, {pipeline_mode = #tpu.pipeline_mode<synchronous>, transform_indices = @transform_3, window_bounds = array<i64: 5, 128, 256>}, {pipeline_mode = #tpu.pipeline_mode<synchronous>, transform_indices = @transform_4, window_bounds = array<i64: 1, 128>}, {pipeline_mode = #tpu.pipeline_mode<synchronous>, transform_indices = @transform_5, window_bounds = array<i64: 5, 128, 128>}, {pipeline_mode = #tpu.pipeline_mode<synchronous>, transform_indices = @transform_6, window_bounds = array<i64: 1, 128>}, {pipeline_mode = #tpu.pipeline_mode<synchronous>, transform_indices = @transform_7, window_bounds = array<i64: 128, 128>}, {pipeline_mode = #tpu.pipeline_mode<synchronous>, transform_indices = @transform_8, window_bounds = array<i64: 1, 128>}, {pipeline_mode = #tpu.pipeline_mode<synchronous>, transform_indices = @transform_9, window_bounds = array<i64: 128, 128>}, {pipeline_mode = #tpu.pipeline_mode<synchronous>, transform_indices = @transform_10, window_bounds = array<i64: 1, 128>}, {transform_indices = @transform_11, window_bounds = array<i64: 8, 128>}]} {
    %c0 = arith.constant 0 : index
    %c0_0 = arith.constant 0 : index
    %c0_1 = arith.constant 0 : index
    %0 = vector.load %arg1[%c0, %c0_0, %c0_1] : memref<32x8x32xf32, #tpu.memory_space<vmem>>, vector<32x8x32xf32>
    %1 = arith.truncf %0 : vector<32x8x32xf32> to vector<32x8x32xbf16>
    %2 = vector.shape_cast %1 : vector<32x8x32xbf16> to vector<256x32xbf16>
    %3 = vector.extract_strided_slice %2 {offsets = [0, 0], sizes = [224, 32], strides = [1, 1]} : vector<256x32xbf16> to vector<224x32xbf16>
    %c0_2 = arith.constant 0 : index
    %c0_3 = arith.constant 0 : index
    %c0_4 = arith.constant 0 : index
    %4 = vector.load %arg2[%c0_2, %c0_3, %c0_4] : memref<5x32x256xbf16, #tpu.memory_space<vmem>>, vector<1x32x256xbf16>
    %5 = vector.shape_cast %4 : vector<1x32x256xbf16> to vector<32x256xbf16>
    %cst = arith.constant dense<0.000000e+00> : vector<224x256xf32>
    %6 = tpu.matmul %3, %5, %cst {dimension_numbers = #tpu.dot_dimension_numbers<[1], [0], [0], [1], [0, 0, 1, 1], [], []>} : vector<224x32xbf16>, vector<32x256xbf16>, vector<224x256xf32> -> vector<224x256xf32>
    %c0_5 = arith.constant 0 : index
    %c0_6 = arith.constant 0 : index
    %7 = vector.load %arg13[%c0_5, %c0_6] : memref<224x256xf32, #tpu.memory_space<vmem>>, vector<224x256xf32>
    tpu.vector_store %arg13[%c0_5, %c0_6], %6 {strides = array<i32>} : memref<224x256xf32, #tpu.memory_space<vmem>>, vector<224x256xf32>,
    %8 = vector.extract_strided_slice %2 {offsets = [8, 0], sizes = [224, 32], strides = [1, 1]} : vector<256x32xbf16> to vector<224x32xbf16>
    %c1 = arith.constant 1 : index
    %c0_7 = arith.constant 0 : index
    %c0_8 = arith.constant 0 : index
    %9 = vector.load %arg2[%c1, %c0_7, %c0_8] : memref<5x32x256xbf16, #tpu.memory_space<vmem>>, vector<1x32x256xbf16>
    %10 = vector.shape_cast %9 : vector<1x32x256xbf16> to vector<32x256xbf16>
    %cst_9 = arith.constant dense<0.000000e+00> : vector<224x256xf32>
    %11 = tpu.matmul %8, %10, %cst_9 {dimension_numbers = #tpu.dot_dimension_numbers<[1], [0], [0], [1], [0, 0, 1, 1], [], []>} : vector<224x32xbf16>, vector<32x256xbf16>, vector<224x256xf32> -> vector<224x256xf32>
    %c0_10 = arith.constant 0 : index
    %c0_11 = arith.constant 0 : index
    %12 = vector.load %arg13[%c0_10, %c0_11] : memref<224x256xf32, #tpu.memory_space<vmem>>, vector<224x256xf32>
    %13 = arith.addf %12, %11 : vector<224x256xf32>
    %c0_12 = arith.constant 0 : index
    %c0_13 = arith.constant 0 : index
    %14 = vector.load %arg13[%c0_12, %c0_13] : memref<224x256xf32, #tpu.memory_space<vmem>>, vector<224x256xf32>
    tpu.vector_store %arg13[%c0_12, %c0_13], %13 {strides = array<i32>} : memref<224x256xf32, #tpu.memory_space<vmem>>, vector<224x256xf32>,
    %15 = vector.extract_strided_slice %2 {offsets = [16, 0], sizes = [224, 32], strides = [1, 1]} : vector<256x32xbf16> to vector<224x32xbf16>
    %c2 = arith.constant 2 : index
    %c0_14 = arith.constant 0 : index
    %c0_15 = arith.constant 0 : index
    %16 = vector.load %arg2[%c2, %c0_14, %c0_15] : memref<5x32x256xbf16, #tpu.memory_space<vmem>>, vector<1x32x256xbf16>
    %17 = vector.shape_cast %16 : vector<1x32x256xbf16> to vector<32x256xbf16>
    %cst_16 = arith.constant dense<0.000000e+00> : vector<224x256xf32>
    %18 = tpu.matmul %15, %17, %cst_16 {dimension_numbers = #tpu.dot_dimension_numbers<[1], [0], [0], [1], [0, 0, 1, 1], [], []>} : vector<224x32xbf16>, vector<32x256xbf16>, vector<224x256xf32> -> vector<224x256xf32>
    %c0_17 = arith.constant 0 : index
    %c0_18 = arith.constant 0 : index
    %19 = vector.load %arg13[%c0_17, %c0_18] : memref<224x256xf32, #tpu.memory_space<vmem>>, vector<224x256xf32>
    %20 = arith.addf %19, %18 : vector<224x256xf32>
    %c0_19 = arith.constant 0 : index
    %c0_20 = arith.constant 0 : index
    %21 = vector.load %arg13[%c0_19, %c0_20] : memref<224x256xf32, #tpu.memory_space<vmem>>, vector<224x256xf32>
    tpu.vector_store %arg13[%c0_19, %c0_20], %20 {strides = array<i32>} : memref<224x256xf32, #tpu.memory_space<vmem>>, vector<224x256xf32>,
    %22 = vector.extract_strided_slice %2 {offsets = [24, 0], sizes = [224, 32], strides = [1, 1]} : vector<256x32xbf16> to vector<224x32xbf16>
    %c3 = arith.constant 3 : index
    %c0_21 = arith.constant 0 : index
    %c0_22 = arith.constant 0 : index
    %23 = vector.load %arg2[%c3, %c0_21, %c0_22] : memref<5x32x256xbf16, #tpu.memory_space<vmem>>, vector<1x32x256xbf16>
    %24 = vector.shape_cast %23 : vector<1x32x256xbf16> to vector<32x256xbf16>
    %cst_23 = arith.constant dense<0.000000e+00> : vector<224x256xf32>
    %25 = tpu.matmul %22, %24, %cst_23 {dimension_numbers = #tpu.dot_dimension_numbers<[1], [0], [0], [1], [0, 0, 1, 1], [], []>} : vector<224x32xbf16>, vector<32x256xbf16>, vector<224x256xf32> -> vector<224x256xf32>
    %c0_24 = arith.constant 0 : index
    %c0_25 = arith.constant 0 : index
    %26 = vector.load %arg13[%c0_24, %c0_25] : memref<224x256xf32, #tpu.memory_space<vmem>>, vector<224x256xf32>
    %27 = arith.addf %26, %25 : vector<224x256xf32>
    %c0_26 = arith.constant 0 : index
    %c0_27 = arith.constant 0 : index
    %28 = vector.load %arg13[%c0_26, %c0_27] : memref<224x256xf32, #tpu.memory_space<vmem>>, vector<224x256xf32>
    tpu.vector_store %arg13[%c0_26, %c0_27], %27 {strides = array<i32>} : memref<224x256xf32, #tpu.memory_space<vmem>>, vector<224x256xf32>,
    %29 = vector.extract_strided_slice %2 {offsets = [32, 0], sizes = [224, 32], strides = [1, 1]} : vector<256x32xbf16> to vector<224x32xbf16>
    %c4 = arith.constant 4 : index
    %c0_28 = arith.constant 0 : index
    %c0_29 = arith.constant 0 : index
    %30 = vector.load %arg2[%c4, %c0_28, %c0_29] : memref<5x32x256xbf16, #tpu.memory_space<vmem>>, vector<1x32x256xbf16>
    %31 = vector.shape_cast %30 : vector<1x32x256xbf16> to vector<32x256xbf16>
    %cst_30 = arith.constant dense<0.000000e+00> : vector<224x256xf32>
    %32 = tpu.matmul %29, %31, %cst_30 {dimension_numbers = #tpu.dot_dimension_numbers<[1], [0], [0], [1], [0, 0, 1, 1], [], []>} : vector<224x32xbf16>, vector<32x256xbf16>, vector<224x256xf32> -> vector<224x256xf32>
    %c0_31 = arith.constant 0 : index
    %c0_32 = arith.constant 0 : index
    %33 = vector.load %arg13[%c0_31, %c0_32] : memref<224x256xf32, #tpu.memory_space<vmem>>, vector<224x256xf32>
    %34 = arith.addf %33, %32 : vector<224x256xf32>
    %c0_33 = arith.constant 0 : index
    %c0_34 = arith.constant 0 : index
    %35 = vector.load %arg13[%c0_33, %c0_34] : memref<224x256xf32, #tpu.memory_space<vmem>>, vector<224x256xf32>
    tpu.vector_store %arg13[%c0_33, %c0_34], %34 {strides = array<i32>} : memref<224x256xf32, #tpu.memory_space<vmem>>, vector<224x256xf32>,
    %c0_35 = arith.constant 0 : index
    %c0_36 = arith.constant 0 : index
    %36 = vector.load %arg13[%c0_35, %c0_36] : memref<224x256xf32, #tpu.memory_space<vmem>>, vector<224x256xf32>
    %37 = vector.extract_strided_slice %36 {offsets = [0, 0], sizes = [224, 128], strides = [1, 1]} : vector<224x256xf32> to vector<224x128xf32>
    %38 = vector.extract_strided_slice %36 {offsets = [0, 128], sizes = [224, 128], strides = [1, 1]} : vector<224x256xf32> to vector<224x128xf32>
    %39 = arith.maximumf %37, %38 : vector<224x128xf32>
    %c0_37 = arith.constant 0 : index
    %c0_38 = arith.constant 0 : index
    %40 = vector.load %arg3[%c0_37, %c0_38] : memref<1x128xf32, #tpu.memory_space<vmem>>, vector<1x128xf32>
    %41 = vector.broadcast %40 : vector<1x128xf32> to vector<224x128xf32>
    %42 = arith.addf %39, %41 : vector<224x128xf32>
    %cst_39 = arith.constant 0.000000e+00 : f32
    %43 = vector.broadcast %cst_39 : f32 to vector<224x128xf32>
    %44 = arith.maximumf %42, %43 : vector<224x128xf32>
    %45 = vector.shape_cast %44 : vector<224x128xf32> to vector<14x2x8x128xf32>
    %46 = vector.extract_strided_slice %45 {offsets = [0, 0, 0, 0], sizes = [14, 1, 8, 128], strides = [1, 1, 1, 1]} : vector<14x2x8x128xf32> to vector<14x1x8x128xf32>
    %47 = vector.shape_cast %46 : vector<14x1x8x128xf32> to vector<14x8x128xf32>
    %48 = vector.extract_strided_slice %45 {offsets = [0, 1, 0, 0], sizes = [14, 1, 8, 128], strides = [1, 1, 1, 1]} : vector<14x2x8x128xf32> to vector<14x1x8x128xf32>
    %49 = vector.shape_cast %48 : vector<14x1x8x128xf32> to vector<14x8x128xf32>
    %50 = arith.maximumf %47, %49 : vector<14x8x128xf32>
    %51 = arith.truncf %50 : vector<14x8x128xf32> to vector<14x8x128xbf16>
    %52 = vector.shape_cast %51 : vector<14x8x128xbf16> to vector<112x128xbf16>
    %53 = vector.extract_strided_slice %52 {offsets = [0, 0], sizes = [80, 128], strides = [1, 1]} : vector<112x128xbf16> to vector<80x128xbf16>
    %c0_40 = arith.constant 0 : index
    %c0_41 = arith.constant 0 : index
    %c0_42 = arith.constant 0 : index
    %54 = vector.load %arg4[%c0_40, %c0_41, %c0_42] : memref<5x128x256xbf16, #tpu.memory_space<vmem>>, vector<1x128x256xbf16>
    %55 = vector.shape_cast %54 : vector<1x128x256xbf16> to vector<128x256xbf16>
    %cst_43 = arith.constant dense<0.000000e+00> : vector<80x256xf32>
    %56 = tpu.matmul %53, %55, %cst_43 {dimension_numbers = #tpu.dot_dimension_numbers<[1], [0], [0], [1], [0, 0, 1, 1], [], []>} : vector<80x128xbf16>, vector<128x256xbf16>, vector<80x256xf32> -> vector<80x256xf32>
    %c0_44 = arith.constant 0 : index
    %c0_45 = arith.constant 0 : index
    %57 = vector.load %arg14[%c0_44, %c0_45] : memref<80x256xf32, #tpu.memory_space<vmem>>, vector<80x256xf32>
    tpu.vector_store %arg14[%c0_44, %c0_45], %56 {strides = array<i32>} : memref<80x256xf32, #tpu.memory_space<vmem>>, vector<80x256xf32>,
    %58 = vector.extract_strided_slice %52 {offsets = [8, 0], sizes = [80, 128], strides = [1, 1]} : vector<112x128xbf16> to vector<80x128xbf16>
    %c1_46 = arith.constant 1 : index
    %c0_47 = arith.constant 0 : index
    %c0_48 = arith.constant 0 : index
    %59 = vector.load %arg4[%c1_46, %c0_47, %c0_48] : memref<5x128x256xbf16, #tpu.memory_space<vmem>>, vector<1x128x256xbf16>
    %60 = vector.shape_cast %59 : vector<1x128x256xbf16> to vector<128x256xbf16>
    %cst_49 = arith.constant dense<0.000000e+00> : vector<80x256xf32>
    %61 = tpu.matmul %58, %60, %cst_49 {dimension_numbers = #tpu.dot_dimension_numbers<[1], [0], [0], [1], [0, 0, 1, 1], [], []>} : vector<80x128xbf16>, vector<128x256xbf16>, vector<80x256xf32> -> vector<80x256xf32>
    %c0_50 = arith.constant 0 : index
    %c0_51 = arith.constant 0 : index
    %62 = vector.load %arg14[%c0_50, %c0_51] : memref<80x256xf32, #tpu.memory_space<vmem>>, vector<80x256xf32>
    %63 = arith.addf %62, %61 : vector<80x256xf32>
    %c0_52 = arith.constant 0 : index
    %c0_53 = arith.constant 0 : index
    %64 = vector.load %arg14[%c0_52, %c0_53] : memref<80x256xf32, #tpu.memory_space<vmem>>, vector<80x256xf32>
    tpu.vector_store %arg14[%c0_52, %c0_53], %63 {strides = array<i32>} : memref<80x256xf32, #tpu.memory_space<vmem>>, vector<80x256xf32>,
    %65 = vector.extract_strided_slice %52 {offsets = [16, 0], sizes = [80, 128], strides = [1, 1]} : vector<112x128xbf16> to vector<80x128xbf16>
    %c2_54 = arith.constant 2 : index
    %c0_55 = arith.constant 0 : index
    %c0_56 = arith.constant 0 : index
    %66 = vector.load %arg4[%c2_54, %c0_55, %c0_56] : memref<5x128x256xbf16, #tpu.memory_space<vmem>>, vector<1x128x256xbf16>
    %67 = vector.shape_cast %66 : vector<1x128x256xbf16> to vector<128x256xbf16>
    %cst_57 = arith.constant dense<0.000000e+00> : vector<80x256xf32>
    %68 = tpu.matmul %65, %67, %cst_57 {dimension_numbers = #tpu.dot_dimension_numbers<[1], [0], [0], [1], [0, 0, 1, 1], [], []>} : vector<80x128xbf16>, vector<128x256xbf16>, vector<80x256xf32> -> vector<80x256xf32>
    %c0_58 = arith.constant 0 : index
    %c0_59 = arith.constant 0 : index
    %69 = vector.load %arg14[%c0_58, %c0_59] : memref<80x256xf32, #tpu.memory_space<vmem>>, vector<80x256xf32>
    %70 = arith.addf %69, %68 : vector<80x256xf32>
    %c0_60 = arith.constant 0 : index
    %c0_61 = arith.constant 0 : index
    %71 = vector.load %arg14[%c0_60, %c0_61] : memref<80x256xf32, #tpu.memory_space<vmem>>, vector<80x256xf32>
    tpu.vector_store %arg14[%c0_60, %c0_61], %70 {strides = array<i32>} : memref<80x256xf32, #tpu.memory_space<vmem>>, vector<80x256xf32>,
    %72 = vector.extract_strided_slice %52 {offsets = [24, 0], sizes = [80, 128], strides = [1, 1]} : vector<112x128xbf16> to vector<80x128xbf16>
    %c3_62 = arith.constant 3 : index
    %c0_63 = arith.constant 0 : index
    %c0_64 = arith.constant 0 : index
    %73 = vector.load %arg4[%c3_62, %c0_63, %c0_64] : memref<5x128x256xbf16, #tpu.memory_space<vmem>>, vector<1x128x256xbf16>
    %74 = vector.shape_cast %73 : vector<1x128x256xbf16> to vector<128x256xbf16>
    %cst_65 = arith.constant dense<0.000000e+00> : vector<80x256xf32>
    %75 = tpu.matmul %72, %74, %cst_65 {dimension_numbers = #tpu.dot_dimension_numbers<[1], [0], [0], [1], [0, 0, 1, 1], [], []>} : vector<80x128xbf16>, vector<128x256xbf16>, vector<80x256xf32> -> vector<80x256xf32>
    %c0_66 = arith.constant 0 : index
    %c0_67 = arith.constant 0 : index
    %76 = vector.load %arg14[%c0_66, %c0_67] : memref<80x256xf32, #tpu.memory_space<vmem>>, vector<80x256xf32>
    %77 = arith.addf %76, %75 : vector<80x256xf32>
    %c0_68 = arith.constant 0 : index
    %c0_69 = arith.constant 0 : index
    %78 = vector.load %arg14[%c0_68, %c0_69] : memref<80x256xf32, #tpu.memory_space<vmem>>, vector<80x256xf32>
    tpu.vector_store %arg14[%c0_68, %c0_69], %77 {strides = array<i32>} : memref<80x256xf32, #tpu.memory_space<vmem>>, vector<80x256xf32>,
    %79 = vector.extract_strided_slice %52 {offsets = [32, 0], sizes = [80, 128], strides = [1, 1]} : vector<112x128xbf16> to vector<80x128xbf16>
    %c4_70 = arith.constant 4 : index
    %c0_71 = arith.constant 0 : index
    %c0_72 = arith.constant 0 : index
    %80 = vector.load %arg4[%c4_70, %c0_71, %c0_72] : memref<5x128x256xbf16, #tpu.memory_space<vmem>>, vector<1x128x256xbf16>
    %81 = vector.shape_cast %80 : vector<1x128x256xbf16> to vector<128x256xbf16>
    %cst_73 = arith.constant dense<0.000000e+00> : vector<80x256xf32>
    %82 = tpu.matmul %79, %81, %cst_73 {dimension_numbers = #tpu.dot_dimension_numbers<[1], [0], [0], [1], [0, 0, 1, 1], [], []>} : vector<80x128xbf16>, vector<128x256xbf16>, vector<80x256xf32> -> vector<80x256xf32>
    %c0_74 = arith.constant 0 : index
    %c0_75 = arith.constant 0 : index
    %83 = vector.load %arg14[%c0_74, %c0_75] : memref<80x256xf32, #tpu.memory_space<vmem>>, vector<80x256xf32>
    %84 = arith.addf %83, %82 : vector<80x256xf32>
    %c0_76 = arith.constant 0 : index
    %c0_77 = arith.constant 0 : index
    %85 = vector.load %arg14[%c0_76, %c0_77] : memref<80x256xf32, #tpu.memory_space<vmem>>, vector<80x256xf32>
    tpu.vector_store %arg14[%c0_76, %c0_77], %84 {strides = array<i32>} : memref<80x256xf32, #tpu.memory_space<vmem>>, vector<80x256xf32>,
    %c0_78 = arith.constant 0 : index
    %c0_79 = arith.constant 0 : index
    %86 = vector.load %arg14[%c0_78, %c0_79] : memref<80x256xf32, #tpu.memory_space<vmem>>, vector<80x256xf32>
    %87 = vector.extract_strided_slice %86 {offsets = [0, 0], sizes = [80, 128], strides = [1, 1]} : vector<80x256xf32> to vector<80x128xf32>
    %88 = vector.extract_strided_slice %86 {offsets = [0, 128], sizes = [80, 128], strides = [1, 1]} : vector<80x256xf32> to vector<80x128xf32>
    %89 = arith.maximumf %87, %88 : vector<80x128xf32>
    %c0_80 = arith.constant 0 : index
    %c0_81 = arith.constant 0 : index
    %90 = vector.load %arg5[%c0_80, %c0_81] : memref<1x128xf32, #tpu.memory_space<vmem>>, vector<1x128xf32>
    %91 = vector.broadcast %90 : vector<1x128xf32> to vector<80x128xf32>
    %92 = arith.addf %89, %91 : vector<80x128xf32>
    %cst_82 = arith.constant 0.000000e+00 : f32
    %93 = vector.broadcast %cst_82 : f32 to vector<80x128xf32>
    %94 = arith.maximumf %92, %93 : vector<80x128xf32>
    %95 = vector.shape_cast %94 : vector<80x128xf32> to vector<5x2x8x128xf32>
    %96 = vector.extract_strided_slice %95 {offsets = [0, 0, 0, 0], sizes = [5, 1, 8, 128], strides = [1, 1, 1, 1]} : vector<5x2x8x128xf32> to vector<5x1x8x128xf32>
    %97 = vector.shape_cast %96 : vector<5x1x8x128xf32> to vector<5x8x128xf32>
    %98 = vector.extract_strided_slice %95 {offsets = [0, 1, 0, 0], sizes = [5, 1, 8, 128], strides = [1, 1, 1, 1]} : vector<5x2x8x128xf32> to vector<5x1x8x128xf32>
    %99 = vector.shape_cast %98 : vector<5x1x8x128xf32> to vector<5x8x128xf32>
    %100 = arith.maximumf %97, %99 : vector<5x8x128xf32>
    %101 = arith.truncf %100 : vector<5x8x128xf32> to vector<5x8x128xbf16>
    %102 = vector.extract_strided_slice %101 {offsets = [0, 0, 0], sizes = [1, 8, 128], strides = [1, 1, 1]} : vector<5x8x128xbf16> to vector<1x8x128xbf16>
    %103 = vector.shape_cast %102 : vector<1x8x128xbf16> to vector<8x128xbf16>
    %c0_83 = arith.constant 0 : index
    %c0_84 = arith.constant 0 : index
    %c0_85 = arith.constant 0 : index
    %104 = vector.load %arg6[%c0_83, %c0_84, %c0_85] : memref<5x128x128xbf16, #tpu.memory_space<vmem>>, vector<1x128x128xbf16>
    %105 = vector.shape_cast %104 : vector<1x128x128xbf16> to vector<128x128xbf16>
    %cst_86 = arith.constant dense<0.000000e+00> : vector<8x128xf32>
    %106 = tpu.matmul %103, %105, %cst_86 {dimension_numbers = #tpu.dot_dimension_numbers<[1], [0], [0], [1], [0, 0, 1, 1], [], []>} : vector<8x128xbf16>, vector<128x128xbf16>, vector<8x128xf32> -> vector<8x128xf32>
    %107 = vector.extract_strided_slice %101 {offsets = [1, 0, 0], sizes = [1, 8, 128], strides = [1, 1, 1]} : vector<5x8x128xbf16> to vector<1x8x128xbf16>
    %108 = vector.shape_cast %107 : vector<1x8x128xbf16> to vector<8x128xbf16>
    %c1_87 = arith.constant 1 : index
    %c0_88 = arith.constant 0 : index
    %c0_89 = arith.constant 0 : index
    %109 = vector.load %arg6[%c1_87, %c0_88, %c0_89] : memref<5x128x128xbf16, #tpu.memory_space<vmem>>, vector<1x128x128xbf16>
    %110 = vector.shape_cast %109 : vector<1x128x128xbf16> to vector<128x128xbf16>
    %cst_90 = arith.constant dense<0.000000e+00> : vector<8x128xf32>
    %111 = tpu.matmul %108, %110, %cst_90 {dimension_numbers = #tpu.dot_dimension_numbers<[1], [0], [0], [1], [0, 0, 1, 1], [], []>} : vector<8x128xbf16>, vector<128x128xbf16>, vector<8x128xf32> -> vector<8x128xf32>
    %112 = arith.addf %106, %111 : vector<8x128xf32>
    %113 = vector.extract_strided_slice %101 {offsets = [2, 0, 0], sizes = [1, 8, 128], strides = [1, 1, 1]} : vector<5x8x128xbf16> to vector<1x8x128xbf16>
    %114 = vector.shape_cast %113 : vector<1x8x128xbf16> to vector<8x128xbf16>
    %c2_91 = arith.constant 2 : index
    %c0_92 = arith.constant 0 : index
    %c0_93 = arith.constant 0 : index
    %115 = vector.load %arg6[%c2_91, %c0_92, %c0_93] : memref<5x128x128xbf16, #tpu.memory_space<vmem>>, vector<1x128x128xbf16>
    %116 = vector.shape_cast %115 : vector<1x128x128xbf16> to vector<128x128xbf16>
    %cst_94 = arith.constant dense<0.000000e+00> : vector<8x128xf32>
    %117 = tpu.matmul %114, %116, %cst_94 {dimension_numbers = #tpu.dot_dimension_numbers<[1], [0], [0], [1], [0, 0, 1, 1], [], []>} : vector<8x128xbf16>, vector<128x128xbf16>, vector<8x128xf32> -> vector<8x128xf32>
    %118 = arith.addf %112, %117 : vector<8x128xf32>
    %119 = vector.extract_strided_slice %101 {offsets = [3, 0, 0], sizes = [1, 8, 128], strides = [1, 1, 1]} : vector<5x8x128xbf16> to vector<1x8x128xbf16>
    %120 = vector.shape_cast %119 : vector<1x8x128xbf16> to vector<8x128xbf16>
    %c3_95 = arith.constant 3 : index
    %c0_96 = arith.constant 0 : index
    %c0_97 = arith.constant 0 : index
    %121 = vector.load %arg6[%c3_95, %c0_96, %c0_97] : memref<5x128x128xbf16, #tpu.memory_space<vmem>>, vector<1x128x128xbf16>
    %122 = vector.shape_cast %121 : vector<1x128x128xbf16> to vector<128x128xbf16>
    %cst_98 = arith.constant dense<0.000000e+00> : vector<8x128xf32>
    %123 = tpu.matmul %120, %122, %cst_98 {dimension_numbers = #tpu.dot_dimension_numbers<[1], [0], [0], [1], [0, 0, 1, 1], [], []>} : vector<8x128xbf16>, vector<128x128xbf16>, vector<8x128xf32> -> vector<8x128xf32>
    %124 = arith.addf %118, %123 : vector<8x128xf32>
    %125 = vector.extract_strided_slice %101 {offsets = [4, 0, 0], sizes = [1, 8, 128], strides = [1, 1, 1]} : vector<5x8x128xbf16> to vector<1x8x128xbf16>
    %126 = vector.shape_cast %125 : vector<1x8x128xbf16> to vector<8x128xbf16>
    %c4_99 = arith.constant 4 : index
    %c0_100 = arith.constant 0 : index
    %c0_101 = arith.constant 0 : index
    %127 = vector.load %arg6[%c4_99, %c0_100, %c0_101] : memref<5x128x128xbf16, #tpu.memory_space<vmem>>, vector<1x128x128xbf16>
    %128 = vector.shape_cast %127 : vector<1x128x128xbf16> to vector<128x128xbf16>
    %cst_102 = arith.constant dense<0.000000e+00> : vector<8x128xf32>
    %129 = tpu.matmul %126, %128, %cst_102 {dimension_numbers = #tpu.dot_dimension_numbers<[1], [0], [0], [1], [0, 0, 1, 1], [], []>} : vector<8x128xbf16>, vector<128x128xbf16>, vector<8x128xf32> -> vector<8x128xf32>
    %130 = arith.addf %124, %129 : vector<8x128xf32>
    %c0_103 = arith.constant 0 : index
    %c0_104 = arith.constant 0 : index
    %131 = vector.load %arg7[%c0_103, %c0_104] : memref<1x128xf32, #tpu.memory_space<vmem>>, vector<1x128xf32>
    %132 = vector.broadcast %131 : vector<1x128xf32> to vector<8x128xf32>
    %133 = arith.addf %130, %132 : vector<8x128xf32>
    %cst_105 = arith.constant 0.000000e+00 : f32
    %134 = vector.broadcast %cst_105 : f32 to vector<8x128xf32>
    %135 = arith.maximumf %133, %134 : vector<8x128xf32>
    %136 = arith.truncf %135 : vector<8x128xf32> to vector<8x128xbf16>
    %c0_106 = arith.constant 0 : index
    %c0_107 = arith.constant 0 : index
    %137 = vector.load %arg8[%c0_106, %c0_107] : memref<128x128xbf16, #tpu.memory_space<vmem>>, vector<128x128xbf16>
    %cst_108 = arith.constant dense<0.000000e+00> : vector<8x128xf32>
    %138 = tpu.matmul %136, %137, %cst_108 {dimension_numbers = #tpu.dot_dimension_numbers<[1], [0], [0], [1], [0, 0, 1, 1], [], []>} : vector<8x128xbf16>, vector<128x128xbf16>, vector<8x128xf32> -> vector<8x128xf32>
    %c0_109 = arith.constant 0 : index
    %c0_110 = arith.constant 0 : index
    %139 = vector.load %arg9[%c0_109, %c0_110] : memref<1x128xf32, #tpu.memory_space<vmem>>, vector<1x128xf32>
    %140 = vector.broadcast %139 : vector<1x128xf32> to vector<8x128xf32>
    %141 = arith.addf %138, %140 : vector<8x128xf32>
    %cst_111 = arith.constant 0.000000e+00 : f32
    %142 = vector.broadcast %cst_111 : f32 to vector<8x128xf32>
    %143 = arith.maximumf %141, %142 : vector<8x128xf32>
    %144 = arith.truncf %143 : vector<8x128xf32> to vector<8x128xbf16>
    %c0_112 = arith.constant 0 : index
    %c0_113 = arith.constant 0 : index
    %145 = vector.load %arg10[%c0_112, %c0_113] : memref<128x128xbf16, #tpu.memory_space<vmem>>, vector<128x128xbf16>
    %cst_114 = arith.constant dense<0.000000e+00> : vector<8x128xf32>
    %146 = tpu.matmul %144, %145, %cst_114 {dimension_numbers = #tpu.dot_dimension_numbers<[1], [0], [0], [1], [0, 0, 1, 1], [], []>} : vector<8x128xbf16>, vector<128x128xbf16>, vector<8x128xf32> -> vector<8x128xf32>
    %c0_115 = arith.constant 0 : index
    %c0_116 = arith.constant 0 : index
    %147 = vector.load %arg11[%c0_115, %c0_116] : memref<1x128xf32, #tpu.memory_space<vmem>>, vector<1x128xf32>
    %148 = vector.broadcast %147 : vector<1x128xf32> to vector<8x128xf32>
    %149 = arith.addf %146, %148 : vector<8x128xf32>
    %c0_117 = arith.constant 0 : index
    %c0_118 = arith.constant 0 : index
    %150 = vector.load %arg12[%c0_117, %c0_118] : memref<8x128xf32, #tpu.memory_space<vmem>>, vector<8x128xf32>
    tpu.vector_store %arg12[%c0_117, %c0_118], %149 {strides = array<i32>} : memref<8x128xf32, #tpu.memory_space<vmem>>, vector<8x128xf32>,
    return
  }
  func.func @transform_0(%arg0: i32) -> (i32, i32, i32) {
    %c0_i32 = arith.constant 0 : i32
    %c0_i32_0 = arith.constant 0 : i32
    %c0_i32_1 = arith.constant 0 : i32
    return %c0_i32, %arg0, %c0_i32_0 : i32, i32, i32
  }
  func.func @transform_1(%arg0: i32) -> (i32, i32, i32) {
    %c0_i32 = arith.constant 0 : i32
    %c0_i32_0 = arith.constant 0 : i32
    %c0_i32_1 = arith.constant 0 : i32
    %c0_i32_2 = arith.constant 0 : i32
    return %c0_i32, %c0_i32_0, %c0_i32_1 : i32, i32, i32
  }
  func.func @transform_2(%arg0: i32) -> (i32, i32) {
    %c0_i32 = arith.constant 0 : i32
    %c0_i32_0 = arith.constant 0 : i32
    %c0_i32_1 = arith.constant 0 : i32
    return %c0_i32, %c0_i32_0 : i32, i32
  }
  func.func @transform_3(%arg0: i32) -> (i32, i32, i32) {
    %c0_i32 = arith.constant 0 : i32
    %c0_i32_0 = arith.constant 0 : i32
    %c0_i32_1 = arith.constant 0 : i32
    %c0_i32_2 = arith.constant 0 : i32
    return %c0_i32, %c0_i32_0, %c0_i32_1 : i32, i32, i32
  }
  func.func @transform_4(%arg0: i32) -> (i32, i32) {
    %c0_i32 = arith.constant 0 : i32
    %c0_i32_0 = arith.constant 0 : i32
    %c0_i32_1 = arith.constant 0 : i32
    return %c0_i32, %c0_i32_0 : i32, i32
  }
  func.func @transform_5(%arg0: i32) -> (i32, i32, i32) {
    %c0_i32 = arith.constant 0 : i32
    %c0_i32_0 = arith.constant 0 : i32
    %c0_i32_1 = arith.constant 0 : i32
    %c0_i32_2 = arith.constant 0 : i32
    return %c0_i32, %c0_i32_0, %c0_i32_1 : i32, i32, i32
  }
  func.func @transform_6(%arg0: i32) -> (i32, i32) {
    %c0_i32 = arith.constant 0 : i32
    %c0_i32_0 = arith.constant 0 : i32
    %c0_i32_1 = arith.constant 0 : i32
    return %c0_i32, %c0_i32_0 : i32, i32
  }
  func.func @transform_7(%arg0: i32) -> (i32, i32) {
    %c0_i32 = arith.constant 0 : i32
    %c0_i32_0 = arith.constant 0 : i32
    %c0_i32_1 = arith.constant 0 : i32
    return %c0_i32, %c0_i32_0 : i32, i32
  }
  func.func @transform_8(%arg0: i32) -> (i32, i32) {
    %c0_i32 = arith.constant 0 : i32
    %c0_i32_0 = arith.constant 0 : i32
    %c0_i32_1 = arith.constant 0 : i32
    return %c0_i32, %c0_i32_0 : i32, i32
  }
  func.func @transform_9(%arg0: i32) -> (i32, i32) {
    %c0_i32 = arith.constant 0 : i32
    %c0_i32_0 = arith.constant 0 : i32
    %c0_i32_1 = arith.constant 0 : i32
    return %c0_i32, %c0_i32_0 : i32, i32
  }
  func.func @transform_10(%arg0: i32) -> (i32, i32) {
    %c0_i32 = arith.constant 0 : i32
    %c0_i32_0 = arith.constant 0 : i32
    %c0_i32_1 = arith.constant 0 : i32
    return %c0_i32, %c0_i32_0 : i32, i32
  }
  func.func @transform_11(%arg0: i32) -> (i32, i32) {
    %c0_i32 = arith.constant 0 : i32
    %c0_i32_0 = arith.constant 0 : i32
    return %arg0, %c0_i32 : i32, i32
  }
}

</mosaic_0001>

<llo_original>
// kernel: lenet5_forward.1
$region0: #{lenet5_forward.1}
  #allocation0 [shape = 'u32[]', space=smem, size = 0x4, offset = 0x4, fixed_abs, tag = 'smem constant byte address 0x4 - core index']
  #allocation1 [shape = 'u32[144,128]{1,0:T(1,128)}', space=vmem, size = 0x12000, scoped, tag = 'internal scratch']
  #allocation2 [shape = 'f32[224,256]{1,0:T(8,128)}', space=vmem, size = 0x38000, scoped, tag = 'scratch operand']
  #allocation3 [shape = 'f32[80,256]{1,0:T(8,128)}', space=vmem, size = 0x14000, scoped, tag = 'scratch operand']
  %s0 = inlined_call_operand.vmem [shape: f32[32,16,32], index: 0, kind: input, shape index: {}]
  %s1 = inlined_call_operand.hbm [shape: bf16[5,32,256], index: 1, kind: input, shape index: {}]
  %s2 = inlined_call_operand.vmem [shape: f32[1,128], index: 2, kind: input, shape index: {}]
  %s3 = inlined_call_operand.vmem [shape: bf16[5,128,256], index: 3, kind: input, shape index: {}]
  %s4 = inlined_call_operand.vmem [shape: f32[1,128], index: 4, kind: input, shape index: {}]
  %s5 = inlined_call_operand.vmem [shape: bf16[5,128,128], index: 5, kind: input, shape index: {}]
  %s6 = inlined_call_operand.vmem [shape: f32[1,128], index: 6, kind: input, shape index: {}]
  %s7 = inlined_call_operand.vmem [shape: bf16[128,128], index: 7, kind: input, shape index: {}]
  %s8 = inlined_call_operand.vmem [shape: f32[1,128], index: 8, kind: input, shape index: {}]
  %s9 = inlined_call_operand.hbm [shape: bf16[128,128], index: 9, kind: input, shape index: {}]
  %s10 = inlined_call_operand.vmem [shape: f32[1,128], index: 10, kind: input, shape index: {}]
  %s11 = inlined_call_operand.hbm [shape: f32[16,128], index: 11, kind: output, shape index: {}]
  %s12 = sld [smem:[#allocation0]]
  $region123: #{lenet5_forward.1} parent=0
    _
  %s14 = ssub.s32 1, %s12
  %s15 = scalar_select 0, %s14, %s12
  $region1: #{lenet5_forward.1} parent=0
    #allocation4 [shape = 'u8[262144]{0}', space=vmem, size = 0x40000, scoped, tag = 'input window, operand 0']
    #allocation5 [shape = 'u8[81920]{0}', space=vmem, size = 0x14000, scoped, tag = 'input window, operand 1, single buffered']
    #allocation6 [shape = 's32[2]{0}', space=sflag, size = 0x8, scoped, tag = 'scoped memory for lenet5_forward.1']
    #allocation7 [shape = 's32[2]{0}', space=sflag, size = 0x8, scoped, tag = 'scoped memory for lenet5_forward.1']
    #allocation8 [shape = 'u8[32768]{0}', space=vmem, size = 0x8000, scoped, tag = 'input window, operand 9, single buffered']
    #allocation9 [shape = 's32[1]{0}', space=sflag, size = 0x4, scoped, tag = 'scoped memory for lenet5_forward.1']
    #allocation10 [shape = 'u8[8192]{0}', space=vmem, size = 0x2000, scoped, tag = 'output window, operand 0']
    %16 = vsyncpa [#allocation6], 0
    %17 = vsyncpa [#allocation9], 0
    %18 = vsyncpa [#allocation7], 0
    %s19 = scalar_lea.sflag [#allocation7], 1
    %20 = vsyncpa %s19, 0
    loop: start=0, step=1, limit=4
    $region2: #{lenet5_forward.1} parent=1 // loop_pre_header
      _
    $region3: #{lenet5_forward.1} parent=1 // loop_header
      %s22 = sphi 0, %s26
      %p23 = scmp.ge.s32.totalorder %s22, 4
      %s32 = sphi 0, %s34
      %s35 = sphi 0, %s32
      %s36 = sphi 0, %s35
      %s52 = sphi 0, %s36
      %s56 = sphi 0, %s56
      %s58 = sphi 0, %s56
      %s59 = sphi 0, %s58
      %s73 = sphi 0, %s59
      %s77 = sphi 0, %s77
      %s79 = sphi 0, %s77
      %s80 = sphi 0, %s79
      %s94 = sphi 0, %s80
      %s98 = sphi 0, %s98
      %s100 = sphi 0, %s98
      %s101 = sphi 0, %s100
      %s115 = sphi 0, %s101
      %s119 = sphi 0, %s119
      %s121 = sphi 0, %s119
      %s122 = sphi 0, %s121
      %s136 = sphi 0, %s122
      %s140 = sphi 0, %s140
      %s142 = sphi 0, %s140
      %s143 = sphi 0, %s142
      %s157 = sphi 0, %s143
      %s161 = sphi 0, %s161
      %s163 = sphi 0, %s161
      %s164 = sphi 0, %s163
      %s178 = sphi 0, %s164
      %s182 = sphi 0, %s182
      %s184 = sphi 0, %s182
      %s185 = sphi 0, %s184
      %s199 = sphi 0, %s185
      %s203 = sphi 0, %s203
      %s205 = sphi 0, %s203
      %s206 = sphi 0, %s205
      %s220 = sphi 0, %s206
      %s224 = sphi 0, %s224
      %s226 = sphi 0, %s224
      %s227 = sphi 0, %s226
      %s241 = sphi 0, %s227
      %s245 = sphi 0, %s245
      %s247 = sphi 0, %s245
      %s248 = sphi 0, %s247
      %s262 = sphi 0, %s248
      %s268 = sphi 0, %s270
      %s271 = sphi 0, %s268
      %s272 = sphi 0, %s271
      %s288 = sphi 0, %s272
    $region4: #{lenet5_forward.1} parent=1 // loop_header_branch
      %25 = sbr.rel (%p23) target = $region8
    $region5: #{lenet5_forward.1} parent=1 // loop_body
      %s27 = ssub.s32 %s22, 1
      %s28 = ssub.s32 %s22, 2
      %s29 = sadd.s32 %s22, 1
      %s30 = ssub.s32 %s22, %s29
      %p31 = scmp.eq.s32.totalorder %s30, 0
      %s33 = sadd.s32 %s32, 1
      %s34 = scalar_select %p31, %s32, %s33
      %p37 = pneg %p31
      %p38 = scmp.eq.s32.totalorder %s22, 1
      %p39 = por %p37, %p38
      %p40 = scmp.ne.s32.totalorder %s32, %s35
      %p41 = scmp.eq.s32.totalorder %s22, 0
      %p42 = por %p40, %p41
      %p43 = scmp.ne.s32.totalorder %s32, %s35
      %p44 = scmp.eq.s32.totalorder %s27, 1
      %p45 = por %p43, %p44
      %p46 = scmp.ne.s32.totalorder %s35, %s36
      %p47 = scmp.eq.s32.totalorder %s27, 0
      %p48 = por %p46, %p47
      %p49 = scmp.ne.s32.totalorder %s35, %s36
      %p50 = scmp.eq.s32.totalorder %s28, 1
      %p51 = por %p49, %p50
      %p53 = scmp.ne.s32.totalorder %s36, %s52
      %p54 = scmp.eq.s32.totalorder %s28, 0
      %p55 = por %p53, %p54
      %s57 = sadd.s32 %s56, 1
      %p60 = scmp.eq.s32.totalorder %s22, 1
      %p61 = scmp.ne.s32.totalorder %s56, %s58
      %p62 = scmp.eq.s32.totalorder %s22, 0
      %p63 = por %p61, %p62
      %p64 = scmp.ne.s32.totalorder %s56, %s58
      %p65 = scmp.eq.s32.totalorder %s27, 1
      %p66 = por %p64, %p65
      %p67 = scmp.ne.s32.totalorder %s58, %s59
      %p68 = scmp.eq.s32.totalorder %s27, 0
      %p69 = por %p67, %p68
      %p70 = scmp.ne.s32.totalorder %s58, %s59
      %p71 = scmp.eq.s32.totalorder %s28, 1
      %p72 = por %p70, %p71
      %p74 = scmp.ne.s32.totalorder %s59, %s73
      %p75 = scmp.eq.s32.totalorder %s28, 0
      %p76 = por %p74, %p75
      %s78 = sadd.s32 %s77, 1
      %p81 = scmp.eq.s32.totalorder %s22, 1
      %p82 = scmp.ne.s32.totalorder %s77, %s79
      %p83 = scmp.eq.s32.totalorder %s22, 0
      %p84 = por %p82, %p83
      %p85 = scmp.ne.s32.totalorder %s77, %s79
      %p86 = scmp.eq.s32.totalorder %s27, 1
      %p87 = por %p85, %p86
      %p88 = scmp.ne.s32.totalorder %s79, %s80
      %p89 = scmp.eq.s32.totalorder %s27, 0
      %p90 = por %p88, %p89
      %p91 = scmp.ne.s32.totalorder %s79, %s80
      %p92 = scmp.eq.s32.totalorder %s28, 1
      %p93 = por %p91, %p92
      %p95 = scmp.ne.s32.totalorder %s80, %s94
      %p96 = scmp.eq.s32.totalorder %s28, 0
      %p97 = por %p95, %p96
      %s99 = sadd.s32 %s98, 1
      %p102 = scmp.eq.s32.totalorder %s22, 1
      %p103 = scmp.ne.s32.totalorder %s98, %s100
      %p104 = scmp.eq.s32.totalorder %s22, 0
      %p105 = por %p103, %p104
      %p106 = scmp.ne.s32.totalorder %s98, %s100
      %p107 = scmp.eq.s32.totalorder %s27, 1
      %p108 = por %p106, %p107
      %p109 = scmp.ne.s32.totalorder %s100, %s101
      %p110 = scmp.eq.s32.totalorder %s27, 0
      %p111 = por %p109, %p110
      %p112 = scmp.ne.s32.totalorder %s100, %s101
      %p113 = scmp.eq.s32.totalorder %s28, 1
      %p114 = por %p112, %p113
      %p116 = scmp.ne.s32.totalorder %s101, %s115
      %p117 = scmp.eq.s32.totalorder %s28, 0
      %p118 = por %p116, %p117
      %s120 = sadd.s32 %s119, 1
      %p123 = scmp.eq.s32.totalorder %s22, 1
      %p124 = scmp.ne.s32.totalorder %s119, %s121
      %p125 = scmp.eq.s32.totalorder %s22, 0
      %p126 = por %p124, %p125
      %p127 = scmp.ne.s32.totalorder %s119, %s121
      %p128 = scmp.eq.s32.totalorder %s27, 1
      %p129 = por %p127, %p128
      %p130 = scmp.ne.s32.totalorder %s121, %s122
      %p131 = scmp.eq.s32.totalorder %s27, 0
      %p132 = por %p130, %p131
      %p133 = scmp.ne.s32.totalorder %s121, %s122
      %p134 = scmp.eq.s32.totalorder %s28, 1
      %p135 = por %p133, %p134
      %p137 = scmp.ne.s32.totalorder %s122, %s136
      %p138 = scmp.eq.s32.totalorder %s28, 0
      %p139 = por %p137, %p138
      %s141 = sadd.s32 %s140, 1
      %p144 = scmp.eq.s32.totalorder %s22, 1
      %p145 = scmp.ne.s32.totalorder %s140, %s142
      %p146 = scmp.eq.s32.totalorder %s22, 0
      %p147 = por %p145, %p146
      %p148 = scmp.ne.s32.totalorder %s140, %s142
      %p149 = scmp.eq.s32.totalorder %s27, 1
      %p150 = por %p148, %p149
      %p151 = scmp.ne.s32.totalorder %s142, %s143
      %p152 = scmp.eq.s32.totalorder %s27, 0
      %p153 = por %p151, %p152
      %p154 = scmp.ne.s32.totalorder %s142, %s143
      %p155 = scmp.eq.s32.totalorder %s28, 1
      %p156 = por %p154, %p155
      %p158 = scmp.ne.s32.totalorder %s143, %s157
      %p159 = scmp.eq.s32.totalorder %s28, 0
      %p160 = por %p158, %p159
      %s162 = sadd.s32 %s161, 1
      %p165 = scmp.eq.s32.totalorder %s22, 1
      %p166 = scmp.ne.s32.totalorder %s161, %s163
      %p167 = scmp.eq.s32.totalorder %s22, 0
      %p168 = por %p166, %p167
      %p169 = scmp.ne.s32.totalorder %s161, %s163
      %p170 = scmp.eq.s32.totalorder %s27, 1
      %p171 = por %p169, %p170
      %p172 = scmp.ne.s32.totalorder %s163, %s164
      %p173 = scmp.eq.s32.totalorder %s27, 0
      %p174 = por %p172, %p173
      %p175 = scmp.ne.s32.totalorder %s163, %s164
      %p176 = scmp.eq.s32.totalorder %s28, 1
      %p177 = por %p175, %p176
      %p179 = scmp.ne.s32.totalorder %s164, %s178
      %p180 = scmp.eq.s32.totalorder %s28, 0
      %p181 = por %p179, %p180
      %s183 = sadd.s32 %s182, 1
      %p186 = scmp.eq.s32.totalorder %s22, 1
      %p187 = scmp.ne.s32.totalorder %s182, %s184
      %p188 = scmp.eq.s32.totalorder %s22, 0
      %p189 = por %p187, %p188
      %p190 = scmp.ne.s32.totalorder %s182, %s184
      %p191 = scmp.eq.s32.totalorder %s27, 1
      %p192 = por %p190, %p191
      %p193 = scmp.ne.s32.totalorder %s184, %s185
      %p194 = scmp.eq.s32.totalorder %s27, 0
      %p195 = por %p193, %p194
      %p196 = scmp.ne.s32.totalorder %s184, %s185
      %p197 = scmp.eq.s32.totalorder %s28, 1
      %p198 = por %p196, %p197
      %p200 = scmp.ne.s32.totalorder %s185, %s199
      %p201 = scmp.eq.s32.totalorder %s28, 0
      %p202 = por %p200, %p201
      %s204 = sadd.s32 %s203, 1
      %p207 = scmp.eq.s32.totalorder %s22, 1
      %p208 = scmp.ne.s32.totalorder %s203, %s205
      %p209 = scmp.eq.s32.totalorder %s22, 0
      %p210 = por %p208, %p209
      %p211 = scmp.ne.s32.totalorder %s203, %s205
      %p212 = scmp.eq.s32.totalorder %s27, 1
      %p213 = por %p211, %p212
      %p214 = scmp.ne.s32.totalorder %s205, %s206
      %p215 = scmp.eq.s32.totalorder %s27, 0
      %p216 = por %p214, %p215
      %p217 = scmp.ne.s32.totalorder %s205, %s206
      %p218 = scmp.eq.s32.totalorder %s28, 1
      %p219 = por %p217, %p218
      %p221 = scmp.ne.s32.totalorder %s206, %s220
      %p222 = scmp.eq.s32.totalorder %s28, 0
      %p223 = por %p221, %p222
      %s225 = sadd.s32 %s224, 1
      %p228 = scmp.eq.s32.totalorder %s22, 1
      %p229 = scmp.ne.s32.totalorder %s224, %s226
      %p230 = scmp.eq.s32.totalorder %s22, 0
      %p231 = por %p229, %p230
      %p232 = scmp.ne.s32.totalorder %s224, %s226
      %p233 = scmp.eq.s32.totalorder %s27, 1
      %p234 = por %p232, %p233
      %p235 = scmp.ne.s32.totalorder %s226, %s227
      %p236 = scmp.eq.s32.totalorder %s27, 0
      %p237 = por %p235, %p236
      %p238 = scmp.ne.s32.totalorder %s226, %s227
      %p239 = scmp.eq.s32.totalorder %s28, 1
      %p240 = por %p238, %p239
      %p242 = scmp.ne.s32.totalorder %s227, %s241
      %p243 = scmp.eq.s32.totalorder %s28, 0
      %p244 = por %p242, %p243
      %s246 = sadd.s32 %s245, 1
      %p249 = scmp.eq.s32.totalorder %s22, 1
      %p250 = scmp.ne.s32.totalorder %s245, %s247
      %p251 = scmp.eq.s32.totalorder %s22, 0
      %p252 = por %p250, %p251
      %p253 = scmp.ne.s32.totalorder %s245, %s247
      %p254 = scmp.eq.s32.totalorder %s27, 1
      %p255 = por %p253, %p254
      %p256 = scmp.ne.s32.totalorder %s247, %s248
      %p257 = scmp.eq.s32.totalorder %s27, 0
      %p258 = por %p256, %p257
      %p259 = scmp.ne.s32.totalorder %s247, %s248
      %p260 = scmp.eq.s32.totalorder %s28, 1
      %p261 = por %p259, %p260
      %p263 = scmp.ne.s32.totalorder %s248, %s262
      %p264 = scmp.eq.s32.totalorder %s28, 0
      %p265 = por %p263, %p264
      %s266 = ssub.s32 %s22, %s29
      %p267 = scmp.eq.s32.totalorder %s266, 0
      %s269 = sadd.s32 %s268, 1
      %s270 = scalar_select %p267, %s268, %s269
      %p273 = pneg %p267
      %p274 = scmp.eq.s32.totalorder %s22, 1
      %p275 = por %p273, %p274
      %p276 = scmp.ne.s32.totalorder %s268, %s271
      %p277 = scmp.eq.s32.totalorder %s22, 0
      %p278 = por %p276, %p277
      %p279 = scmp.ne.s32.totalorder %s268, %s271
      %p280 = scmp.eq.s32.totalorder %s27, 1
      %p281 = por %p279, %p280
      %p282 = scmp.ne.s32.totalorder %s271, %s272
      %p283 = scmp.eq.s32.totalorder %s27, 0
      %p284 = por %p282, %p283
      %p285 = scmp.ne.s32.totalorder %s271, %s272
      %p286 = scmp.eq.s32.totalorder %s28, 1
      %p287 = por %p285, %p286
      %p289 = scmp.ne.s32.totalorder %s272, %s288
      %p290 = scmp.eq.s32.totalorder %s28, 0
      %p291 = por %p289, %p290
      %p292 = scmp.le.s32.totalorder 1, %s22
      %p293 = scmp.lt.s32.totalorder %s22, 3
      %p294 = pnand %p292, %p293
      %p295 = pneg %p294
      // Predicated region
      $region9: #{lenet5_forward.1} parent=5 // pred_check
        _
      $region10: #{lenet5_forward.1} parent=5 // pred_check_branch
        %297 = sbr.rel (%p294) target = $region12
      $region11: #{lenet5_forward.1} parent=5 // pred_region
        %s298 = ssub.s32 %s22, 1
        // Predicated region
        $region13: #{lenet5_forward.1} parent=11 // pred_check
          %p299 = pneg %p69
        $region14: #{lenet5_forward.1} parent=11 // pred_check_branch
          %301 = sbr.rel (%p299) target = $region16
        $region15: #{lenet5_forward.1} parent=11 // pred_region
          %s303 = ssub.s32 2560, 2560
          %304 = vsyncadd [#allocation6], %s303
          %s305 = sshll.u32 [#allocation5], 4
          %s306 = int_to_ptr.vmem [resolvable:$true] %s305
          %311 = dma.hbm_to_vmem [thread:$0]  %s1, 2560, %s306, [#allocation6], 128, 128, 8
        $region16: #{lenet5_forward.1} parent=11 // pred_fallthru
          _
        // Predicated region
        $region17: #{lenet5_forward.1} parent=11 // pred_check
          %p312 = pneg %p90
        $region18: #{lenet5_forward.1} parent=11 // pred_check_branch
          %314 = sbr.rel (%p312) target = $region20
        $region19: #{lenet5_forward.1} parent=11 // pred_region
          _
        $region20: #{lenet5_forward.1} parent=11 // pred_fallthru
          _
        // Predicated region
        $region21: #{lenet5_forward.1} parent=11 // pred_check
          %p315 = pneg %p111
        $region22: #{lenet5_forward.1} parent=11 // pred_check_branch
          %317 = sbr.rel (%p315) target = $region24
        $region23: #{lenet5_forward.1} parent=11 // pred_region
          _
        $region24: #{lenet5_forward.1} parent=11 // pred_fallthru
          _
        // Predicated region
        $region25: #{lenet5_forward.1} parent=11 // pred_check
          %p318 = pneg %p132
        $region26: #{lenet5_forward.1} parent=11 // pred_check_branch
          %320 = sbr.rel (%p318) target = $region28
        $region27: #{lenet5_forward.1} parent=11 // pred_region
          _
        $region28: #{lenet5_forward.1} parent=11 // pred_fallthru
          _
        // Predicated region
        $region29: #{lenet5_forward.1} parent=11 // pred_check
          %p321 = pneg %p153
        $region30: #{lenet5_forward.1} parent=11 // pred_check_branch
          %323 = sbr.rel (%p321) target = $region32
        $region31: #{lenet5_forward.1} parent=11 // pred_region
          _
        $region32: #{lenet5_forward.1} parent=11 // pred_fallthru
          _
        // Predicated region
        $region33: #{lenet5_forward.1} parent=11 // pred_check
          %p324 = pneg %p174
        $region34: #{lenet5_forward.1} parent=11 // pred_check_branch
          %326 = sbr.rel (%p324) target = $region36
        $region35: #{lenet5_forward.1} parent=11 // pred_region
          _
        $region36: #{lenet5_forward.1} parent=11 // pred_fallthru
          _
        // Predicated region
        $region37: #{lenet5_forward.1} parent=11 // pred_check
          %p327 = pneg %p195
        $region38: #{lenet5_forward.1} parent=11 // pred_check_branch
          %329 = sbr.rel (%p327) target = $region40
        $region39: #{lenet5_forward.1} parent=11 // pred_region
          _
        $region40: #{lenet5_forward.1} parent=11 // pred_fallthru
          _
        // Predicated region
        $region41: #{lenet5_forward.1} parent=11 // pred_check
          %p330 = pneg %p216
        $region42: #{lenet5_forward.1} parent=11 // pred_check_branch
          %332 = sbr.rel (%p330) target = $region44
        $region43: #{lenet5_forward.1} parent=11 // pred_region
          _
        $region44: #{lenet5_forward.1} parent=11 // pred_fallthru
          _
        // Predicated region
        $region45: #{lenet5_forward.1} parent=11 // pred_check
          %p333 = pneg %p237
        $region46: #{lenet5_forward.1} parent=11 // pred_check_branch
          %335 = sbr.rel (%p333) target = $region48
        $region47: #{lenet5_forward.1} parent=11 // pred_region
          %s337 = ssub.s32 1024, 1024
          %338 = vsyncadd [#allocation9], %s337
          %s339 = sshll.u32 [#allocation8], 4
          %s340 = int_to_ptr.vmem [resolvable:$true] %s339
          %345 = dma.hbm_to_vmem [thread:$0]  %s9, 1024, %s340, [#allocation9], 64, 64, 4
        $region48: #{lenet5_forward.1} parent=11 // pred_fallthru
          _
        // Predicated region
        $region49: #{lenet5_forward.1} parent=11 // pred_check
          %p346 = pneg %p258
        $region50: #{lenet5_forward.1} parent=11 // pred_check_branch
          %348 = sbr.rel (%p346) target = $region52
        $region51: #{lenet5_forward.1} parent=11 // pred_region
          _
        $region52: #{lenet5_forward.1} parent=11 // pred_fallthru
          _
      $region12: #{lenet5_forward.1} parent=5 // pred_fallthru
        _
      %p349 = scmp.lt.s32.totalorder %s22, 2
      // Predicated region
      $region53: #{lenet5_forward.1} parent=5 // pred_check
        %p350 = pneg %p349
      $region54: #{lenet5_forward.1} parent=5 // pred_check_branch
        %352 = sbr.rel (%p350) target = $region56
      $region55: #{lenet5_forward.1} parent=5 // pred_region
        // Predicated region
        $region57: #{lenet5_forward.1} parent=55 // pred_check
          %p353 = pneg %p42
        $region58: #{lenet5_forward.1} parent=55 // pred_check_branch
          %355 = sbr.rel (%p353) target = $region60
        $region59: #{lenet5_forward.1} parent=55 // pred_region
          %s356 = sand.u32 %s32, 1
          %s357 = sand.u32 %s32, 1
          %s358 = smul.addr %s357, 256
          %s359 = scalar_lea.vmem [#allocation4], %s358
          %s360 = smul.addr %s22, 8
          %s361 = scalar_lea.vmem %s0, %s360
          // Predicated region
          $region61: #{lenet5_forward.1} parent=59 // pred_check
            _
          $region62: #{lenet5_forward.1} parent=59 // pred_check_branch
            %363 = sbr.rel (0) target = $region64
          $region63: #{lenet5_forward.1} parent=59 // pred_region
            // Predicated region
            $region65: #{lenet5_forward.1} parent=63 // pred_check
              _
            $region66: #{lenet5_forward.1} parent=63 // pred_check_branch
              %365 = sbr.rel (0) target = $region68
            $region67: #{lenet5_forward.1} parent=63 // pred_region
              // Predicated region
              $region80: #{lenet5_forward.1} parent=67 // pred_check
                _
              $region81: #{lenet5_forward.1} parent=67 // pred_check_branch
                %442 = sbr.rel (0) target = $region83
              $region82: #{lenet5_forward.1} parent=67 // pred_region
                loop: start=0, step=1, limit=1
                $region84: #{lenet5_forward.1} parent=82 // loop_pre_header
                  _
                $region85: #{lenet5_forward.1} parent=82 // loop_header
                  %s444 = sphi 0, %s448
                  %p445 = scmp.ge.s32.totalorder %s444, 1
                  %s449 = sphi %s361, %s361
                  %s450 = sphi %s359, %s359
                $region86: #{lenet5_forward.1} parent=82 // loop_header_branch
                  %447 = sbr.rel (%p445) target = $region90
                $region87: #{lenet5_forward.1} parent=82 // loop_body
                  %v451 = vld [vmem:[%s449] sm:$0xff]
                  %452 = vst [vmem:[%s450] sm:$0xff] %v451
                  %v453 = vld [vmem:[%s449 + $0x10] sm:$0xff]
                  %454 = vst [vmem:[%s450 + $0x8] sm:$0xff] %v453
                  %v455 = vld [vmem:[%s449 + $0x20] sm:$0xff]
                  %456 = vst [vmem:[%s450 + $0x10] sm:$0xff] %v455
                  %v457 = vld [vmem:[%s449 + $0x30] sm:$0xff]
                  %458 = vst [vmem:[%s450 + $0x18] sm:$0xff] %v457
                  %v459 = vld [vmem:[%s449 + $0x40] sm:$0xff]
                  %460 = vst [vmem:[%s450 + $0x20] sm:$0xff] %v459
                  %v461 = vld [vmem:[%s449 + $0x50] sm:$0xff]
                  %462 = vst [vmem:[%s450 + $0x28] sm:$0xff] %v461
                  %v463 = vld [vmem:[%s449 + $0x60] sm:$0xff]
                  %464 = vst [vmem:[%s450 + $0x30] sm:$0xff] %v463
                  %v465 = vld [vmem:[%s449 + $0x70] sm:$0xff]
                  %466 = vst [vmem:[%s450 + $0x38] sm:$0xff] %v465
                  %v467 = vld [vmem:[%s449 + $0x80] sm:$0xff]
                  %468 = vst [vmem:[%s450 + $0x40] sm:$0xff] %v467
                  %v469 = vld [vmem:[%s449 + $0x90] sm:$0xff]
                  %470 = vst [vmem:[%s450 + $0x48] sm:$0xff] %v469
                  %v471 = vld [vmem:[%s449 + $0xa0] sm:$0xff]
                  %472 = vst [vmem:[%s450 + $0x50] sm:$0xff] %v471
                  %v473 = vld [vmem:[%s449 + $0xb0] sm:$0xff]
                  %474 = vst [vmem:[%s450 + $0x58] sm:$0xff] %v473
                  %v475 = vld [vmem:[%s449 + $0xc0] sm:$0xff]
                  %476 = vst [vmem:[%s450 + $0x60] sm:$0xff] %v475
                  %v477 = vld [vmem:[%s449 + $0xd0] sm:$0xff]
                  %478 = vst [vmem:[%s450 + $0x68] sm:$0xff] %v477
                  %v479 = vld [vmem:[%s449 + $0xe0] sm:$0xff]
                  %480 = vst [vmem:[%s450 + $0x70] sm:$0xff] %v479
                  %v481 = vld [vmem:[%s449 + $0xf0] sm:$0xff]
                  %482 = vst [vmem:[%s450 + $0x78] sm:$0xff] %v481
                  %v483 = vld [vmem:[%s449 + $0x100] sm:$0xff]
                  %484 = vst [vmem:[%s450 + $0x80] sm:$0xff] %v483
                  %v485 = vld [vmem:[%s449 + $0x110] sm:$0xff]
                  %486 = vst [vmem:[%s450 + $0x88] sm:$0xff] %v485
                  %v487 = vld [vmem:[%s449 + $0x120] sm:$0xff]
                  %488 = vst [vmem:[%s450 + $0x90] sm:$0xff] %v487
                  %v489 = vld [vmem:[%s449 + $0x130] sm:$0xff]
                  %490 = vst [vmem:[%s450 + $0x98] sm:$0xff] %v489
                  %v491 = vld [vmem:[%s449 + $0x140] sm:$0xff]
                  %492 = vst [vmem:[%s450 + $0xa0] sm:$0xff] %v491
                  %v493 = vld [vmem:[%s449 + $0x150] sm:$0xff]
                  %494 = vst [vmem:[%s450 + $0xa8] sm:$0xff] %v493
                  %v495 = vld [vmem:[%s449 + $0x160] sm:$0xff]
                  %496 = vst [vmem:[%s450 + $0xb0] sm:$0xff] %v495
                  %v497 = vld [vmem:[%s449 + $0x170] sm:$0xff]
                  %498 = vst [vmem:[%s450 + $0xb8] sm:$0xff] %v497
                  %v499 = vld [vmem:[%s449 + $0x180] sm:$0xff]
                  %500 = vst [vmem:[%s450 + $0xc0] sm:$0xff] %v499
                  %v501 = vld [vmem:[%s449 + $0x190] sm:$0xff]
                  %502 = vst [vmem:[%s450 + $0xc8] sm:$0xff] %v501
                  %v503 = vld [vmem:[%s449 + $0x1a0] sm:$0xff]
                  %504 = vst [vmem:[%s450 + $0xd0] sm:$0xff] %v503
                  %v505 = vld [vmem:[%s449 + $0x1b0] sm:$0xff]
                  %506 = vst [vmem:[%s450 + $0xd8] sm:$0xff] %v505
                  %v507 = vld [vmem:[%s449 + $0x1c0] sm:$0xff]
                  %508 = vst [vmem:[%s450 + $0xe0] sm:$0xff] %v507
                  %v509 = vld [vmem:[%s449 + $0x1d0] sm:$0xff]
                  %510 = vst [vmem:[%s450 + $0xe8] sm:$0xff] %v509
                  %v511 = vld [vmem:[%s449 + $0x1e0] sm:$0xff]
                  %512 = vst [vmem:[%s450 + $0xf0] sm:$0xff] %v511
                  %v513 = vld [vmem:[%s449 + $0x1f0] sm:$0xff]
                  %514 = vst [vmem:[%s450 + $0xf8] sm:$0xff] %v513
                $region88: #{lenet5_forward.1} parent=82 // loop_footer
                  %s448 = sadd.s32 1, %s444
                $region89: #{lenet5_forward.1} parent=82 // loop_footer_branch
                  %443 = sbr.rel target = $region85
                $region90: #{lenet5_forward.1} parent=82 // loop_exit
                  _
              $region83: #{lenet5_forward.1} parent=67 // pred_fallthru
                _
              // Predicated region
              $region91: #{lenet5_forward.1} parent=67 // pred_check
                _
              $region92: #{lenet5_forward.1} parent=67 // pred_check_branch
                %516 = sbr.rel target = $region94
              $region93: #{lenet5_forward.1} parent=67 // pred_region
                _
              $region94: #{lenet5_forward.1} parent=67 // pred_fallthru
                _
            $region68: #{lenet5_forward.1} parent=63 // pred_fallthru
              _
            // Predicated region
            $region69: #{lenet5_forward.1} parent=63 // pred_check
              _
            $region70: #{lenet5_forward.1} parent=63 // pred_check_branch
              %367 = sbr.rel target = $region72
            $region71: #{lenet5_forward.1} parent=63 // pred_region
              loop: start=0, step=1, limit=1
              $region73: #{lenet5_forward.1} parent=71 // loop_pre_header
                _
              $region74: #{lenet5_forward.1} parent=71 // loop_header
                %s370 = sphi 0, %s374
                %p371 = scmp.ge.s32.totalorder %s370, 1
                %s375 = sphi %s361, %s361
                %s376 = sphi %s359, %s359
              $region75: #{lenet5_forward.1} parent=71 // loop_header_branch
                %373 = sbr.rel (%p371) target = $region79
              $region76: #{lenet5_forward.1} parent=71 // loop_body
                %v377 = vld [vmem:[%s375] sm:$0xff]
                %378 = vst [vmem:[%s376] sm:$0xff] %v377
                %v379 = vld [vmem:[%s375 + $0x10] sm:$0xff]
                %380 = vst [vmem:[%s376 + $0x8] sm:$0xff] %v379
                %v381 = vld [vmem:[%s375 + $0x20] sm:$0xff]
                %382 = vst [vmem:[%s376 + $0x10] sm:$0xff] %v381
                %v383 = vld [vmem:[%s375 + $0x30] sm:$0xff]
                %384 = vst [vmem:[%s376 + $0x18] sm:$0xff] %v383
                %v385 = vld [vmem:[%s375 + $0x40] sm:$0xff]
                %386 = vst [vmem:[%s376 + $0x20] sm:$0xff] %v385
                %v387 = vld [vmem:[%s375 + $0x50] sm:$0xff]
                %388 = vst [vmem:[%s376 + $0x28] sm:$0xff] %v387
                %v389 = vld [vmem:[%s375 + $0x60] sm:$0xff]
                %390 = vst [vmem:[%s376 + $0x30] sm:$0xff] %v389
                %v391 = vld [vmem:[%s375 + $0x70] sm:$0xff]
                %392 = vst [vmem:[%s376 + $0x38] sm:$0xff] %v391
                %v393 = vld [vmem:[%s375 + $0x80] sm:$0xff]
                %394 = vst [vmem:[%s376 + $0x40] sm:$0xff] %v393
                %v395 = vld [vmem:[%s375 + $0x90] sm:$0xff]
                %396 = vst [vmem:[%s376 + $0x48] sm:$0xff] %v395
                %v397 = vld [vmem:[%s375 + $0xa0] sm:$0xff]
                %398 = vst [vmem:[%s376 + $0x50] sm:$0xff] %v397
                %v399 = vld [vmem:[%s375 + $0xb0] sm:$0xff]
                %400 = vst [vmem:[%s376 + $0x58] sm:$0xff] %v399
                %v401 = vld [vmem:[%s375 + $0xc0] sm:$0xff]
                %402 = vst [vmem:[%s376 + $0x60] sm:$0xff] %v401
                %v403 = vld [vmem:[%s375 + $0xd0] sm:$0xff]
                %404 = vst [vmem:[%s376 + $0x68] sm:$0xff] %v403
                %v405 = vld [vmem:[%s375 + $0xe0] sm:$0xff]
                %406 = vst [vmem:[%s376 + $0x70] sm:$0xff] %v405
                %v407 = vld [vmem:[%s375 + $0xf0] sm:$0xff]
                %408 = vst [vmem:[%s376 + $0x78] sm:$0xff] %v407
                %v409 = vld [vmem:[%s375 + $0x100] sm:$0xff]
                %410 = vst [vmem:[%s376 + $0x80] sm:$0xff] %v409
                %v411 = vld [vmem:[%s375 + $0x110] sm:$0xff]
                %412 = vst [vmem:[%s376 + $0x88] sm:$0xff] %v411
                %v413 = vld [vmem:[%s375 + $0x120] sm:$0xff]
                %414 = vst [vmem:[%s376 + $0x90] sm:$0xff] %v413
                %v415 = vld [vmem:[%s375 + $0x130] sm:$0xff]
                %416 = vst [vmem:[%s376 + $0x98] sm:$0xff] %v415
                %v417 = vld [vmem:[%s375 + $0x140] sm:$0xff]
                %418 = vst [vmem:[%s376 + $0xa0] sm:$0xff] %v417
                %v419 = vld [vmem:[%s375 + $0x150] sm:$0xff]
                %420 = vst [vmem:[%s376 + $0xa8] sm:$0xff] %v419
                %v421 = vld [vmem:[%s375 + $0x160] sm:$0xff]
                %422 = vst [vmem:[%s376 + $0xb0] sm:$0xff] %v421
                %v423 = vld [vmem:[%s375 + $0x170] sm:$0xff]
                %424 = vst [vmem:[%s376 + $0xb8] sm:$0xff] %v423
                %v425 = vld [vmem:[%s375 + $0x180] sm:$0xff]
                %426 = vst [vmem:[%s376 + $0xc0] sm:$0xff] %v425
                %v427 = vld [vmem:[%s375 + $0x190] sm:$0xff]
                %428 = vst [vmem:[%s376 + $0xc8] sm:$0xff] %v427
                %v429 = vld [vmem:[%s375 + $0x1a0] sm:$0xff]
                %430 = vst [vmem:[%s376 + $0xd0] sm:$0xff] %v429
                %v431 = vld [vmem:[%s375 + $0x1b0] sm:$0xff]
                %432 = vst [vmem:[%s376 + $0xd8] sm:$0xff] %v431
                %v433 = vld [vmem:[%s375 + $0x1c0] sm:$0xff]
                %434 = vst [vmem:[%s376 + $0xe0] sm:$0xff] %v433
                %v435 = vld [vmem:[%s375 + $0x1d0] sm:$0xff]
                %436 = vst [vmem:[%s376 + $0xe8] sm:$0xff] %v435
                %v437 = vld [vmem:[%s375 + $0x1e0] sm:$0xff]
                %438 = vst [vmem:[%s376 + $0xf0] sm:$0xff] %v437
                %v439 = vld [vmem:[%s375 + $0x1f0] sm:$0xff]
                %440 = vst [vmem:[%s376 + $0xf8] sm:$0xff] %v439
              $region77: #{lenet5_forward.1} parent=71 // loop_footer
                %s374 = sadd.s32 1, %s370
              $region78: #{lenet5_forward.1} parent=71 // loop_footer_branch
                %369 = sbr.rel target = $region74
              $region79: #{lenet5_forward.1} parent=71 // loop_exit
                _
            $region72: #{lenet5_forward.1} parent=63 // pred_fallthru
              _
          $region64: #{lenet5_forward.1} parent=59 // pred_fallthru
            _
          %517 = vnop
        $region60: #{lenet5_forward.1} parent=55 // pred_fallthru
          _
      $region56: #{lenet5_forward.1} parent=5 // pred_fallthru
        _
      %p518 = scmp.le.s32.totalorder 1, %s22
      %p519 = scmp.lt.s32.totalorder %s22, 3
      %p520 = pnand %p518, %p519
      %p521 = pneg %p520
      // Predicated region
      $region95: #{lenet5_forward.1} parent=5 // pred_check
        _
      $region96: #{lenet5_forward.1} parent=5 // pred_check_branch
        %523 = sbr.rel (%p520) target = $region98
      $region97: #{lenet5_forward.1} parent=5 // pred_region
        %s524 = ssub.s32 %s22, 1
        %s525 = sand.u32 %s35, 1
        %s526 = sand.u32 %s35, 1
        %s527 = smul.addr %s526, 256
        %s528 = scalar_lea.vmem [#allocation4], %s527
        // Predicated region
        $region99: #{lenet5_forward.1} parent=97 // pred_check
          %p529 = pneg %p48
        $region100: #{lenet5_forward.1} parent=97 // pred_check_branch
          %531 = sbr.rel (%p529) target = $region102
        $region101: #{lenet5_forward.1} parent=97 // pred_region
          _
        $region102: #{lenet5_forward.1} parent=97 // pred_fallthru
          _
        // Predicated region
        $region103: #{lenet5_forward.1} parent=97 // pred_check
          %p532 = pneg %p69
        $region104: #{lenet5_forward.1} parent=97 // pred_check_branch
          %534 = sbr.rel (%p532) target = $region106
        $region105: #{lenet5_forward.1} parent=97 // pred_region
          %535 = dma.done [#allocation6], 2560
        $region106: #{lenet5_forward.1} parent=97 // pred_fallthru
          _
        // Predicated region
        $region107: #{lenet5_forward.1} parent=97 // pred_check
          %p536 = pneg %p237
        $region108: #{lenet5_forward.1} parent=97 // pred_check_branch
          %538 = sbr.rel (%p536) target = $region110
        $region109: #{lenet5_forward.1} parent=97 // pred_region
          %539 = dma.done [#allocation9], 1024
        $region110: #{lenet5_forward.1} parent=97 // pred_fallthru
          _
        %s540 = sand.u32 %s35, 1
        %s541 = sand.u32 %s35, 1
        %s542 = smul.addr %s541, 256
        %s543 = scalar_lea.vmem [#allocation4], %s542
        %p544 = pneg %p48
        %p545 = pneg %p45
        %p546 = pneg %p69
        %p547 = pneg %p66
        %p548 = pneg %p90
        %p549 = pneg %p87
        %p550 = pneg %p111
        %p551 = pneg %p108
        %p552 = pneg %p132
        %p553 = pneg %p129
        %p554 = pneg %p153
        %p555 = pneg %p150
        %p556 = pneg %p174
        %p557 = pneg %p171
        %p558 = pneg %p195
        %p559 = pneg %p192
        %p560 = pneg %p216
        %p561 = pneg %p213
        %p562 = pneg %p237
        %p563 = pneg %p234
        %p564 = pneg %p258
        %p565 = pneg %p255
        %p566 = pneg %p284
        %p567 = pneg %p281
        %s568 = sand.u32 %s271, 1
        %s569 = scalar_lea.sflag [#allocation7], %s568
        %s570 = sand.u32 %s271, 1
        %s571 = smul.addr %s570, 8
        %s572 = scalar_lea.vmem [#allocation10], %s571
        %v574 = vld [vmem:[%s528] sm:$0xff]
        %v575 = vld [vmem:[%s528 + $0x8] sm:$0xff]
        %v576 = vld [vmem:[%s528 + $0x10] sm:$0xff]
        %v577 = vld [vmem:[%s528 + $0x18] sm:$0xff]
        %v578 = vld [vmem:[%s528 + $0x20] sm:$0xff]
        %v579 = vld [vmem:[%s528 + $0x28] sm:$0xff]
        %v580 = vld [vmem:[%s528 + $0x30] sm:$0xff]
        %v581 = vld [vmem:[%s528 + $0x38] sm:$0xff]
        %v582 = vld [vmem:[%s528 + $0x40] sm:$0xff]
        %v583 = vld [vmem:[%s528 + $0x48] sm:$0xff]
        %v584 = vld [vmem:[%s528 + $0x50] sm:$0xff]
        %v585 = vld [vmem:[%s528 + $0x58] sm:$0xff]
        %v586 = vld [vmem:[%s528 + $0x60] sm:$0xff]
        %v587 = vld [vmem:[%s528 + $0x68] sm:$0xff]
        %v588 = vld [vmem:[%s528 + $0x70] sm:$0xff]
        %v589 = vld [vmem:[%s528 + $0x78] sm:$0xff]
        %v590 = vld [vmem:[%s528 + $0x80] sm:$0xff]
        %v591 = vld [vmem:[%s528 + $0x88] sm:$0xff]
        %v592 = vld [vmem:[%s528 + $0x90] sm:$0xff]
        %v593 = vld [vmem:[%s528 + $0x98] sm:$0xff]
        %v594 = vld [vmem:[%s528 + $0xa0] sm:$0xff]
        %v595 = vld [vmem:[%s528 + $0xa8] sm:$0xff]
        %v596 = vld [vmem:[%s528 + $0xb0] sm:$0xff]
        %v597 = vld [vmem:[%s528 + $0xb8] sm:$0xff]
        %v598 = vld [vmem:[%s528 + $0xc0] sm:$0xff]
        %v599 = vld [vmem:[%s528 + $0xc8] sm:$0xff]
        %v600 = vld [vmem:[%s528 + $0xd0] sm:$0xff]
        %v601 = vld [vmem:[%s528 + $0xd8] sm:$0xff]
        %v602 = vld [vmem:[%s528 + $0xe0] sm:$0xff]
        %v603 = vld [vmem:[%s528 + $0xe8] sm:$0xff]
        %v604 = vld [vmem:[%s528 + $0xf0] sm:$0xff]
        %v605 = vld [vmem:[%s528 + $0xf8] sm:$0xff]
        %v606 = vpack.c.bf16 %v574, %v574
        %v607 = vpack.c.bf16 %v575, %v575
        %v608 = vpack.c.bf16 %v576, %v576
        %v609 = vpack.c.bf16 %v577, %v577
        %v610 = vpack.c.bf16 %v578, %v578
        %v611 = vpack.c.bf16 %v579, %v579
        %v612 = vpack.c.bf16 %v580, %v580
        %v613 = vpack.c.bf16 %v581, %v581
        %v614 = vpack.c.bf16 %v582, %v582
        %v615 = vpack.c.bf16 %v583, %v583
        %v616 = vpack.c.bf16 %v584, %v584
        %v617 = vpack.c.bf16 %v585, %v585
        %v618 = vpack.c.bf16 %v586, %v586
        %v619 = vpack.c.bf16 %v587, %v587
        %v620 = vpack.c.bf16 %v588, %v588
        %v621 = vpack.c.bf16 %v589, %v589
        %v622 = vpack.c.bf16 %v590, %v590
        %v623 = vpack.c.bf16 %v591, %v591
        %v624 = vpack.c.bf16 %v592, %v592
        %v625 = vpack.c.bf16 %v593, %v593
        %v626 = vpack.c.bf16 %v594, %v594
        %v627 = vpack.c.bf16 %v595, %v595
        %v628 = vpack.c.bf16 %v596, %v596
        %v629 = vpack.c.bf16 %v597, %v597
        %v630 = vpack.c.bf16 %v598, %v598
        %v631 = vpack.c.bf16 %v599, %v599
        %v632 = vpack.c.bf16 %v600, %v600
        %v633 = vpack.c.bf16 %v601, %v601
        %v634 = vpack.c.bf16 %v602, %v602
        %v635 = vpack.c.bf16 %v603, %v603
        %v636 = vpack.c.bf16 %v604, %v604
        %v637 = vpack.c.bf16 %v605, %v605
        %v638 = vld [vmem:[#allocation5] sm:$0xff]
        %v639 = vld [vmem:[#allocation5 + $0x8] sm:$0xff]
        %v640 = vld [vmem:[#allocation5 + $0x10] sm:$0xff]
        %v641 = vld [vmem:[#allocation5 + $0x18] sm:$0xff]
        %v670 = vunpack.c.l.b16 %v606
        %v671 = vunpack.c.l.b16 %v607
        %v672 = vunpack.c.l.b16 %v608
        %v673 = vunpack.c.l.b16 %v609
        %v674 = vunpack.c.l.b16 %v610
        %v675 = vunpack.c.l.b16 %v611
        %v676 = vunpack.c.l.b16 %v612
        %v677 = vunpack.c.l.b16 %v613
        %v678 = vunpack.c.l.b16 %v614
        %v679 = vunpack.c.l.b16 %v615
        %v680 = vunpack.c.l.b16 %v616
        %v681 = vunpack.c.l.b16 %v617
        %v682 = vunpack.c.l.b16 %v618
        %v683 = vunpack.c.l.b16 %v619
        %v684 = vunpack.c.l.b16 %v620
        %v685 = vunpack.c.l.b16 %v621
        %v686 = vunpack.c.l.b16 %v622
        %v687 = vunpack.c.l.b16 %v623
        %v688 = vunpack.c.l.b16 %v624
        %v689 = vunpack.c.l.b16 %v625
        %v690 = vunpack.c.l.b16 %v626
        %v691 = vunpack.c.l.b16 %v627
        %v692 = vunpack.c.l.b16 %v628
        %v693 = vunpack.c.l.b16 %v629
        %v694 = vunpack.c.l.b16 %v630
        %v695 = vunpack.c.l.b16 %v631
        %v696 = vunpack.c.l.b16 %v632
        %v697 = vunpack.c.l.b16 %v633
        %v698 = vpack.c.b16 %v671, %v670
        %v699 = vpack.c.b16 %v673, %v672
        %v700 = vpack.c.b16 %v675, %v674
        %v701 = vpack.c.b16 %v677, %v676
        %v702 = vpack.c.b16 %v679, %v678
        %v703 = vpack.c.b16 %v681, %v680
        %v704 = vpack.c.b16 %v683, %v682
        %v705 = vpack.c.b16 %v685, %v684
        %v706 = vpack.c.b16 %v687, %v686
        %v707 = vpack.c.b16 %v689, %v688
        %v708 = vpack.c.b16 %v691, %v690
        %v709 = vpack.c.b16 %v693, %v692
        %v710 = vpack.c.b16 %v695, %v694
        %v711 = vpack.c.b16 %v697, %v696
        %v716 = vunpack.c.l.b16 %v638
        %v717 = vunpack.c.h.b16 %v638
        %v718 = vunpack.c.l.b16 %v639
        %v719 = vunpack.c.h.b16 %v639
        %v720 = vunpack.c.l.b16 %v640
        %v721 = vunpack.c.h.b16 %v640
        %v722 = vunpack.c.l.b16 %v641
        %v723 = vunpack.c.h.b16 %v641
        %v724 = vpack.c.b16 %v718, %v716
        %v725 = vpack.c.b16 %v719, %v717
        %v726 = vpack.c.b16 %v722, %v720
        %v727 = vpack.c.b16 %v723, %v721
        %vm732 = vcmask 261120
        %v734 = vsel %vm732, %v698, 0
        %v737 = vsel %vm732, %v699, 0
        %v740 = vsel %vm732, %v700, 0
        %v743 = vsel %vm732, %v701, 0
        %v746 = vsel %vm732, %v702, 0
        %v749 = vsel %vm732, %v703, 0
        %v752 = vsel %vm732, %v704, 0
        %v755 = vsel %vm732, %v705, 0
        %v758 = vsel %vm732, %v706, 0
        %v761 = vsel %vm732, %v707, 0
        %v764 = vsel %vm732, %v708, 0
        %v767 = vsel %vm732, %v709, 0
        %v770 = vsel %vm732, %v710, 0
        %v773 = vsel %vm732, %v711, 0
        %775 = vmatprep.subr.bf16.mxu0 %v725
        %776 = vmatpush1.bf16.msra.mxu0 %v724
        %777 = vmatprep.subr.bf16.mxu0 %v727
        %778 = vmatpush1.bf16.msra.mxu0 %v726
        %779 = vmatprep.subr.bf16.mxu0 0
        %780 = vmatpush1.bf16.msra.mxu0 0
        %781 = vmatprep.subr.bf16.mxu0 0
        %782 = vmatpush1.bf16.msra.mxu0 0
        %783 = vmatprep.subr.bf16.mxu0 0
        %784 = vmatpush1.bf16.msra.mxu0 0
        %785 = vmatprep.subr.bf16.mxu0 0
        %786 = vmatpush1.bf16.msra.mxu0 0
        %787 = vmatprep.subr.bf16.mxu0 0
        %788 = vmatpush1.bf16.msra.mxu0 0
        %789 = vmatprep.subr.bf16.mxu0 0
        %790 = vmatpush1.bf16.msra.mxu0 0
        %791 = vmatprep.subr.bf16.mxu0 0
        %792 = vmatpush1.bf16.msra.mxu0 0
        %793 = vmatprep.subr.bf16.mxu0 0
        %794 = vmatpush1.bf16.msra.mxu0 0
        %795 = vmatprep.subr.bf16.mxu0 0
        %796 = vmatpush1.bf16.msra.mxu0 0
        %797 = vmatprep.subr.bf16.mxu0 0
        %798 = vmatpush1.bf16.msra.mxu0 0
        %799 = vmatprep.subr.bf16.mxu0 0
        %800 = vmatpush1.bf16.msra.mxu0 0
        %801 = vmatprep.subr.bf16.mxu0 0
        %802 = vmatpush1.bf16.msra.mxu0 0
        %803 = vmatprep.subr.bf16.mxu0 0
        %804 = vmatpush1.bf16.msra.mxu0 0
        %805 = vmatprep.subr.bf16.mxu0 0
        %806 = vmatpush1.bf16.msra.mxu0 0
        %807 = vmatprep.mubr.bf16.mxu0 0
        %808 = vmatmul.mubr.bf16.gmra.mrb[0].mxu0 %v734
        %v809 = vpop.f32.mrb[0].mxu0
        %v810 = vadd.f32 0.0, %v809
        %v811 = vpop.f32.mrb[0].mxu0
        %v812 = vadd.f32 0.0, %v811
        %v813 = vpop.f32.mrb[0].mxu0
        %v814 = vadd.f32 0.0, %v813
        %v815 = vpop.f32.mrb[0].mxu0
        %v816 = vadd.f32 0.0, %v815
        %817 = vmatprep.mubr.bf16.mxu0 0
        %818 = vmatmul.mubr.bf16.gmra.mrb[0].mxu0 %v737
        %v819 = vpop.f32.mrb[0].mxu0
        %v820 = vadd.f32 0.0, %v819
        %v821 = vpop.f32.mrb[0].mxu0
        %v822 = vadd.f32 0.0, %v821
        %v823 = vpop.f32.mrb[0].mxu0
        %v824 = vadd.f32 0.0, %v823
        %v825 = vpop.f32.mrb[0].mxu0
        %v826 = vadd.f32 0.0, %v825
        %827 = vmatprep.mubr.bf16.mxu0 0
        %828 = vmatmul.mubr.bf16.gmra.mrb[0].mxu0 %v740
        %v829 = vpop.f32.mrb[0].mxu0
        %v830 = vadd.f32 0.0, %v829
        %v831 = vpop.f32.mrb[0].mxu0
        %v832 = vadd.f32 0.0, %v831
        %v833 = vpop.f32.mrb[0].mxu0
        %v834 = vadd.f32 0.0, %v833
        %v835 = vpop.f32.mrb[0].mxu0
        %v836 = vadd.f32 0.0, %v835
        %837 = vmatprep.mubr.bf16.mxu0 0
        %838 = vmatmul.mubr.bf16.gmra.mrb[0].mxu0 %v743
        %v839 = vpop.f32.mrb[0].mxu0
        %v840 = vadd.f32 0.0, %v839
        %v841 = vpop.f32.mrb[0].mxu0
        %v842 = vadd.f32 0.0, %v841
        %v843 = vpop.f32.mrb[0].mxu0
        %v844 = vadd.f32 0.0, %v843
        %v845 = vpop.f32.mrb[0].mxu0
        %v846 = vadd.f32 0.0, %v845
        %847 = vmatprep.mubr.bf16.mxu0 0
        %848 = vmatmul.mubr.bf16.gmra.mrb[0].mxu0 %v746
        %v849 = vpop.f32.mrb[0].mxu0
        %v850 = vadd.f32 0.0, %v849
        %v851 = vpop.f32.mrb[0].mxu0
        %v852 = vadd.f32 0.0, %v851
        %v853 = vpop.f32.mrb[0].mxu0
        %v854 = vadd.f32 0.0, %v853
        %v855 = vpop.f32.mrb[0].mxu0
        %v856 = vadd.f32 0.0, %v855
        %857 = vmatprep.mubr.bf16.mxu0 0
        %858 = vmatmul.mubr.bf16.gmra.mrb[0].mxu0 %v749
        %v859 = vpop.f32.mrb[0].mxu0
        %v860 = vadd.f32 0.0, %v859
        %v861 = vpop.f32.mrb[0].mxu0
        %v862 = vadd.f32 0.0, %v861
        %v863 = vpop.f32.mrb[0].mxu0
        %v864 = vadd.f32 0.0, %v863
        %v865 = vpop.f32.mrb[0].mxu0
        %v866 = vadd.f32 0.0, %v865
        %867 = vmatprep.mubr.bf16.mxu0 0
        %868 = vmatmul.mubr.bf16.gmra.mrb[0].mxu0 %v752
        %v869 = vpop.f32.mrb[0].mxu0
        %v870 = vadd.f32 0.0, %v869
        %v871 = vpop.f32.mrb[0].mxu0
        %v872 = vadd.f32 0.0, %v871
        %v873 = vpop.f32.mrb[0].mxu0
        %v874 = vadd.f32 0.0, %v873
        %v875 = vpop.f32.mrb[0].mxu0
        %v876 = vadd.f32 0.0, %v875
        %877 = vmatprep.mubr.bf16.mxu0 0
        %878 = vmatmul.mubr.bf16.gmra.mrb[0].mxu0 %v755
        %v879 = vpop.f32.mrb[0].mxu0
        %v880 = vadd.f32 0.0, %v879
        %v881 = vpop.f32.mrb[0].mxu0
        %v882 = vadd.f32 0.0, %v881
        %v883 = vpop.f32.mrb[0].mxu0
        %v884 = vadd.f32 0.0, %v883
        %v885 = vpop.f32.mrb[0].mxu0
        %v886 = vadd.f32 0.0, %v885
        %887 = vmatprep.mubr.bf16.mxu0 0
        %888 = vmatmul.mubr.bf16.gmra.mrb[0].mxu0 %v758
        %v889 = vpop.f32.mrb[0].mxu0
        %v890 = vadd.f32 0.0, %v889
        %v891 = vpop.f32.mrb[0].mxu0
        %v892 = vadd.f32 0.0, %v891
        %v893 = vpop.f32.mrb[0].mxu0
        %v894 = vadd.f32 0.0, %v893
        %v895 = vpop.f32.mrb[0].mxu0
        %v896 = vadd.f32 0.0, %v895
        %897 = vmatprep.mubr.bf16.mxu0 0
        %898 = vmatmul.mubr.bf16.gmra.mrb[0].mxu0 %v761
        %v899 = vpop.f32.mrb[0].mxu0
        %v900 = vadd.f32 0.0, %v899
        %v901 = vpop.f32.mrb[0].mxu0
        %v902 = vadd.f32 0.0, %v901
        %v903 = vpop.f32.mrb[0].mxu0
        %v904 = vadd.f32 0.0, %v903
        %v905 = vpop.f32.mrb[0].mxu0
        %v906 = vadd.f32 0.0, %v905
        %907 = vmatprep.mubr.bf16.mxu0 0
        %908 = vmatmul.mubr.bf16.gmra.mrb[0].mxu0 %v764
        %v909 = vpop.f32.mrb[0].mxu0
        %v910 = vadd.f32 0.0, %v909
        %v911 = vpop.f32.mrb[0].mxu0
        %v912 = vadd.f32 0.0, %v911
        %v913 = vpop.f32.mrb[0].mxu0
        %v914 = vadd.f32 0.0, %v913
        %v915 = vpop.f32.mrb[0].mxu0
        %v916 = vadd.f32 0.0, %v915
        %917 = vmatprep.mubr.bf16.mxu0 0
        %918 = vmatmul.mubr.bf16.gmra.mrb[0].mxu0 %v767
        %v919 = vpop.f32.mrb[0].mxu0
        %v920 = vadd.f32 0.0, %v919
        %v921 = vpop.f32.mrb[0].mxu0
        %v922 = vadd.f32 0.0, %v921
        %v923 = vpop.f32.mrb[0].mxu0
        %v924 = vadd.f32 0.0, %v923
        %v925 = vpop.f32.mrb[0].mxu0
        %v926 = vadd.f32 0.0, %v925
        %927 = vmatprep.mubr.bf16.mxu0 0
        %928 = vmatmul.mubr.bf16.gmra.mrb[0].mxu0 %v770
        %v929 = vpop.f32.mrb[0].mxu0
        %v930 = vadd.f32 0.0, %v929
        %v931 = vpop.f32.mrb[0].mxu0
        %v932 = vadd.f32 0.0, %v931
        %v933 = vpop.f32.mrb[0].mxu0
        %v934 = vadd.f32 0.0, %v933
        %v935 = vpop.f32.mrb[0].mxu0
        %v936 = vadd.f32 0.0, %v935
        %937 = vmatprep.mubr.bf16.mxu0 0
        %938 = vmatmul.mubr.bf16.gmra.mrb[0].mxu0 %v773
        %v939 = vpop.f32.mrb[0].mxu0
        %v940 = vadd.f32 0.0, %v939
        %v941 = vpop.f32.mrb[0].mxu0
        %v942 = vadd.f32 0.0, %v941
        %v943 = vpop.f32.mrb[0].mxu0
        %v944 = vadd.f32 0.0, %v943
        %v945 = vpop.f32.mrb[0].mxu0
        %v946 = vadd.f32 0.0, %v945
        %947 = vdwg.mxu0
        %948 = vst [vmem:[#allocation2] sm:$0xff] %v810
        %949 = vst [vmem:[#allocation2 + $0x8] sm:$0xff] %v812
        %950 = vst [vmem:[#allocation2 + $0x10] sm:$0xff] %v814
        %951 = vst [vmem:[#allocation2 + $0x18] sm:$0xff] %v816
        %952 = vst [vmem:[#allocation2 + $0x20] sm:$0xff] %v820
        %953 = vst [vmem:[#allocation2 + $0x28] sm:$0xff] %v822
        %954 = vst [vmem:[#allocation2 + $0x30] sm:$0xff] %v824
        %955 = vst [vmem:[#allocation2 + $0x38] sm:$0xff] %v826
        %956 = vst [vmem:[#allocation2 + $0x40] sm:$0xff] %v830
        %957 = vst [vmem:[#allocation2 + $0x48] sm:$0xff] %v832
        %958 = vst [vmem:[#allocation2 + $0x50] sm:$0xff] %v834
        %959 = vst [vmem:[#allocation2 + $0x58] sm:$0xff] %v836
        %960 = vst [vmem:[#allocation2 + $0x60] sm:$0xff] %v840
        %961 = vst [vmem:[#allocation2 + $0x68] sm:$0xff] %v842
        %962 = vst [vmem:[#allocation2 + $0x70] sm:$0xff] %v844
        %963 = vst [vmem:[#allocation2 + $0x78] sm:$0xff] %v846
        %964 = vst [vmem:[#allocation2 + $0x80] sm:$0xff] %v850
        %965 = vst [vmem:[#allocation2 + $0x88] sm:$0xff] %v852
        %966 = vst [vmem:[#allocation2 + $0x90] sm:$0xff] %v854
        %967 = vst [vmem:[#allocation2 + $0x98] sm:$0xff] %v856
        %968 = vst [vmem:[#allocation2 + $0xa0] sm:$0xff] %v860
        %969 = vst [vmem:[#allocation2 + $0xa8] sm:$0xff] %v862
        %970 = vst [vmem:[#allocation2 + $0xb0] sm:$0xff] %v864
        %971 = vst [vmem:[#allocation2 + $0xb8] sm:$0xff] %v866
        %972 = vst [vmem:[#allocation2 + $0xc0] sm:$0xff] %v870
        %973 = vst [vmem:[#allocation2 + $0xc8] sm:$0xff] %v872
        %974 = vst [vmem:[#allocation2 + $0xd0] sm:$0xff] %v874
        %975 = vst [vmem:[#allocation2 + $0xd8] sm:$0xff] %v876
        %976 = vst [vmem:[#allocation2 + $0xe0] sm:$0xff] %v880
        %977 = vst [vmem:[#allocation2 + $0xe8] sm:$0xff] %v882
        %978 = vst [vmem:[#allocation2 + $0xf0] sm:$0xff] %v884
        %979 = vst [vmem:[#allocation2 + $0xf8] sm:$0xff] %v886
        %980 = vst [vmem:[#allocation2 + $0x100] sm:$0xff] %v890
        %981 = vst [vmem:[#allocation2 + $0x108] sm:$0xff] %v892
        %982 = vst [vmem:[#allocation2 + $0x110] sm:$0xff] %v894
        %983 = vst [vmem:[#allocation2 + $0x118] sm:$0xff] %v896
        %984 = vst [vmem:[#allocation2 + $0x120] sm:$0xff] %v900
        %985 = vst [vmem:[#allocation2 + $0x128] sm:$0xff] %v902
        %986 = vst [vmem:[#allocation2 + $0x130] sm:$0xff] %v904
        %987 = vst [vmem:[#allocation2 + $0x138] sm:$0xff] %v906
        %988 = vst [vmem:[#allocation2 + $0x140] sm:$0xff] %v910
        %989 = vst [vmem:[#allocation2 + $0x148] sm:$0xff] %v912
        %990 = vst [vmem:[#allocation2 + $0x150] sm:$0xff] %v914
        %991 = vst [vmem:[#allocation2 + $0x158] sm:$0xff] %v916
        %992 = vst [vmem:[#allocation2 + $0x160] sm:$0xff] %v920
        %993 = vst [vmem:[#allocation2 + $0x168] sm:$0xff] %v922
        %994 = vst [vmem:[#allocation2 + $0x170] sm:$0xff] %v924
        %995 = vst [vmem:[#allocation2 + $0x178] sm:$0xff] %v926
        %996 = vst [vmem:[#allocation2 + $0x180] sm:$0xff] %v930
        %997 = vst [vmem:[#allocation2 + $0x188] sm:$0xff] %v932
        %998 = vst [vmem:[#allocation2 + $0x190] sm:$0xff] %v934
        %999 = vst [vmem:[#allocation2 + $0x198] sm:$0xff] %v936
        %1000 = vst [vmem:[#allocation2 + $0x1a0] sm:$0xff] %v940
        %1001 = vst [vmem:[#allocation2 + $0x1a8] sm:$0xff] %v942
        %1002 = vst [vmem:[#allocation2 + $0x1b0] sm:$0xff] %v944
        %1003 = vst [vmem:[#allocation2 + $0x1b8] sm:$0xff] %v946
        %s1004 = scalar_lea.vmem [#allocation5], 32
        %v1005 = vld [vmem:[%s1004] sm:$0xff]
        %v1006 = vld [vmem:[%s1004 + $0x8] sm:$0xff]
        %v1007 = vld [vmem:[%s1004 + $0x10] sm:$0xff]
        %v1008 = vld [vmem:[%s1004 + $0x18] sm:$0xff]
        %v1010 = vunpack.c.l.b16 %v634
        %v1011 = vpack.c.b16 %v672, %v671
        %v1012 = vpack.c.b16 %v674, %v673
        %v1013 = vpack.c.b16 %v676, %v675
        %v1014 = vpack.c.b16 %v678, %v677
        %v1015 = vpack.c.b16 %v680, %v679
        %v1016 = vpack.c.b16 %v682, %v681
        %v1017 = vpack.c.b16 %v684, %v683
        %v1018 = vpack.c.b16 %v686, %v685
        %v1019 = vpack.c.b16 %v688, %v687
        %v1020 = vpack.c.b16 %v690, %v689
        %v1021 = vpack.c.b16 %v692, %v691
        %v1022 = vpack.c.b16 %v694, %v693
        %v1023 = vpack.c.b16 %v696, %v695
        %v1024 = vpack.c.b16 %v1010, %v697
        %v1029 = vunpack.c.l.b16 %v1005
        %v1030 = vunpack.c.h.b16 %v1005
        %v1031 = vunpack.c.l.b16 %v1006
        %v1032 = vunpack.c.h.b16 %v1006
        %v1033 = vunpack.c.l.b16 %v1007
        %v1034 = vunpack.c.h.b16 %v1007
        %v1035 = vunpack.c.l.b16 %v1008
        %v1036 = vunpack.c.h.b16 %v1008
        %v1037 = vpack.c.b16 %v1031, %v1029
        %v1038 = vpack.c.b16 %v1032, %v1030
        %v1039 = vpack.c.b16 %v1035, %v1033
        %v1040 = vpack.c.b16 %v1036, %v1034
        %v1046 = vsel %vm732, %v1011, 0
        %v1049 = vsel %vm732, %v1012, 0
        %v1052 = vsel %vm732, %v1013, 0
        %v1055 = vsel %vm732, %v1014, 0
        %v1058 = vsel %vm732, %v1015, 0
        %v1061 = vsel %vm732, %v1016, 0
        %v1064 = vsel %vm732, %v1017, 0
        %v1067 = vsel %vm732, %v1018, 0
        %v1070 = vsel %vm732, %v1019, 0
        %v1073 = vsel %vm732, %v1020, 0
        %v1076 = vsel %vm732, %v1021, 0
        %v1079 = vsel %vm732, %v1022, 0
        %v1082 = vsel %vm732, %v1023, 0
        %v1085 = vsel %vm732, %v1024, 0
        %1087 = vmatprep.subr.bf16.mxu0 %v1038
        %1088 = vmatpush1.bf16.msra.mxu0 %v1037
        %1089 = vmatprep.subr.bf16.mxu0 %v1040
        %1090 = vmatpush1.bf16.msra.mxu0 %v1039
        %1091 = vmatprep.subr.bf16.mxu0 0
        %1092 = vmatpush1.bf16.msra.mxu0 0
        %1093 = vmatprep.subr.bf16.mxu0 0
        %1094 = vmatpush1.bf16.msra.mxu0 0
        %1095 = vmatprep.subr.bf16.mxu0 0
        %1096 = vmatpush1.bf16.msra.mxu0 0
        %1097 = vmatprep.subr.bf16.mxu0 0
        %1098 = vmatpush1.bf16.msra.mxu0 0
        %1099 = vmatprep.subr.bf16.mxu0 0
        %1100 = vmatpush1.bf16.msra.mxu0 0
        %1101 = vmatprep.subr.bf16.mxu0 0
        %1102 = vmatpush1.bf16.msra.mxu0 0
        %1103 = vmatprep.subr.bf16.mxu0 0
        %1104 = vmatpush1.bf16.msra.mxu0 0
        %1105 = vmatprep.subr.bf16.mxu0 0
        %1106 = vmatpush1.bf16.msra.mxu0 0
        %1107 = vmatprep.subr.bf16.mxu0 0
        %1108 = vmatpush1.bf16.msra.mxu0 0
        %1109 = vmatprep.subr.bf16.mxu0 0
        %1110 = vmatpush1.bf16.msra.mxu0 0
        %1111 = vmatprep.subr.bf16.mxu0 0
        %1112 = vmatpush1.bf16.msra.mxu0 0
        %1113 = vmatprep.subr.bf16.mxu0 0
        %1114 = vmatpush1.bf16.msra.mxu0 0
        %1115 = vmatprep.subr.bf16.mxu0 0
        %1116 = vmatpush1.bf16.msra.mxu0 0
        %1117 = vmatprep.subr.bf16.mxu0 0
        %1118 = vmatpush1.bf16.msra.mxu0 0
        %1119 = vmatprep.mubr.bf16.mxu0 0
        %1120 = vmatmul.mubr.bf16.gmra.mrb[0].mxu0 %v1046
        %v1121 = vpop.f32.mrb[0].mxu0
        %v1122 = vadd.f32 0.0, %v1121
        %v1123 = vpop.f32.mrb[0].mxu0
        %v1124 = vadd.f32 0.0, %v1123
        %v1125 = vpop.f32.mrb[0].mxu0
        %v1126 = vadd.f32 0.0, %v1125
        %v1127 = vpop.f32.mrb[0].mxu0
        %v1128 = vadd.f32 0.0, %v1127
        %1129 = vmatprep.mubr.bf16.mxu0 0
        %1130 = vmatmul.mubr.bf16.gmra.mrb[0].mxu0 %v1049
        %v1131 = vpop.f32.mrb[0].mxu0
        %v1132 = vadd.f32 0.0, %v1131
        %v1133 = vpop.f32.mrb[0].mxu0
        %v1134 = vadd.f32 0.0, %v1133
        %v1135 = vpop.f32.mrb[0].mxu0
        %v1136 = vadd.f32 0.0, %v1135
        %v1137 = vpop.f32.mrb[0].mxu0
        %v1138 = vadd.f32 0.0, %v1137
        %1139 = vmatprep.mubr.bf16.mxu0 0
        %1140 = vmatmul.mubr.bf16.gmra.mrb[0].mxu0 %v1052
        %v1141 = vpop.f32.mrb[0].mxu0
        %v1142 = vadd.f32 0.0, %v1141
        %v1143 = vpop.f32.mrb[0].mxu0
        %v1144 = vadd.f32 0.0, %v1143
        %v1145 = vpop.f32.mrb[0].mxu0
        %v1146 = vadd.f32 0.0, %v1145
        %v1147 = vpop.f32.mrb[0].mxu0
        %v1148 = vadd.f32 0.0, %v1147
        %1149 = vmatprep.mubr.bf16.mxu0 0
        %1150 = vmatmul.mubr.bf16.gmra.mrb[0].mxu0 %v1055
        %v1151 = vpop.f32.mrb[0].mxu0
        %v1152 = vadd.f32 0.0, %v1151
        %v1153 = vpop.f32.mrb[0].mxu0
        %v1154 = vadd.f32 0.0, %v1153
        %v1155 = vpop.f32.mrb[0].mxu0
        %v1156 = vadd.f32 0.0, %v1155
        %v1157 = vpop.f32.mrb[0].mxu0
        %v1158 = vadd.f32 0.0, %v1157
        %1159 = vmatprep.mubr.bf16.mxu0 0
        %1160 = vmatmul.mubr.bf16.gmra.mrb[0].mxu0 %v1058
        %v1161 = vpop.f32.mrb[0].mxu0
        %v1162 = vadd.f32 0.0, %v1161
        %v1163 = vpop.f32.mrb[0].mxu0
        %v1164 = vadd.f32 0.0, %v1163
        %v1165 = vpop.f32.mrb[0].mxu0
        %v1166 = vadd.f32 0.0, %v1165
        %v1167 = vpop.f32.mrb[0].mxu0
        %v1168 = vadd.f32 0.0, %v1167
        %1169 = vmatprep.mubr.bf16.mxu0 0
        %1170 = vmatmul.mubr.bf16.gmra.mrb[0].mxu0 %v1061
        %v1171 = vpop.f32.mrb[0].mxu0
        %v1172 = vadd.f32 0.0, %v1171
        %v1173 = vpop.f32.mrb[0].mxu0
        %v1174 = vadd.f32 0.0, %v1173
        %v1175 = vpop.f32.mrb[0].mxu0
        %v1176 = vadd.f32 0.0, %v1175
        %v1177 = vpop.f32.mrb[0].mxu0
        %v1178 = vadd.f32 0.0, %v1177
        %1179 = vmatprep.mubr.bf16.mxu0 0
        %1180 = vmatmul.mubr.bf16.gmra.mrb[0].mxu0 %v1064
        %v1181 = vpop.f32.mrb[0].mxu0
        %v1182 = vadd.f32 0.0, %v1181
        %v1183 = vpop.f32.mrb[0].mxu0
        %v1184 = vadd.f32 0.0, %v1183
        %v1185 = vpop.f32.mrb[0].mxu0
        %v1186 = vadd.f32 0.0, %v1185
        %v1187 = vpop.f32.mrb[0].mxu0
        %v1188 = vadd.f32 0.0, %v1187
        %1189 = vmatprep.mubr.bf16.mxu0 0
        %1190 = vmatmul.mubr.bf16.gmra.mrb[0].mxu0 %v1067
        %v1191 = vpop.f32.mrb[0].mxu0
        %v1192 = vadd.f32 0.0, %v1191
        %v1193 = vpop.f32.mrb[0].mxu0
        %v1194 = vadd.f32 0.0, %v1193
        %v1195 = vpop.f32.mrb[0].mxu0
        %v1196 = vadd.f32 0.0, %v1195
        %v1197 = vpop.f32.mrb[0].mxu0
        %v1198 = vadd.f32 0.0, %v1197
        %1199 = vmatprep.mubr.bf16.mxu0 0
        %1200 = vmatmul.mubr.bf16.gmra.mrb[0].mxu0 %v1070
        %v1201 = vpop.f32.mrb[0].mxu0
        %v1202 = vadd.f32 0.0, %v1201
        %v1203 = vpop.f32.mrb[0].mxu0
        %v1204 = vadd.f32 0.0, %v1203
        %v1205 = vpop.f32.mrb[0].mxu0
        %v1206 = vadd.f32 0.0, %v1205
        %v1207 = vpop.f32.mrb[0].mxu0
        %v1208 = vadd.f32 0.0, %v1207
        %1209 = vmatprep.mubr.bf16.mxu0 0
        %1210 = vmatmul.mubr.bf16.gmra.mrb[0].mxu0 %v1073
        %v1211 = vpop.f32.mrb[0].mxu0
        %v1212 = vadd.f32 0.0, %v1211
        %v1213 = vpop.f32.mrb[0].mxu0
        %v1214 = vadd.f32 0.0, %v1213
        %v1215 = vpop.f32.mrb[0].mxu0
        %v1216 = vadd.f32 0.0, %v1215
        %v1217 = vpop.f32.mrb[0].mxu0
        %v1218 = vadd.f32 0.0, %v1217
        %1219 = vmatprep.mubr.bf16.mxu0 0
        %1220 = vmatmul.mubr.bf16.gmra.mrb[0].mxu0 %v1076
        %v1221 = vpop.f32.mrb[0].mxu0
        %v1222 = vadd.f32 0.0, %v1221
        %v1223 = vpop.f32.mrb[0].mxu0
        %v1224 = vadd.f32 0.0, %v1223
        %v1225 = vpop.f32.mrb[0].mxu0
        %v1226 = vadd.f32 0.0, %v1225
        %v1227 = vpop.f32.mrb[0].mxu0
        %v1228 = vadd.f32 0.0, %v1227
        %1229 = vmatprep.mubr.bf16.mxu0 0
        %1230 = vmatmul.mubr.bf16.gmra.mrb[0].mxu0 %v1079
        %v1231 = vpop.f32.mrb[0].mxu0
        %v1232 = vadd.f32 0.0, %v1231
        %v1233 = vpop.f32.mrb[0].mxu0
        %v1234 = vadd.f32 0.0, %v1233
        %v1235 = vpop.f32.mrb[0].mxu0
        %v1236 = vadd.f32 0.0, %v1235
        %v1237 = vpop.f32.mrb[0].mxu0
        %v1238 = vadd.f32 0.0, %v1237
        %1239 = vmatprep.mubr.bf16.mxu0 0
        %1240 = vmatmul.mubr.bf16.gmra.mrb[0].mxu0 %v1082
        %v1241 = vpop.f32.mrb[0].mxu0
        %v1242 = vadd.f32 0.0, %v1241
        %v1243 = vpop.f32.mrb[0].mxu0
        %v1244 = vadd.f32 0.0, %v1243
        %v1245 = vpop.f32.mrb[0].mxu0
        %v1246 = vadd.f32 0.0, %v1245
        %v1247 = vpop.f32.mrb[0].mxu0
        %v1248 = vadd.f32 0.0, %v1247
        %1249 = vmatprep.mubr.bf16.mxu0 0
        %1250 = vmatmul.mubr.bf16.gmra.mrb[0].mxu0 %v1085
        %v1251 = vpop.f32.mrb[0].mxu0
        %v1252 = vadd.f32 0.0, %v1251
        %v1253 = vpop.f32.mrb[0].mxu0
        %v1254 = vadd.f32 0.0, %v1253
        %v1255 = vpop.f32.mrb[0].mxu0
        %v1256 = vadd.f32 0.0, %v1255
        %v1257 = vpop.f32.mrb[0].mxu0
        %v1258 = vadd.f32 0.0, %v1257
        %1259 = vdwg.mxu0
        %v1260 = vld [vmem:[#allocation2] sm:$0xff]
        %v1261 = vld [vmem:[#allocation2 + $0x8] sm:$0xff]
        %v1262 = vld [vmem:[#allocation2 + $0x10] sm:$0xff]
        %v1263 = vld [vmem:[#allocation2 + $0x18] sm:$0xff]
        %v1264 = vld [vmem:[#allocation2 + $0x20] sm:$0xff]
        %v1265 = vld [vmem:[#allocation2 + $0x28] sm:$0xff]
        %v1266 = vld [vmem:[#allocation2 + $0x30] sm:$0xff]
        %v1267 = vld [vmem:[#allocation2 + $0x38] sm:$0xff]
        %v1268 = vld [vmem:[#allocation2 + $0x40] sm:$0xff]
        %v1269 = vld [vmem:[#allocation2 + $0x48] sm:$0xff]
        %v1270 = vld [vmem:[#allocation2 + $0x50] sm:$0xff]
        %v1271 = vld [vmem:[#allocation2 + $0x58] sm:$0xff]
        %v1272 = vld [vmem:[#allocation2 + $0x60] sm:$0xff]
        %v1273 = vld [vmem:[#allocation2 + $0x68] sm:$0xff]
        %v1274 = vld [vmem:[#allocation2 + $0x70] sm:$0xff]
        %v1275 = vld [vmem:[#allocation2 + $0x78] sm:$0xff]
        %v1276 = vld [vmem:[#allocation2 + $0x80] sm:$0xff]
        %v1277 = vld [vmem:[#allocation2 + $0x88] sm:$0xff]
        %v1278 = vld [vmem:[#allocation2 + $0x90] sm:$0xff]
        %v1279 = vld [vmem:[#allocation2 + $0x98] sm:$0xff]
        %v1280 = vld [vmem:[#allocation2 + $0xa0] sm:$0xff]
        %v1281 = vld [vmem:[#allocation2 + $0xa8] sm:$0xff]
        %v1282 = vld [vmem:[#allocation2 + $0xb0] sm:$0xff]
        %v1283 = vld [vmem:[#allocation2 + $0xb8] sm:$0xff]
        %v1284 = vld [vmem:[#allocation2 + $0xc0] sm:$0xff]
        %v1285 = vld [vmem:[#allocation2 + $0xc8] sm:$0xff]
        %v1286 = vld [vmem:[#allocation2 + $0xd0] sm:$0xff]
        %v1287 = vld [vmem:[#allocation2 + $0xd8] sm:$0xff]
        %v1288 = vld [vmem:[#allocation2 + $0xe0] sm:$0xff]
        %v1289 = vld [vmem:[#allocation2 + $0xe8] sm:$0xff]
        %v1290 = vld [vmem:[#allocation2 + $0xf0] sm:$0xff]
        %v1291 = vld [vmem:[#allocation2 + $0xf8] sm:$0xff]
        %v1292 = vld [vmem:[#allocation2 + $0x100] sm:$0xff]
        %v1293 = vld [vmem:[#allocation2 + $0x108] sm:$0xff]
        %v1294 = vld [vmem:[#allocation2 + $0x110] sm:$0xff]
        %v1295 = vld [vmem:[#allocation2 + $0x118] sm:$0xff]
        %v1296 = vld [vmem:[#allocation2 + $0x120] sm:$0xff]
        %v1297 = vld [vmem:[#allocation2 + $0x128] sm:$0xff]
        %v1298 = vld [vmem:[#allocation2 + $0x130] sm:$0xff]
        %v1299 = vld [vmem:[#allocation2 + $0x138] sm:$0xff]
        %v1300 = vld [vmem:[#allocation2 + $0x140] sm:$0xff]
        %v1301 = vld [vmem:[#allocation2 + $0x148] sm:$0xff]
        %v1302 = vld [vmem:[#allocation2 + $0x150] sm:$0xff]
        %v1303 = vld [vmem:[#allocation2 + $0x158] sm:$0xff]
        %v1304 = vld [vmem:[#allocation2 + $0x160] sm:$0xff]
        %v1305 = vld [vmem:[#allocation2 + $0x168] sm:$0xff]
        %v1306 = vld [vmem:[#allocation2 + $0x170] sm:$0xff]
        %v1307 = vld [vmem:[#allocation2 + $0x178] sm:$0xff]
        %v1308 = vld [vmem:[#allocation2 + $0x180] sm:$0xff]
        %v1309 = vld [vmem:[#allocation2 + $0x188] sm:$0xff]
        %v1310 = vld [vmem:[#allocation2 + $0x190] sm:$0xff]
        %v1311 = vld [vmem:[#allocation2 + $0x198] sm:$0xff]
        %v1312 = vld [vmem:[#allocation2 + $0x1a0] sm:$0xff]
        %v1313 = vld [vmem:[#allocation2 + $0x1a8] sm:$0xff]
        %v1314 = vld [vmem:[#allocation2 + $0x1b0] sm:$0xff]
        %v1315 = vld [vmem:[#allocation2 + $0x1b8] sm:$0xff]
        %v1316 = vadd.f32 %v1260, %v1122
        %v1317 = vadd.f32 %v1261, %v1124
        %v1318 = vadd.f32 %v1262, %v1126
        %v1319 = vadd.f32 %v1263, %v1128
        %v1320 = vadd.f32 %v1264, %v1132
        %v1321 = vadd.f32 %v1265, %v1134
        %v1322 = vadd.f32 %v1266, %v1136
        %v1323 = vadd.f32 %v1267, %v1138
        %v1324 = vadd.f32 %v1268, %v1142
        %v1325 = vadd.f32 %v1269, %v1144
        %v1326 = vadd.f32 %v1270, %v1146
        %v1327 = vadd.f32 %v1271, %v1148
        %v1328 = vadd.f32 %v1272, %v1152
        %v1329 = vadd.f32 %v1273, %v1154
        %v1330 = vadd.f32 %v1274, %v1156
        %v1331 = vadd.f32 %v1275, %v1158
        %v1332 = vadd.f32 %v1276, %v1162
        %v1333 = vadd.f32 %v1277, %v1164
        %v1334 = vadd.f32 %v1278, %v1166
        %v1335 = vadd.f32 %v1279, %v1168
        %v1336 = vadd.f32 %v1280, %v1172
        %v1337 = vadd.f32 %v1281, %v1174
        %v1338 = vadd.f32 %v1282, %v1176
        %v1339 = vadd.f32 %v1283, %v1178
        %v1340 = vadd.f32 %v1284, %v1182
        %v1341 = vadd.f32 %v1285, %v1184
        %v1342 = vadd.f32 %v1286, %v1186
        %v1343 = vadd.f32 %v1287, %v1188
        %v1344 = vadd.f32 %v1288, %v1192
        %v1345 = vadd.f32 %v1289, %v1194
        %v1346 = vadd.f32 %v1290, %v1196
        %v1347 = vadd.f32 %v1291, %v1198
        %v1348 = vadd.f32 %v1292, %v1202
        %v1349 = vadd.f32 %v1293, %v1204
        %v1350 = vadd.f32 %v1294, %v1206
        %v1351 = vadd.f32 %v1295, %v1208
        %v1352 = vadd.f32 %v1296, %v1212
        %v1353 = vadd.f32 %v1297, %v1214
        %v1354 = vadd.f32 %v1298, %v1216
        %v1355 = vadd.f32 %v1299, %v1218
        %v1356 = vadd.f32 %v1300, %v1222
        %v1357 = vadd.f32 %v1301, %v1224
        %v1358 = vadd.f32 %v1302, %v1226
        %v1359 = vadd.f32 %v1303, %v1228
        %v1360 = vadd.f32 %v1304, %v1232
        %v1361 = vadd.f32 %v1305, %v1234
        %v1362 = vadd.f32 %v1306, %v1236
        %v1363 = vadd.f32 %v1307, %v1238
        %v1364 = vadd.f32 %v1308, %v1242
        %v1365 = vadd.f32 %v1309, %v1244
        %v1366 = vadd.f32 %v1310, %v1246
        %v1367 = vadd.f32 %v1311, %v1248
        %v1368 = vadd.f32 %v1312, %v1252
        %v1369 = vadd.f32 %v1313, %v1254
        %v1370 = vadd.f32 %v1314, %v1256
        %v1371 = vadd.f32 %v1315, %v1258
        %1372 = vst [vmem:[#allocation2] sm:$0xff] %v1316
        %1373 = vst [vmem:[#allocation2 + $0x8] sm:$0xff] %v1317
        %1374 = vst [vmem:[#allocation2 + $0x10] sm:$0xff] %v1318
        %1375 = vst [vmem:[#allocation2 + $0x18] sm:$0xff] %v1319
        %1376 = vst [vmem:[#allocation2 + $0x20] sm:$0xff] %v1320
        %1377 = vst [vmem:[#allocation2 + $0x28] sm:$0xff] %v1321
        %1378 = vst [vmem:[#allocation2 + $0x30] sm:$0xff] %v1322
        %1379 = vst [vmem:[#allocation2 + $0x38] sm:$0xff] %v1323
        %1380 = vst [vmem:[#allocation2 + $0x40] sm:$0xff] %v1324
        %1381 = vst [vmem:[#allocation2 + $0x48] sm:$0xff] %v1325
        %1382 = vst [vmem:[#allocation2 + $0x50] sm:$0xff] %v1326
        %1383 = vst [vmem:[#allocation2 + $0x58] sm:$0xff] %v1327
        %1384 = vst [vmem:[#allocation2 + $0x60] sm:$0xff] %v1328
        %1385 = vst [vmem:[#allocation2 + $0x68] sm:$0xff] %v1329
        %1386 = vst [vmem:[#allocation2 + $0x70] sm:$0xff] %v1330
        %1387 = vst [vmem:[#allocation2 + $0x78] sm:$0xff] %v1331
        %1388 = vst [vmem:[#allocation2 + $0x80] sm:$0xff] %v1332
        %1389 = vst [vmem:[#allocation2 + $0x88] sm:$0xff] %v1333
        %1390 = vst [vmem:[#allocation2 + $0x90] sm:$0xff] %v1334
        %1391 = vst [vmem:[#allocation2 + $0x98] sm:$0xff] %v1335
        %1392 = vst [vmem:[#allocation2 + $0xa0] sm:$0xff] %v1336
        %1393 = vst [vmem:[#allocation2 + $0xa8] sm:$0xff] %v1337
        %1394 = vst [vmem:[#allocation2 + $0xb0] sm:$0xff] %v1338
        %1395 = vst [vmem:[#allocation2 + $0xb8] sm:$0xff] %v1339
        %1396 = vst [vmem:[#allocation2 + $0xc0] sm:$0xff] %v1340
        %1397 = vst [vmem:[#allocation2 + $0xc8] sm:$0xff] %v1341
        %1398 = vst [vmem:[#allocation2 + $0xd0] sm:$0xff] %v1342
        %1399 = vst [vmem:[#allocation2 + $0xd8] sm:$0xff] %v1343
        %1400 = vst [vmem:[#allocation2 + $0xe0] sm:$0xff] %v1344
        %1401 = vst [vmem:[#allocation2 + $0xe8] sm:$0xff] %v1345
        %1402 = vst [vmem:[#allocation2 + $0xf0] sm:$0xff] %v1346
        %1403 = vst [vmem:[#allocation2 + $0xf8] sm:$0xff] %v1347
        %1404 = vst [vmem:[#allocation2 + $0x100] sm:$0xff] %v1348
        %1405 = vst [vmem:[#allocation2 + $0x108] sm:$0xff] %v1349
        %1406 = vst [vmem:[#allocation2 + $0x110] sm:$0xff] %v1350
        %1407 = vst [vmem:[#allocation2 + $0x118] sm:$0xff] %v1351
        %1408 = vst [vmem:[#allocation2 + $0x120] sm:$0xff] %v1352
        %1409 = vst [vmem:[#allocation2 + $0x128] sm:$0xff] %v1353
        %1410 = vst [vmem:[#allocation2 + $0x130] sm:$0xff] %v1354
        %1411 = vst [vmem:[#allocation2 + $0x138] sm:$0xff] %v1355
        %1412 = vst [vmem:[#allocation2 + $0x140] sm:$0xff] %v1356
        %1413 = vst [vmem:[#allocation2 + $0x148] sm:$0xff] %v1357
        %1414 = vst [vmem:[#allocation2 + $0x150] sm:$0xff] %v1358
        %1415 = vst [vmem:[#allocation2 + $0x158] sm:$0xff] %v1359
        %1416 = vst [vmem:[#allocation2 + $0x160] sm:$0xff] %v1360
        %1417 = vst [vmem:[#allocation2 + $0x168] sm:$0xff] %v1361
        %1418 = vst [vmem:[#allocation2 + $0x170] sm:$0xff] %v1362
        %1419 = vst [vmem:[#allocation2 + $0x178] sm:$0xff] %v1363
        %1420 = vst [vmem:[#allocation2 + $0x180] sm:$0xff] %v1364
        %1421 = vst [vmem:[#allocation2 + $0x188] sm:$0xff] %v1365
        %1422 = vst [vmem:[#allocation2 + $0x190] sm:$0xff] %v1366
        %1423 = vst [vmem:[#allocation2 + $0x198] sm:$0xff] %v1367
        %1424 = vst [vmem:[#allocation2 + $0x1a0] sm:$0xff] %v1368
        %1425 = vst [vmem:[#allocation2 + $0x1a8] sm:$0xff] %v1369
        %1426 = vst [vmem:[#allocation2 + $0x1b0] sm:$0xff] %v1370
        %1427 = vst [vmem:[#allocation2 + $0x1b8] sm:$0xff] %v1371
        %s1428 = scalar_lea.vmem [#allocation5], 64
        %v1429 = vld [vmem:[%s1428] sm:$0xff]
        %v1430 = vld [vmem:[%s1428 + $0x8] sm:$0xff]
        %v1431 = vld [vmem:[%s1428 + $0x10] sm:$0xff]
        %v1432 = vld [vmem:[%s1428 + $0x18] sm:$0xff]
        %v1434 = vunpack.c.l.b16 %v635
        %v1435 = vpack.c.b16 %v1434, %v1010
        %v1440 = vunpack.c.l.b16 %v1429
        %v1441 = vunpack.c.h.b16 %v1429
        %v1442 = vunpack.c.l.b16 %v1430
        %v1443 = vunpack.c.h.b16 %v1430
        %v1444 = vunpack.c.l.b16 %v1431
        %v1445 = vunpack.c.h.b16 %v1431
        %v1446 = vunpack.c.l.b16 %v1432
        %v1447 = vunpack.c.h.b16 %v1432
        %v1448 = vpack.c.b16 %v1442, %v1440
        %v1449 = vpack.c.b16 %v1443, %v1441
        %v1450 = vpack.c.b16 %v1446, %v1444
        %v1451 = vpack.c.b16 %v1447, %v1445
        %v1457 = vsel %vm732, %v1435, 0
        %1459 = vmatprep.subr.bf16.mxu0 %v1449
        %1460 = vmatpush1.bf16.msra.mxu0 %v1448
        %1461 = vmatprep.subr.bf16.mxu0 %v1451
        %1462 = vmatpush1.bf16.msra.mxu0 %v1450
        %1463 = vmatprep.subr.bf16.mxu0 0
        %1464 = vmatpush1.bf16.msra.mxu0 0
        %1465 = vmatprep.subr.bf16.mxu0 0
        %1466 = vmatpush1.bf16.msra.mxu0 0
        %1467 = vmatprep.subr.bf16.mxu0 0
        %1468 = vmatpush1.bf16.msra.mxu0 0
        %1469 = vmatprep.subr.bf16.mxu0 0
        %1470 = vmatpush1.bf16.msra.mxu0 0
        %1471 = vmatprep.subr.bf16.mxu0 0
        %1472 = vmatpush1.bf16.msra.mxu0 0
        %1473 = vmatprep.subr.bf16.mxu0 0
        %1474 = vmatpush1.bf16.msra.mxu0 0
        %1475 = vmatprep.subr.bf16.mxu0 0
        %1476 = vmatpush1.bf16.msra.mxu0 0
        %1477 = vmatprep.subr.bf16.mxu0 0
        %1478 = vmatpush1.bf16.msra.mxu0 0
        %1479 = vmatprep.subr.bf16.mxu0 0
        %1480 = vmatpush1.bf16.msra.mxu0 0
        %1481 = vmatprep.subr.bf16.mxu0 0
        %1482 = vmatpush1.bf16.msra.mxu0 0
        %1483 = vmatprep.subr.bf16.mxu0 0
        %1484 = vmatpush1.bf16.msra.mxu0 0
        %1485 = vmatprep.subr.bf16.mxu0 0
        %1486 = vmatpush1.bf16.msra.mxu0 0
        %1487 = vmatprep.subr.bf16.mxu0 0
        %1488 = vmatpush1.bf16.msra.mxu0 0
        %1489 = vmatprep.subr.bf16.mxu0 0
        %1490 = vmatpush1.bf16.msra.mxu0 0
        %1491 = vmatprep.mubr.bf16.mxu0 0
        %1492 = vmatmul.mubr.bf16.gmra.mrb[0].mxu0 %v737
        %v1493 = vpop.f32.mrb[0].mxu0
        %v1494 = vadd.f32 0.0, %v1493
        %v1495 = vpop.f32.mrb[0].mxu0
        %v1496 = vadd.f32 0.0, %v1495
        %v1497 = vpop.f32.mrb[0].mxu0
        %v1498 = vadd.f32 0.0, %v1497
        %v1499 = vpop.f32.mrb[0].mxu0
        %v1500 = vadd.f32 0.0, %v1499
        %1501 = vmatprep.mubr.bf16.mxu0 0
        %1502 = vmatmul.mubr.bf16.gmra.mrb[0].mxu0 %v740
        %v1503 = vpop.f32.mrb[0].mxu0
        %v1504 = vadd.f32 0.0, %v1503
        %v1505 = vpop.f32.mrb[0].mxu0
        %v1506 = vadd.f32 0.0, %v1505
        %v1507 = vpop.f32.mrb[0].mxu0
        %v1508 = vadd.f32 0.0, %v1507
        %v1509 = vpop.f32.mrb[0].mxu0
        %v1510 = vadd.f32 0.0, %v1509
        %1511 = vmatprep.mubr.bf16.mxu0 0
        %1512 = vmatmul.mubr.bf16.gmra.mrb[0].mxu0 %v743
        %v1513 = vpop.f32.mrb[0].mxu0
        %v1514 = vadd.f32 0.0, %v1513
        %v1515 = vpop.f32.mrb[0].mxu0
        %v1516 = vadd.f32 0.0, %v1515
        %v1517 = vpop.f32.mrb[0].mxu0
        %v1518 = vadd.f32 0.0, %v1517
        %v1519 = vpop.f32.mrb[0].mxu0
        %v1520 = vadd.f32 0.0, %v1519
        %1521 = vmatprep.mubr.bf16.mxu0 0
        %1522 = vmatmul.mubr.bf16.gmra.mrb[0].mxu0 %v746
        %v1523 = vpop.f32.mrb[0].mxu0
        %v1524 = vadd.f32 0.0, %v1523
        %v1525 = vpop.f32.mrb[0].mxu0
        %v1526 = vadd.f32 0.0, %v1525
        %v1527 = vpop.f32.mrb[0].mxu0
        %v1528 = vadd.f32 0.0, %v1527
        %v1529 = vpop.f32.mrb[0].mxu0
        %v1530 = vadd.f32 0.0, %v1529
        %1531 = vmatprep.mubr.bf16.mxu0 0
        %1532 = vmatmul.mubr.bf16.gmra.mrb[0].mxu0 %v749
        %v1533 = vpop.f32.mrb[0].mxu0
        %v1534 = vadd.f32 0.0, %v1533
        %v1535 = vpop.f32.mrb[0].mxu0
        %v1536 = vadd.f32 0.0, %v1535
        %v1537 = vpop.f32.mrb[0].mxu0
        %v1538 = vadd.f32 0.0, %v1537
        %v1539 = vpop.f32.mrb[0].mxu0
        %v1540 = vadd.f32 0.0, %v1539
        %1541 = vmatprep.mubr.bf16.mxu0 0
        %1542 = vmatmul.mubr.bf16.gmra.mrb[0].mxu0 %v752
        %v1543 = vpop.f32.mrb[0].mxu0
        %v1544 = vadd.f32 0.0, %v1543
        %v1545 = vpop.f32.mrb[0].mxu0
        %v1546 = vadd.f32 0.0, %v1545
        %v1547 = vpop.f32.mrb[0].mxu0
        %v1548 = vadd.f32 0.0, %v1547
        %v1549 = vpop.f32.mrb[0].mxu0
        %v1550 = vadd.f32 0.0, %v1549
        %1551 = vmatprep.mubr.bf16.mxu0 0
        %1552 = vmatmul.mubr.bf16.gmra.mrb[0].mxu0 %v755
        %v1553 = vpop.f32.mrb[0].mxu0
        %v1554 = vadd.f32 0.0, %v1553
        %v1555 = vpop.f32.mrb[0].mxu0
        %v1556 = vadd.f32 0.0, %v1555
        %v1557 = vpop.f32.mrb[0].mxu0
        %v1558 = vadd.f32 0.0, %v1557
        %v1559 = vpop.f32.mrb[0].mxu0
        %v1560 = vadd.f32 0.0, %v1559
        %1561 = vmatprep.mubr.bf16.mxu0 0
        %1562 = vmatmul.mubr.bf16.gmra.mrb[0].mxu0 %v758
        %v1563 = vpop.f32.mrb[0].mxu0
        %v1564 = vadd.f32 0.0, %v1563
        %v1565 = vpop.f32.mrb[0].mxu0
        %v1566 = vadd.f32 0.0, %v1565
        %v1567 = vpop.f32.mrb[0].mxu0
        %v1568 = vadd.f32 0.0, %v1567
        %v1569 = vpop.f32.mrb[0].mxu0
        %v1570 = vadd.f32 0.0, %v1569
        %1571 = vmatprep.mubr.bf16.mxu0 0
        %1572 = vmatmul.mubr.bf16.gmra.mrb[0].mxu0 %v761
        %v1573 = vpop.f32.mrb[0].mxu0
        %v1574 = vadd.f32 0.0, %v1573
        %v1575 = vpop.f32.mrb[0].mxu0
        %v1576 = vadd.f32 0.0, %v1575
        %v1577 = vpop.f32.mrb[0].mxu0
        %v1578 = vadd.f32 0.0, %v1577
        %v1579 = vpop.f32.mrb[0].mxu0
        %v1580 = vadd.f32 0.0, %v1579
        %1581 = vmatprep.mubr.bf16.mxu0 0
        %1582 = vmatmul.mubr.bf16.gmra.mrb[0].mxu0 %v764
        %v1583 = vpop.f32.mrb[0].mxu0
        %v1584 = vadd.f32 0.0, %v1583
        %v1585 = vpop.f32.mrb[0].mxu0
        %v1586 = vadd.f32 0.0, %v1585
        %v1587 = vpop.f32.mrb[0].mxu0
        %v1588 = vadd.f32 0.0, %v1587
        %v1589 = vpop.f32.mrb[0].mxu0
        %v1590 = vadd.f32 0.0, %v1589
        %1591 = vmatprep.mubr.bf16.mxu0 0
        %1592 = vmatmul.mubr.bf16.gmra.mrb[0].mxu0 %v767
        %v1593 = vpop.f32.mrb[0].mxu0
        %v1594 = vadd.f32 0.0, %v1593
        %v1595 = vpop.f32.mrb[0].mxu0
        %v1596 = vadd.f32 0.0, %v1595
        %v1597 = vpop.f32.mrb[0].mxu0
        %v1598 = vadd.f32 0.0, %v1597
        %v1599 = vpop.f32.mrb[0].mxu0
        %v1600 = vadd.f32 0.0, %v1599
        %1601 = vmatprep.mubr.bf16.mxu0 0
        %1602 = vmatmul.mubr.bf16.gmra.mrb[0].mxu0 %v770
        %v1603 = vpop.f32.mrb[0].mxu0
        %v1604 = vadd.f32 0.0, %v1603
        %v1605 = vpop.f32.mrb[0].mxu0
        %v1606 = vadd.f32 0.0, %v1605
        %v1607 = vpop.f32.mrb[0].mxu0
        %v1608 = vadd.f32 0.0, %v1607
        %v1609 = vpop.f32.mrb[0].mxu0
        %v1610 = vadd.f32 0.0, %v1609
        %1611 = vmatprep.mubr.bf16.mxu0 0
        %1612 = vmatmul.mubr.bf16.gmra.mrb[0].mxu0 %v773
        %v1613 = vpop.f32.mrb[0].mxu0
        %v1614 = vadd.f32 0.0, %v1613
        %v1615 = vpop.f32.mrb[0].mxu0
        %v1616 = vadd.f32 0.0, %v1615
        %v1617 = vpop.f32.mrb[0].mxu0
        %v1618 = vadd.f32 0.0, %v1617
        %v1619 = vpop.f32.mrb[0].mxu0
        %v1620 = vadd.f32 0.0, %v1619
        %1621 = vmatprep.mubr.bf16.mxu0 0
        %1622 = vmatmul.mubr.bf16.gmra.mrb[0].mxu0 %v1457
        %v1623 = vpop.f32.mrb[0].mxu0
        %v1624 = vadd.f32 0.0, %v1623
        %v1625 = vpop.f32.mrb[0].mxu0
        %v1626 = vadd.f32 0.0, %v1625
        %v1627 = vpop.f32.mrb[0].mxu0
        %v1628 = vadd.f32 0.0, %v1627
        %v1629 = vpop.f32.mrb[0].mxu0
        %v1630 = vadd.f32 0.0, %v1629
        %1631 = vdwg.mxu0
        %v1632 = vld [vmem:[#allocation2] sm:$0xff]
        %v1633 = vld [vmem:[#allocation2 + $0x8] sm:$0xff]
        %v1634 = vld [vmem:[#allocation2 + $0x10] sm:$0xff]
        %v1635 = vld [vmem:[#allocation2 + $0x18] sm:$0xff]
        %v1636 = vld [vmem:[#allocation2 + $0x20] sm:$0xff]
        %v1637 = vld [vmem:[#allocation2 + $0x28] sm:$0xff]
        %v1638 = vld [vmem:[#allocation2 + $0x30] sm:$0xff]
        %v1639 = vld [vmem:[#allocation2 + $0x38] sm:$0xff]
        %v1640 = vld [vmem:[#allocation2 + $0x40] sm:$0xff]
        %v1641 = vld [vmem:[#allocation2 + $0x48] sm:$0xff]
        %v1642 = vld [vmem:[#allocation2 + $0x50] sm:$0xff]
        %v1643 = vld [vmem:[#allocation2 + $0x58] sm:$0xff]
        %v1644 = vld [vmem:[#allocation2 + $0x60] sm:$0xff]
        %v1645 = vld [vmem:[#allocation2 + $0x68] sm:$0xff]
        %v1646 = vld [vmem:[#allocation2 + $0x70] sm:$0xff]
        %v1647 = vld [vmem:[#allocation2 + $0x78] sm:$0xff]
        %v1648 = vld [vmem:[#allocation2 + $0x80] sm:$0xff]
        %v1649 = vld [vmem:[#allocation2 + $0x88] sm:$0xff]
        %v1650 = vld [vmem:[#allocation2 + $0x90] sm:$0xff]
        %v1651 = vld [vmem:[#allocation2 + $0x98] sm:$0xff]
        %v1652 = vld [vmem:[#allocation2 + $0xa0] sm:$0xff]
        %v1653 = vld [vmem:[#allocation2 + $0xa8] sm:$0xff]
        %v1654 = vld [vmem:[#allocation2 + $0xb0] sm:$0xff]
        %v1655 = vld [vmem:[#allocation2 + $0xb8] sm:$0xff]
        %v1656 = vld [vmem:[#allocation2 + $0xc0] sm:$0xff]
        %v1657 = vld [vmem:[#allocation2 + $0xc8] sm:$0xff]
        %v1658 = vld [vmem:[#allocation2 + $0xd0] sm:$0xff]
        %v1659 = vld [vmem:[#allocation2 + $0xd8] sm:$0xff]
        %v1660 = vld [vmem:[#allocation2 + $0xe0] sm:$0xff]
        %v1661 = vld [vmem:[#allocation2 + $0xe8] sm:$0xff]
        %v1662 = vld [vmem:[#allocation2 + $0xf0] sm:$0xff]
        %v1663 = vld [vmem:[#allocation2 + $0xf8] sm:$0xff]
        %v1664 = vld [vmem:[#allocation2 + $0x100] sm:$0xff]
        %v1665 = vld [vmem:[#allocation2 + $0x108] sm:$0xff]
        %v1666 = vld [vmem:[#allocation2 + $0x110] sm:$0xff]
        %v1667 = vld [vmem:[#allocation2 + $0x118] sm:$0xff]
        %v1668 = vld [vmem:[#allocation2 + $0x120] sm:$0xff]
        %v1669 = vld [vmem:[#allocation2 + $0x128] sm:$0xff]
        %v1670 = vld [vmem:[#allocation2 + $0x130] sm:$0xff]
        %v1671 = vld [vmem:[#allocation2 + $0x138] sm:$0xff]
        %v1672 = vld [vmem:[#allocation2 + $0x140] sm:$0xff]
        %v1673 = vld [vmem:[#allocation2 + $0x148] sm:$0xff]
        %v1674 = vld [vmem:[#allocation2 + $0x150] sm:$0xff]
        %v1675 = vld [vmem:[#allocation2 + $0x158] sm:$0xff]
        %v1676 = vld [vmem:[#allocation2 + $0x160] sm:$0xff]
        %v1677 = vld [vmem:[#allocation2 + $0x168] sm:$0xff]
        %v1678 = vld [vmem:[#allocation2 + $0x170] sm:$0xff]
        %v1679 = vld [vmem:[#allocation2 + $0x178] sm:$0xff]
        %v1680 = vld [vmem:[#allocation2 + $0x180] sm:$0xff]
        %v1681 = vld [vmem:[#allocation2 + $0x188] sm:$0xff]
        %v1682 = vld [vmem:[#allocation2 + $0x190] sm:$0xff]
        %v1683 = vld [vmem:[#allocation2 + $0x198] sm:$0xff]
        %v1684 = vld [vmem:[#allocation2 + $0x1a0] sm:$0xff]
        %v1685 = vld [vmem:[#allocation2 + $0x1a8] sm:$0xff]
        %v1686 = vld [vmem:[#allocation2 + $0x1b0] sm:$0xff]
        %v1687 = vld [vmem:[#allocation2 + $0x1b8] sm:$0xff]
        %v1688 = vadd.f32 %v1632, %v1494
        %v1689 = vadd.f32 %v1633, %v1496
        %v1690 = vadd.f32 %v1634, %v1498
        %v1691 = vadd.f32 %v1635, %v1500
        %v1692 = vadd.f32 %v1636, %v1504
        %v1693 = vadd.f32 %v1637, %v1506
        %v1694 = vadd.f32 %v1638, %v1508
        %v1695 = vadd.f32 %v1639, %v1510
        %v1696 = vadd.f32 %v1640, %v1514
        %v1697 = vadd.f32 %v1641, %v1516
        %v1698 = vadd.f32 %v1642, %v1518
        %v1699 = vadd.f32 %v1643, %v1520
        %v1700 = vadd.f32 %v1644, %v1524
        %v1701 = vadd.f32 %v1645, %v1526
        %v1702 = vadd.f32 %v1646, %v1528
        %v1703 = vadd.f32 %v1647, %v1530
        %v1704 = vadd.f32 %v1648, %v1534
        %v1705 = vadd.f32 %v1649, %v1536
        %v1706 = vadd.f32 %v1650, %v1538
        %v1707 = vadd.f32 %v1651, %v1540
        %v1708 = vadd.f32 %v1652, %v1544
        %v1709 = vadd.f32 %v1653, %v1546
        %v1710 = vadd.f32 %v1654, %v1548
        %v1711 = vadd.f32 %v1655, %v1550
        %v1712 = vadd.f32 %v1656, %v1554
        %v1713 = vadd.f32 %v1657, %v1556
        %v1714 = vadd.f32 %v1658, %v1558
        %v1715 = vadd.f32 %v1659, %v1560
        %v1716 = vadd.f32 %v1660, %v1564
        %v1717 = vadd.f32 %v1661, %v1566
        %v1718 = vadd.f32 %v1662, %v1568
        %v1719 = vadd.f32 %v1663, %v1570
        %v1720 = vadd.f32 %v1664, %v1574
        %v1721 = vadd.f32 %v1665, %v1576
        %v1722 = vadd.f32 %v1666, %v1578
        %v1723 = vadd.f32 %v1667, %v1580
        %v1724 = vadd.f32 %v1668, %v1584
        %v1725 = vadd.f32 %v1669, %v1586
        %v1726 = vadd.f32 %v1670, %v1588
        %v1727 = vadd.f32 %v1671, %v1590
        %v1728 = vadd.f32 %v1672, %v1594
        %v1729 = vadd.f32 %v1673, %v1596
        %v1730 = vadd.f32 %v1674, %v1598
        %v1731 = vadd.f32 %v1675, %v1600
        %v1732 = vadd.f32 %v1676, %v1604
        %v1733 = vadd.f32 %v1677, %v1606
        %v1734 = vadd.f32 %v1678, %v1608
        %v1735 = vadd.f32 %v1679, %v1610
        %v1736 = vadd.f32 %v1680, %v1614
        %v1737 = vadd.f32 %v1681, %v1616
        %v1738 = vadd.f32 %v1682, %v1618
        %v1739 = vadd.f32 %v1683, %v1620
        %v1740 = vadd.f32 %v1684, %v1624
        %v1741 = vadd.f32 %v1685, %v1626
        %v1742 = vadd.f32 %v1686, %v1628
        %v1743 = vadd.f32 %v1687, %v1630
        %1744 = vst [vmem:[#allocation2] sm:$0xff] %v1688
        %1745 = vst [vmem:[#allocation2 + $0x8] sm:$0xff] %v1689
        %1746 = vst [vmem:[#allocation2 + $0x10] sm:$0xff] %v1690
        %1747 = vst [vmem:[#allocation2 + $0x18] sm:$0xff] %v1691
        %1748 = vst [vmem:[#allocation2 + $0x20] sm:$0xff] %v1692
        %1749 = vst [vmem:[#allocation2 + $0x28] sm:$0xff] %v1693
        %1750 = vst [vmem:[#allocation2 + $0x30] sm:$0xff] %v1694
        %1751 = vst [vmem:[#allocation2 + $0x38] sm:$0xff] %v1695
        %1752 = vst [vmem:[#allocation2 + $0x40] sm:$0xff] %v1696
        %1753 = vst [vmem:[#allocation2 + $0x48] sm:$0xff] %v1697
        %1754 = vst [vmem:[#allocation2 + $0x50] sm:$0xff] %v1698
        %1755 = vst [vmem:[#allocation2 + $0x58] sm:$0xff] %v1699
        %1756 = vst [vmem:[#allocation2 + $0x60] sm:$0xff] %v1700
        %1757 = vst [vmem:[#allocation2 + $0x68] sm:$0xff] %v1701
        %1758 = vst [vmem:[#allocation2 + $0x70] sm:$0xff] %v1702
        %1759 = vst [vmem:[#allocation2 + $0x78] sm:$0xff] %v1703
        %1760 = vst [vmem:[#allocation2 + $0x80] sm:$0xff] %v1704
        %1761 = vst [vmem:[#allocation2 + $0x88] sm:$0xff] %v1705
        %1762 = vst [vmem:[#allocation2 + $0x90] sm:$0xff] %v1706
        %1763 = vst [vmem:[#allocation2 + $0x98] sm:$0xff] %v1707
        %1764 = vst [vmem:[#allocation2 + $0xa0] sm:$0xff] %v1708
        %1765 = vst [vmem:[#allocation2 + $0xa8] sm:$0xff] %v1709
        %1766 = vst [vmem:[#allocation2 + $0xb0] sm:$0xff] %v1710
        %1767 = vst [vmem:[#allocation2 + $0xb8] sm:$0xff] %v1711
        %1768 = vst [vmem:[#allocation2 + $0xc0] sm:$0xff] %v1712
        %1769 = vst [vmem:[#allocation2 + $0xc8] sm:$0xff] %v1713
        %1770 = vst [vmem:[#allocation2 + $0xd0] sm:$0xff] %v1714
        %1771 = vst [vmem:[#allocation2 + $0xd8] sm:$0xff] %v1715
        %1772 = vst [vmem:[#allocation2 + $0xe0] sm:$0xff] %v1716
        %1773 = vst [vmem:[#allocation2 + $0xe8] sm:$0xff] %v1717
        %1774 = vst [vmem:[#allocation2 + $0xf0] sm:$0xff] %v1718
        %1775 = vst [vmem:[#allocation2 + $0xf8] sm:$0xff] %v1719
        %1776 = vst [vmem:[#allocation2 + $0x100] sm:$0xff] %v1720
        %1777 = vst [vmem:[#allocation2 + $0x108] sm:$0xff] %v1721
        %1778 = vst [vmem:[#allocation2 + $0x110] sm:$0xff] %v1722
        %1779 = vst [vmem:[#allocation2 + $0x118] sm:$0xff] %v1723
        %1780 = vst [vmem:[#allocation2 + $0x120] sm:$0xff] %v1724
        %1781 = vst [vmem:[#allocation2 + $0x128] sm:$0xff] %v1725
        %1782 = vst [vmem:[#allocation2 + $0x130] sm:$0xff] %v1726
        %1783 = vst [vmem:[#allocation2 + $0x138] sm:$0xff] %v1727
        %1784 = vst [vmem:[#allocation2 + $0x140] sm:$0xff] %v1728
        %1785 = vst [vmem:[#allocation2 + $0x148] sm:$0xff] %v1729
        %1786 = vst [vmem:[#allocation2 + $0x150] sm:$0xff] %v1730
        %1787 = vst [vmem:[#allocation2 + $0x158] sm:$0xff] %v1731
        %1788 = vst [vmem:[#allocation2 + $0x160] sm:$0xff] %v1732
        %1789 = vst [vmem:[#allocation2 + $0x168] sm:$0xff] %v1733
        %1790 = vst [vmem:[#allocation2 + $0x170] sm:$0xff] %v1734
        %1791 = vst [vmem:[#allocation2 + $0x178] sm:$0xff] %v1735
        %1792 = vst [vmem:[#allocation2 + $0x180] sm:$0xff] %v1736
        %1793 = vst [vmem:[#allocation2 + $0x188] sm:$0xff] %v1737
        %1794 = vst [vmem:[#allocation2 + $0x190] sm:$0xff] %v1738
        %1795 = vst [vmem:[#allocation2 + $0x198] sm:$0xff] %v1739
        %1796 = vst [vmem:[#allocation2 + $0x1a0] sm:$0xff] %v1740
        %1797 = vst [vmem:[#allocation2 + $0x1a8] sm:$0xff] %v1741
        %1798 = vst [vmem:[#allocation2 + $0x1b0] sm:$0xff] %v1742
        %1799 = vst [vmem:[#allocation2 + $0x1b8] sm:$0xff] %v1743
        %s1800 = scalar_lea.vmem [#allocation5], 96
        %v1801 = vld [vmem:[%s1800] sm:$0xff]
        %v1802 = vld [vmem:[%s1800 + $0x8] sm:$0xff]
        %v1803 = vld [vmem:[%s1800 + $0x10] sm:$0xff]
        %v1804 = vld [vmem:[%s1800 + $0x18] sm:$0xff]
        %v1806 = vunpack.c.l.b16 %v636
        %v1807 = vpack.c.b16 %v1806, %v1434
        %v1812 = vunpack.c.l.b16 %v1801
        %v1813 = vunpack.c.h.b16 %v1801
        %v1814 = vunpack.c.l.b16 %v1802
        %v1815 = vunpack.c.h.b16 %v1802
        %v1816 = vunpack.c.l.b16 %v1803
        %v1817 = vunpack.c.h.b16 %v1803
        %v1818 = vunpack.c.l.b16 %v1804
        %v1819 = vunpack.c.h.b16 %v1804
        %v1820 = vpack.c.b16 %v1814, %v1812
        %v1821 = vpack.c.b16 %v1815, %v1813
        %v1822 = vpack.c.b16 %v1818, %v1816
        %v1823 = vpack.c.b16 %v1819, %v1817
        %v1829 = vsel %vm732, %v1807, 0
        %1831 = vmatprep.subr.bf16.mxu0 %v1821
        %1832 = vmatpush1.bf16.msra.mxu0 %v1820
        %1833 = vmatprep.subr.bf16.mxu0 %v1823
        %1834 = vmatpush1.bf16.msra.mxu0 %v1822
        %1835 = vmatprep.subr.bf16.mxu0 0
        %1836 = vmatpush1.bf16.msra.mxu0 0
        %1837 = vmatprep.subr.bf16.mxu0 0
        %1838 = vmatpush1.bf16.msra.mxu0 0
        %1839 = vmatprep.subr.bf16.mxu0 0
        %1840 = vmatpush1.bf16.msra.mxu0 0
        %1841 = vmatprep.subr.bf16.mxu0 0
        %1842 = vmatpush1.bf16.msra.mxu0 0
        %1843 = vmatprep.subr.bf16.mxu0 0
        %1844 = vmatpush1.bf16.msra.mxu0 0
        %1845 = vmatprep.subr.bf16.mxu0 0
        %1846 = vmatpush1.bf16.msra.mxu0 0
        %1847 = vmatprep.subr.bf16.mxu0 0
        %1848 = vmatpush1.bf16.msra.mxu0 0
        %1849 = vmatprep.subr.bf16.mxu0 0
        %1850 = vmatpush1.bf16.msra.mxu0 0
        %1851 = vmatprep.subr.bf16.mxu0 0
        %1852 = vmatpush1.bf16.msra.mxu0 0
        %1853 = vmatprep.subr.bf16.mxu0 0
        %1854 = vmatpush1.bf16.msra.mxu0 0
        %1855 = vmatprep.subr.bf16.mxu0 0
        %1856 = vmatpush1.bf16.msra.mxu0 0
        %1857 = vmatprep.subr.bf16.mxu0 0
        %1858 = vmatpush1.bf16.msra.mxu0 0
        %1859 = vmatprep.subr.bf16.mxu0 0
        %1860 = vmatpush1.bf16.msra.mxu0 0
        %1861 = vmatprep.subr.bf16.mxu0 0
        %1862 = vmatpush1.bf16.msra.mxu0 0
        %1863 = vmatprep.mubr.bf16.mxu0 0
        %1864 = vmatmul.mubr.bf16.gmra.mrb[0].mxu0 %v1049
        %v1865 = vpop.f32.mrb[0].mxu0
        %v1866 = vadd.f32 0.0, %v1865
        %v1867 = vpop.f32.mrb[0].mxu0
        %v1868 = vadd.f32 0.0, %v1867
        %v1869 = vpop.f32.mrb[0].mxu0
        %v1870 = vadd.f32 0.0, %v1869
        %v1871 = vpop.f32.mrb[0].mxu0
        %v1872 = vadd.f32 0.0, %v1871
        %1873 = vmatprep.mubr.bf16.mxu0 0
        %1874 = vmatmul.mubr.bf16.gmra.mrb[0].mxu0 %v1052
        %v1875 = vpop.f32.mrb[0].mxu0
        %v1876 = vadd.f32 0.0, %v1875
        %v1877 = vpop.f32.mrb[0].mxu0
        %v1878 = vadd.f32 0.0, %v1877
        %v1879 = vpop.f32.mrb[0].mxu0
        %v1880 = vadd.f32 0.0, %v1879
        %v1881 = vpop.f32.mrb[0].mxu0
        %v1882 = vadd.f32 0.0, %v1881
        %1883 = vmatprep.mubr.bf16.mxu0 0
        %1884 = vmatmul.mubr.bf16.gmra.mrb[0].mxu0 %v1055
        %v1885 = vpop.f32.mrb[0].mxu0
        %v1886 = vadd.f32 0.0, %v1885
        %v1887 = vpop.f32.mrb[0].mxu0
        %v1888 = vadd.f32 0.0, %v1887
        %v1889 = vpop.f32.mrb[0].mxu0
        %v1890 = vadd.f32 0.0, %v1889
        %v1891 = vpop.f32.mrb[0].mxu0
        %v1892 = vadd.f32 0.0, %v1891
        %1893 = vmatprep.mubr.bf16.mxu0 0
        %1894 = vmatmul.mubr.bf16.gmra.mrb[0].mxu0 %v1058
        %v1895 = vpop.f32.mrb[0].mxu0
        %v1896 = vadd.f32 0.0, %v1895
        %v1897 = vpop.f32.mrb[0].mxu0
        %v1898 = vadd.f32 0.0, %v1897
        %v1899 = vpop.f32.mrb[0].mxu0
        %v1900 = vadd.f32 0.0, %v1899
        %v1901 = vpop.f32.mrb[0].mxu0
        %v1902 = vadd.f32 0.0, %v1901
        %1903 = vmatprep.mubr.bf16.mxu0 0
        %1904 = vmatmul.mubr.bf16.gmra.mrb[0].mxu0 %v1061
        %v1905 = vpop.f32.mrb[0].mxu0
        %v1906 = vadd.f32 0.0, %v1905
        %v1907 = vpop.f32.mrb[0].mxu0
        %v1908 = vadd.f32 0.0, %v1907
        %v1909 = vpop.f32.mrb[0].mxu0
        %v1910 = vadd.f32 0.0, %v1909
        %v1911 = vpop.f32.mrb[0].mxu0
        %v1912 = vadd.f32 0.0, %v1911
        %1913 = vmatprep.mubr.bf16.mxu0 0
        %1914 = vmatmul.mubr.bf16.gmra.mrb[0].mxu0 %v1064
        %v1915 = vpop.f32.mrb[0].mxu0
        %v1916 = vadd.f32 0.0, %v1915
        %v1917 = vpop.f32.mrb[0].mxu0
        %v1918 = vadd.f32 0.0, %v1917
        %v1919 = vpop.f32.mrb[0].mxu0
        %v1920 = vadd.f32 0.0, %v1919
        %v1921 = vpop.f32.mrb[0].mxu0
        %v1922 = vadd.f32 0.0, %v1921
        %1923 = vmatprep.mubr.bf16.mxu0 0
        %1924 = vmatmul.mubr.bf16.gmra.mrb[0].mxu0 %v1067
        %v1925 = vpop.f32.mrb[0].mxu0
        %v1926 = vadd.f32 0.0, %v1925
        %v1927 = vpop.f32.mrb[0].mxu0
        %v1928 = vadd.f32 0.0, %v1927
        %v1929 = vpop.f32.mrb[0].mxu0
        %v1930 = vadd.f32 0.0, %v1929
        %v1931 = vpop.f32.mrb[0].mxu0
        %v1932 = vadd.f32 0.0, %v1931
        %1933 = vmatprep.mubr.bf16.mxu0 0
        %1934 = vmatmul.mubr.bf16.gmra.mrb[0].mxu0 %v1070
        %v1935 = vpop.f32.mrb[0].mxu0
        %v1936 = vadd.f32 0.0, %v1935
        %v1937 = vpop.f32.mrb[0].mxu0
        %v1938 = vadd.f32 0.0, %v1937
        %v1939 = vpop.f32.mrb[0].mxu0
        %v1940 = vadd.f32 0.0, %v1939
        %v1941 = vpop.f32.mrb[0].mxu0
        %v1942 = vadd.f32 0.0, %v1941
        %1943 = vmatprep.mubr.bf16.mxu0 0
        %1944 = vmatmul.mubr.bf16.gmra.mrb[0].mxu0 %v1073
        %v1945 = vpop.f32.mrb[0].mxu0
        %v1946 = vadd.f32 0.0, %v1945
        %v1947 = vpop.f32.mrb[0].mxu0
        %v1948 = vadd.f32 0.0, %v1947
        %v1949 = vpop.f32.mrb[0].mxu0
        %v1950 = vadd.f32 0.0, %v1949
        %v1951 = vpop.f32.mrb[0].mxu0
        %v1952 = vadd.f32 0.0, %v1951
        %1953 = vmatprep.mubr.bf16.mxu0 0
        %1954 = vmatmul.mubr.bf16.gmra.mrb[0].mxu0 %v1076
        %v1955 = vpop.f32.mrb[0].mxu0
        %v1956 = vadd.f32 0.0, %v1955
        %v1957 = vpop.f32.mrb[0].mxu0
        %v1958 = vadd.f32 0.0, %v1957
        %v1959 = vpop.f32.mrb[0].mxu0
        %v1960 = vadd.f32 0.0, %v1959
        %v1961 = vpop.f32.mrb[0].mxu0
        %v1962 = vadd.f32 0.0, %v1961
        %1963 = vmatprep.mubr.bf16.mxu0 0
        %1964 = vmatmul.mubr.bf16.gmra.mrb[0].mxu0 %v1079
        %v1965 = vpop.f32.mrb[0].mxu0
        %v1966 = vadd.f32 0.0, %v1965
        %v1967 = vpop.f32.mrb[0].mxu0
        %v1968 = vadd.f32 0.0, %v1967
        %v1969 = vpop.f32.mrb[0].mxu0
        %v1970 = vadd.f32 0.0, %v1969
        %v1971 = vpop.f32.mrb[0].mxu0
        %v1972 = vadd.f32 0.0, %v1971
        %1973 = vmatprep.mubr.bf16.mxu0 0
        %1974 = vmatmul.mubr.bf16.gmra.mrb[0].mxu0 %v1082
        %v1975 = vpop.f32.mrb[0].mxu0
        %v1976 = vadd.f32 0.0, %v1975
        %v1977 = vpop.f32.mrb[0].mxu0
        %v1978 = vadd.f32 0.0, %v1977
        %v1979 = vpop.f32.mrb[0].mxu0
        %v1980 = vadd.f32 0.0, %v1979
        %v1981 = vpop.f32.mrb[0].mxu0
        %v1982 = vadd.f32 0.0, %v1981
        %1983 = vmatprep.mubr.bf16.mxu0 0
        %1984 = vmatmul.mubr.bf16.gmra.mrb[0].mxu0 %v1085
        %v1985 = vpop.f32.mrb[0].mxu0
        %v1986 = vadd.f32 0.0, %v1985
        %v1987 = vpop.f32.mrb[0].mxu0
        %v1988 = vadd.f32 0.0, %v1987
        %v1989 = vpop.f32.mrb[0].mxu0
        %v1990 = vadd.f32 0.0, %v1989
        %v1991 = vpop.f32.mrb[0].mxu0
        %v1992 = vadd.f32 0.0, %v1991
        %1993 = vmatprep.mubr.bf16.mxu0 0
        %1994 = vmatmul.mubr.bf16.gmra.mrb[0].mxu0 %v1829
        %v1995 = vpop.f32.mrb[0].mxu0
        %v1996 = vadd.f32 0.0, %v1995
        %v1997 = vpop.f32.mrb[0].mxu0
        %v1998 = vadd.f32 0.0, %v1997
        %v1999 = vpop.f32.mrb[0].mxu0
        %v2000 = vadd.f32 0.0, %v1999
        %v2001 = vpop.f32.mrb[0].mxu0
        %v2002 = vadd.f32 0.0, %v2001
        %2003 = vdwg.mxu0
        %v2004 = vld [vmem:[#allocation2] sm:$0xff]
        %v2005 = vld [vmem:[#allocation2 + $0x8] sm:$0xff]
        %v2006 = vld [vmem:[#allocation2 + $0x10] sm:$0xff]
        %v2007 = vld [vmem:[#allocation2 + $0x18] sm:$0xff]
        %v2008 = vld [vmem:[#allocation2 + $0x20] sm:$0xff]
        %v2009 = vld [vmem:[#allocation2 + $0x28] sm:$0xff]
        %v2010 = vld [vmem:[#allocation2 + $0x30] sm:$0xff]
        %v2011 = vld [vmem:[#allocation2 + $0x38] sm:$0xff]
        %v2012 = vld [vmem:[#allocation2 + $0x40] sm:$0xff]
        %v2013 = vld [vmem:[#allocation2 + $0x48] sm:$0xff]
        %v2014 = vld [vmem:[#allocation2 + $0x50] sm:$0xff]
        %v2015 = vld [vmem:[#allocation2 + $0x58] sm:$0xff]
        %v2016 = vld [vmem:[#allocation2 + $0x60] sm:$0xff]
        %v2017 = vld [vmem:[#allocation2 + $0x68] sm:$0xff]
        %v2018 = vld [vmem:[#allocation2 + $0x70] sm:$0xff]
        %v2019 = vld [vmem:[#allocation2 + $0x78] sm:$0xff]
        %v2020 = vld [vmem:[#allocation2 + $0x80] sm:$0xff]
        %v2021 = vld [vmem:[#allocation2 + $0x88] sm:$0xff]
        %v2022 = vld [vmem:[#allocation2 + $0x90] sm:$0xff]
        %v2023 = vld [vmem:[#allocation2 + $0x98] sm:$0xff]
        %v2024 = vld [vmem:[#allocation2 + $0xa0] sm:$0xff]
        %v2025 = vld [vmem:[#allocation2 + $0xa8] sm:$0xff]
        %v2026 = vld [vmem:[#allocation2 + $0xb0] sm:$0xff]
        %v2027 = vld [vmem:[#allocation2 + $0xb8] sm:$0xff]
        %v2028 = vld [vmem:[#allocation2 + $0xc0] sm:$0xff]
        %v2029 = vld [vmem:[#allocation2 + $0xc8] sm:$0xff]
        %v2030 = vld [vmem:[#allocation2 + $0xd0] sm:$0xff]
        %v2031 = vld [vmem:[#allocation2 + $0xd8] sm:$0xff]
        %v2032 = vld [vmem:[#allocation2 + $0xe0] sm:$0xff]
        %v2033 = vld [vmem:[#allocation2 + $0xe8] sm:$0xff]
        %v2034 = vld [vmem:[#allocation2 + $0xf0] sm:$0xff]
        %v2035 = vld [vmem:[#allocation2 + $0xf8] sm:$0xff]
        %v2036 = vld [vmem:[#allocation2 + $0x100] sm:$0xff]
        %v2037 = vld [vmem:[#allocation2 + $0x108] sm:$0xff]
        %v2038 = vld [vmem:[#allocation2 + $0x110] sm:$0xff]
        %v2039 = vld [vmem:[#allocation2 + $0x118] sm:$0xff]
        %v2040 = vld [vmem:[#allocation2 + $0x120] sm:$0xff]
        %v2041 = vld [vmem:[#allocation2 + $0x128] sm:$0xff]
        %v2042 = vld [vmem:[#allocation2 + $0x130] sm:$0xff]
        %v2043 = vld [vmem:[#allocation2 + $0x138] sm:$0xff]
        %v2044 = vld [vmem:[#allocation2 + $0x140] sm:$0xff]
        %v2045 = vld [vmem:[#allocation2 + $0x148] sm:$0xff]
        %v2046 = vld [vmem:[#allocation2 + $0x150] sm:$0xff]
        %v2047 = vld [vmem:[#allocation2 + $0x158] sm:$0xff]
        %v2048 = vld [vmem:[#allocation2 + $0x160] sm:$0xff]
        %v2049 = vld [vmem:[#allocation2 + $0x168] sm:$0xff]
        %v2050 = vld [vmem:[#allocation2 + $0x170] sm:$0xff]
        %v2051 = vld [vmem:[#allocation2 + $0x178] sm:$0xff]
        %v2052 = vld [vmem:[#allocation2 + $0x180] sm:$0xff]
        %v2053 = vld [vmem:[#allocation2 + $0x188] sm:$0xff]
        %v2054 = vld [vmem:[#allocation2 + $0x190] sm:$0xff]
        %v2055 = vld [vmem:[#allocation2 + $0x198] sm:$0xff]
        %v2056 = vld [vmem:[#allocation2 + $0x1a0] sm:$0xff]
        %v2057 = vld [vmem:[#allocation2 + $0x1a8] sm:$0xff]
        %v2058 = vld [vmem:[#allocation2 + $0x1b0] sm:$0xff]
        %v2059 = vld [vmem:[#allocation2 + $0x1b8] sm:$0xff]
        %v2060 = vadd.f32 %v2004, %v1866
        %v2061 = vadd.f32 %v2005, %v1868
        %v2062 = vadd.f32 %v2006, %v1870
        %v2063 = vadd.f32 %v2007, %v1872
        %v2064 = vadd.f32 %v2008, %v1876
        %v2065 = vadd.f32 %v2009, %v1878
        %v2066 = vadd.f32 %v2010, %v1880
        %v2067 = vadd.f32 %v2011, %v1882
        %v2068 = vadd.f32 %v2012, %v1886
        %v2069 = vadd.f32 %v2013, %v1888
        %v2070 = vadd.f32 %v2014, %v1890
        %v2071 = vadd.f32 %v2015, %v1892
        %v2072 = vadd.f32 %v2016, %v1896
        %v2073 = vadd.f32 %v2017, %v1898
        %v2074 = vadd.f32 %v2018, %v1900
        %v2075 = vadd.f32 %v2019, %v1902
        %v2076 = vadd.f32 %v2020, %v1906
        %v2077 = vadd.f32 %v2021, %v1908
        %v2078 = vadd.f32 %v2022, %v1910
        %v2079 = vadd.f32 %v2023, %v1912
        %v2080 = vadd.f32 %v2024, %v1916
        %v2081 = vadd.f32 %v2025, %v1918
        %v2082 = vadd.f32 %v2026, %v1920
        %v2083 = vadd.f32 %v2027, %v1922
        %v2084 = vadd.f32 %v2028, %v1926
        %v2085 = vadd.f32 %v2029, %v1928
        %v2086 = vadd.f32 %v2030, %v1930
        %v2087 = vadd.f32 %v2031, %v1932
        %v2088 = vadd.f32 %v2032, %v1936
        %v2089 = vadd.f32 %v2033, %v1938
        %v2090 = vadd.f32 %v2034, %v1940
        %v2091 = vadd.f32 %v2035, %v1942
        %v2092 = vadd.f32 %v2036, %v1946
        %v2093 = vadd.f32 %v2037, %v1948
        %v2094 = vadd.f32 %v2038, %v1950
        %v2095 = vadd.f32 %v2039, %v1952
        %v2096 = vadd.f32 %v2040, %v1956
        %v2097 = vadd.f32 %v2041, %v1958
        %v2098 = vadd.f32 %v2042, %v1960
        %v2099 = vadd.f32 %v2043, %v1962
        %v2100 = vadd.f32 %v2044, %v1966
        %v2101 = vadd.f32 %v2045, %v1968
        %v2102 = vadd.f32 %v2046, %v1970
        %v2103 = vadd.f32 %v2047, %v1972
        %v2104 = vadd.f32 %v2048, %v1976
        %v2105 = vadd.f32 %v2049, %v1978
        %v2106 = vadd.f32 %v2050, %v1980
        %v2107 = vadd.f32 %v2051, %v1982
        %v2108 = vadd.f32 %v2052, %v1986
        %v2109 = vadd.f32 %v2053, %v1988
        %v2110 = vadd.f32 %v2054, %v1990
        %v2111 = vadd.f32 %v2055, %v1992
        %v2112 = vadd.f32 %v2056, %v1996
        %v2113 = vadd.f32 %v2057, %v1998
        %v2114 = vadd.f32 %v2058, %v2000
        %v2115 = vadd.f32 %v2059, %v2002
        %2116 = vst [vmem:[#allocation2] sm:$0xff] %v2060
        %2117 = vst [vmem:[#allocation2 + $0x8] sm:$0xff] %v2061
        %2118 = vst [vmem:[#allocation2 + $0x10] sm:$0xff] %v2062
        %2119 = vst [vmem:[#allocation2 + $0x18] sm:$0xff] %v2063
        %2120 = vst [vmem:[#allocation2 + $0x20] sm:$0xff] %v2064
        %2121 = vst [vmem:[#allocation2 + $0x28] sm:$0xff] %v2065
        %2122 = vst [vmem:[#allocation2 + $0x30] sm:$0xff] %v2066
        %2123 = vst [vmem:[#allocation2 + $0x38] sm:$0xff] %v2067
        %2124 = vst [vmem:[#allocation2 + $0x40] sm:$0xff] %v2068
        %2125 = vst [vmem:[#allocation2 + $0x48] sm:$0xff] %v2069
        %2126 = vst [vmem:[#allocation2 + $0x50] sm:$0xff] %v2070
        %2127 = vst [vmem:[#allocation2 + $0x58] sm:$0xff] %v2071
        %2128 = vst [vmem:[#allocation2 + $0x60] sm:$0xff] %v2072
        %2129 = vst [vmem:[#allocation2 + $0x68] sm:$0xff] %v2073
        %2130 = vst [vmem:[#allocation2 + $0x70] sm:$0xff] %v2074
        %2131 = vst [vmem:[#allocation2 + $0x78] sm:$0xff] %v2075
        %2132 = vst [vmem:[#allocation2 + $0x80] sm:$0xff] %v2076
        %2133 = vst [vmem:[#allocation2 + $0x88] sm:$0xff] %v2077
        %2134 = vst [vmem:[#allocation2 + $0x90] sm:$0xff] %v2078
        %2135 = vst [vmem:[#allocation2 + $0x98] sm:$0xff] %v2079
        %2136 = vst [vmem:[#allocation2 + $0xa0] sm:$0xff] %v2080
        %2137 = vst [vmem:[#allocation2 + $0xa8] sm:$0xff] %v2081
        %2138 = vst [vmem:[#allocation2 + $0xb0] sm:$0xff] %v2082
        %2139 = vst [vmem:[#allocation2 + $0xb8] sm:$0xff] %v2083
        %2140 = vst [vmem:[#allocation2 + $0xc0] sm:$0xff] %v2084
        %2141 = vst [vmem:[#allocation2 + $0xc8] sm:$0xff] %v2085
        %2142 = vst [vmem:[#allocation2 + $0xd0] sm:$0xff] %v2086
        %2143 = vst [vmem:[#allocation2 + $0xd8] sm:$0xff] %v2087
        %2144 = vst [vmem:[#allocation2 + $0xe0] sm:$0xff] %v2088
        %2145 = vst [vmem:[#allocation2 + $0xe8] sm:$0xff] %v2089
        %2146 = vst [vmem:[#allocation2 + $0xf0] sm:$0xff] %v2090
        %2147 = vst [vmem:[#allocation2 + $0xf8] sm:$0xff] %v2091
        %2148 = vst [vmem:[#allocation2 + $0x100] sm:$0xff] %v2092
        %2149 = vst [vmem:[#allocation2 + $0x108] sm:$0xff] %v2093
        %2150 = vst [vmem:[#allocation2 + $0x110] sm:$0xff] %v2094
        %2151 = vst [vmem:[#allocation2 + $0x118] sm:$0xff] %v2095
        %2152 = vst [vmem:[#allocation2 + $0x120] sm:$0xff] %v2096
        %2153 = vst [vmem:[#allocation2 + $0x128] sm:$0xff] %v2097
        %2154 = vst [vmem:[#allocation2 + $0x130] sm:$0xff] %v2098
        %2155 = vst [vmem:[#allocation2 + $0x138] sm:$0xff] %v2099
        %2156 = vst [vmem:[#allocation2 + $0x140] sm:$0xff] %v2100
        %2157 = vst [vmem:[#allocation2 + $0x148] sm:$0xff] %v2101
        %2158 = vst [vmem:[#allocation2 + $0x150] sm:$0xff] %v2102
        %2159 = vst [vmem:[#allocation2 + $0x158] sm:$0xff] %v2103
        %2160 = vst [vmem:[#allocation2 + $0x160] sm:$0xff] %v2104
        %2161 = vst [vmem:[#allocation2 + $0x168] sm:$0xff] %v2105
        %2162 = vst [vmem:[#allocation2 + $0x170] sm:$0xff] %v2106
        %2163 = vst [vmem:[#allocation2 + $0x178] sm:$0xff] %v2107
        %2164 = vst [vmem:[#allocation2 + $0x180] sm:$0xff] %v2108
        %2165 = vst [vmem:[#allocation2 + $0x188] sm:$0xff] %v2109
        %2166 = vst [vmem:[#allocation2 + $0x190] sm:$0xff] %v2110
        %2167 = vst [vmem:[#allocation2 + $0x198] sm:$0xff] %v2111
        %2168 = vst [vmem:[#allocation2 + $0x1a0] sm:$0xff] %v2112
        %2169 = vst [vmem:[#allocation2 + $0x1a8] sm:$0xff] %v2113
        %2170 = vst [vmem:[#allocation2 + $0x1b0] sm:$0xff] %v2114
        %2171 = vst [vmem:[#allocation2 + $0x1b8] sm:$0xff] %v2115
        %s2172 = scalar_lea.vmem [#allocation5], 128
        %v2173 = vld [vmem:[%s2172] sm:$0xff]
        %v2174 = vld [vmem:[%s2172 + $0x8] sm:$0xff]
        %v2175 = vld [vmem:[%s2172 + $0x10] sm:$0xff]
        %v2176 = vld [vmem:[%s2172 + $0x18] sm:$0xff]
        %v2178 = vunpack.c.l.b16 %v637
        %v2179 = vpack.c.b16 %v2178, %v1806
        %v2184 = vunpack.c.l.b16 %v2173
        %v2185 = vunpack.c.h.b16 %v2173
        %v2186 = vunpack.c.l.b16 %v2174
        %v2187 = vunpack.c.h.b16 %v2174
        %v2188 = vunpack.c.l.b16 %v2175
        %v2189 = vunpack.c.h.b16 %v2175
        %v2190 = vunpack.c.l.b16 %v2176
        %v2191 = vunpack.c.h.b16 %v2176
        %v2192 = vpack.c.b16 %v2186, %v2184
        %v2193 = vpack.c.b16 %v2187, %v2185
        %v2194 = vpack.c.b16 %v2190, %v2188
        %v2195 = vpack.c.b16 %v2191, %v2189
        %v2201 = vsel %vm732, %v2179, 0
        %2203 = vmatprep.subr.bf16.mxu0 %v2193
        %2204 = vmatpush1.bf16.msra.mxu0 %v2192
        %2205 = vmatprep.subr.bf16.mxu0 %v2195
        %2206 = vmatpush1.bf16.msra.mxu0 %v2194
        %2207 = vmatprep.subr.bf16.mxu0 0
        %2208 = vmatpush1.bf16.msra.mxu0 0
        %2209 = vmatprep.subr.bf16.mxu0 0
        %2210 = vmatpush1.bf16.msra.mxu0 0
        %2211 = vmatprep.subr.bf16.mxu0 0
        %2212 = vmatpush1.bf16.msra.mxu0 0
        %2213 = vmatprep.subr.bf16.mxu0 0
        %2214 = vmatpush1.bf16.msra.mxu0 0
        %2215 = vmatprep.subr.bf16.mxu0 0
        %2216 = vmatpush1.bf16.msra.mxu0 0
        %2217 = vmatprep.subr.bf16.mxu0 0
        %2218 = vmatpush1.bf16.msra.mxu0 0
        %2219 = vmatprep.subr.bf16.mxu0 0
        %2220 = vmatpush1.bf16.msra.mxu0 0
        %2221 = vmatprep.subr.bf16.mxu0 0
        %2222 = vmatpush1.bf16.msra.mxu0 0
        %2223 = vmatprep.subr.bf16.mxu0 0
        %2224 = vmatpush1.bf16.msra.mxu0 0
        %2225 = vmatprep.subr.bf16.mxu0 0
        %2226 = vmatpush1.bf16.msra.mxu0 0
        %2227 = vmatprep.subr.bf16.mxu0 0
        %2228 = vmatpush1.bf16.msra.mxu0 0
        %2229 = vmatprep.subr.bf16.mxu0 0
        %2230 = vmatpush1.bf16.msra.mxu0 0
        %2231 = vmatprep.subr.bf16.mxu0 0
        %2232 = vmatpush1.bf16.msra.mxu0 0
        %2233 = vmatprep.subr.bf16.mxu0 0
        %2234 = vmatpush1.bf16.msra.mxu0 0
        %2235 = vmatprep.mubr.bf16.mxu0 0
        %2236 = vmatmul.mubr.bf16.gmra.mrb[0].mxu0 %v740
        %v2237 = vpop.f32.mrb[0].mxu0
        %v2238 = vadd.f32 0.0, %v2237
        %v2239 = vpop.f32.mrb[0].mxu0
        %v2240 = vadd.f32 0.0, %v2239
        %v2241 = vpop.f32.mrb[0].mxu0
        %v2242 = vadd.f32 0.0, %v2241
        %v2243 = vpop.f32.mrb[0].mxu0
        %v2244 = vadd.f32 0.0, %v2243
        %2245 = vmatprep.mubr.bf16.mxu0 0
        %2246 = vmatmul.mubr.bf16.gmra.mrb[0].mxu0 %v743
        %v2247 = vpop.f32.mrb[0].mxu0
        %v2248 = vadd.f32 0.0, %v2247
        %v2249 = vpop.f32.mrb[0].mxu0
        %v2250 = vadd.f32 0.0, %v2249
        %v2251 = vpop.f32.mrb[0].mxu0
        %v2252 = vadd.f32 0.0, %v2251
        %v2253 = vpop.f32.mrb[0].mxu0
        %v2254 = vadd.f32 0.0, %v2253
        %2255 = vmatprep.mubr.bf16.mxu0 0
        %2256 = vmatmul.mubr.bf16.gmra.mrb[0].mxu0 %v746
        %v2257 = vpop.f32.mrb[0].mxu0
        %v2258 = vadd.f32 0.0, %v2257
        %v2259 = vpop.f32.mrb[0].mxu0
        %v2260 = vadd.f32 0.0, %v2259
        %v2261 = vpop.f32.mrb[0].mxu0
        %v2262 = vadd.f32 0.0, %v2261
        %v2263 = vpop.f32.mrb[0].mxu0
        %v2264 = vadd.f32 0.0, %v2263
        %2265 = vmatprep.mubr.bf16.mxu0 0
        %2266 = vmatmul.mubr.bf16.gmra.mrb[0].mxu0 %v749
        %v2267 = vpop.f32.mrb[0].mxu0
        %v2268 = vadd.f32 0.0, %v2267
        %v2269 = vpop.f32.mrb[0].mxu0
        %v2270 = vadd.f32 0.0, %v2269
        %v2271 = vpop.f32.mrb[0].mxu0
        %v2272 = vadd.f32 0.0, %v2271
        %v2273 = vpop.f32.mrb[0].mxu0
        %v2274 = vadd.f32 0.0, %v2273
        %2275 = vmatprep.mubr.bf16.mxu0 0
        %2276 = vmatmul.mubr.bf16.gmra.mrb[0].mxu0 %v752
        %v2277 = vpop.f32.mrb[0].mxu0
        %v2278 = vadd.f32 0.0, %v2277
        %v2279 = vpop.f32.mrb[0].mxu0
        %v2280 = vadd.f32 0.0, %v2279
        %v2281 = vpop.f32.mrb[0].mxu0
        %v2282 = vadd.f32 0.0, %v2281
        %v2283 = vpop.f32.mrb[0].mxu0
        %v2284 = vadd.f32 0.0, %v2283
        %2285 = vmatprep.mubr.bf16.mxu0 0
        %2286 = vmatmul.mubr.bf16.gmra.mrb[0].mxu0 %v755
        %v2287 = vpop.f32.mrb[0].mxu0
        %v2288 = vadd.f32 0.0, %v2287
        %v2289 = vpop.f32.mrb[0].mxu0
        %v2290 = vadd.f32 0.0, %v2289
        %v2291 = vpop.f32.mrb[0].mxu0
        %v2292 = vadd.f32 0.0, %v2291
        %v2293 = vpop.f32.mrb[0].mxu0
        %v2294 = vadd.f32 0.0, %v2293
        %2295 = vmatprep.mubr.bf16.mxu0 0
        %2296 = vmatmul.mubr.bf16.gmra.mrb[0].mxu0 %v758
        %v2297 = vpop.f32.mrb[0].mxu0
        %v2298 = vadd.f32 0.0, %v2297
        %v2299 = vpop.f32.mrb[0].mxu0
        %v2300 = vadd.f32 0.0, %v2299
        %v2301 = vpop.f32.mrb[0].mxu0
        %v2302 = vadd.f32 0.0, %v2301
        %v2303 = vpop.f32.mrb[0].mxu0
        %v2304 = vadd.f32 0.0, %v2303
        %2305 = vmatprep.mubr.bf16.mxu0 0
        %2306 = vmatmul.mubr.bf16.gmra.mrb[0].mxu0 %v761
        %v2307 = vpop.f32.mrb[0].mxu0
        %v2308 = vadd.f32 0.0, %v2307
        %v2309 = vpop.f32.mrb[0].mxu0
        %v2310 = vadd.f32 0.0, %v2309
        %v2311 = vpop.f32.mrb[0].mxu0
        %v2312 = vadd.f32 0.0, %v2311
        %v2313 = vpop.f32.mrb[0].mxu0
        %v2314 = vadd.f32 0.0, %v2313
        %2315 = vmatprep.mubr.bf16.mxu0 0
        %2316 = vmatmul.mubr.bf16.gmra.mrb[0].mxu0 %v764
        %v2317 = vpop.f32.mrb[0].mxu0
        %v2318 = vadd.f32 0.0, %v2317
        %v2319 = vpop.f32.mrb[0].mxu0
        %v2320 = vadd.f32 0.0, %v2319
        %v2321 = vpop.f32.mrb[0].mxu0
        %v2322 = vadd.f32 0.0, %v2321
        %v2323 = vpop.f32.mrb[0].mxu0
        %v2324 = vadd.f32 0.0, %v2323
        %2325 = vmatprep.mubr.bf16.mxu0 0
        %2326 = vmatmul.mubr.bf16.gmra.mrb[0].mxu0 %v767
        %v2327 = vpop.f32.mrb[0].mxu0
        %v2328 = vadd.f32 0.0, %v2327
        %v2329 = vpop.f32.mrb[0].mxu0
        %v2330 = vadd.f32 0.0, %v2329
        %v2331 = vpop.f32.mrb[0].mxu0
        %v2332 = vadd.f32 0.0, %v2331
        %v2333 = vpop.f32.mrb[0].mxu0
        %v2334 = vadd.f32 0.0, %v2333
        %2335 = vmatprep.mubr.bf16.mxu0 0
        %2336 = vmatmul.mubr.bf16.gmra.mrb[0].mxu0 %v770
        %v2337 = vpop.f32.mrb[0].mxu0
        %v2338 = vadd.f32 0.0, %v2337
        %v2339 = vpop.f32.mrb[0].mxu0
        %v2340 = vadd.f32 0.0, %v2339
        %v2341 = vpop.f32.mrb[0].mxu0
        %v2342 = vadd.f32 0.0, %v2341
        %v2343 = vpop.f32.mrb[0].mxu0
        %v2344 = vadd.f32 0.0, %v2343
        %2345 = vmatprep.mubr.bf16.mxu0 0
        %2346 = vmatmul.mubr.bf16.gmra.mrb[0].mxu0 %v773
        %v2347 = vpop.f32.mrb[0].mxu0
        %v2348 = vadd.f32 0.0, %v2347
        %v2349 = vpop.f32.mrb[0].mxu0
        %v2350 = vadd.f32 0.0, %v2349
        %v2351 = vpop.f32.mrb[0].mxu0
        %v2352 = vadd.f32 0.0, %v2351
        %v2353 = vpop.f32.mrb[0].mxu0
        %v2354 = vadd.f32 0.0, %v2353
        %2355 = vmatprep.mubr.bf16.mxu0 0
        %2356 = vmatmul.mubr.bf16.gmra.mrb[0].mxu0 %v1457
        %v2357 = vpop.f32.mrb[0].mxu0
        %v2358 = vadd.f32 0.0, %v2357
        %v2359 = vpop.f32.mrb[0].mxu0
        %v2360 = vadd.f32 0.0, %v2359
        %v2361 = vpop.f32.mrb[0].mxu0
        %v2362 = vadd.f32 0.0, %v2361
        %v2363 = vpop.f32.mrb[0].mxu0
        %v2364 = vadd.f32 0.0, %v2363
        %2365 = vmatprep.mubr.bf16.mxu0 0
        %2366 = vmatmul.mubr.bf16.gmra.mrb[0].mxu0 %v2201
        %v2367 = vpop.f32.mrb[0].mxu0
        %v2368 = vadd.f32 0.0, %v2367
        %v2369 = vpop.f32.mrb[0].mxu0
        %v2370 = vadd.f32 0.0, %v2369
        %v2371 = vpop.f32.mrb[0].mxu0
        %v2372 = vadd.f32 0.0, %v2371
        %v2373 = vpop.f32.mrb[0].mxu0
        %v2374 = vadd.f32 0.0, %v2373
        %2375 = vdwg.mxu0
        %v2376 = vld [vmem:[#allocation2] sm:$0xff]
        %v2377 = vld [vmem:[#allocation2 + $0x8] sm:$0xff]
        %v2378 = vld [vmem:[#allocation2 + $0x10] sm:$0xff]
        %v2379 = vld [vmem:[#allocation2 + $0x18] sm:$0xff]
        %v2380 = vld [vmem:[#allocation2 + $0x20] sm:$0xff]
        %v2381 = vld [vmem:[#allocation2 + $0x28] sm:$0xff]
        %v2382 = vld [vmem:[#allocation2 + $0x30] sm:$0xff]
        %v2383 = vld [vmem:[#allocation2 + $0x38] sm:$0xff]
        %v2384 = vld [vmem:[#allocation2 + $0x40] sm:$0xff]
        %v2385 = vld [vmem:[#allocation2 + $0x48] sm:$0xff]
        %v2386 = vld [vmem:[#allocation2 + $0x50] sm:$0xff]
        %v2387 = vld [vmem:[#allocation2 + $0x58] sm:$0xff]
        %v2388 = vld [vmem:[#allocation2 + $0x60] sm:$0xff]
        %v2389 = vld [vmem:[#allocation2 + $0x68] sm:$0xff]
        %v2390 = vld [vmem:[#allocation2 + $0x70] sm:$0xff]
        %v2391 = vld [vmem:[#allocation2 + $0x78] sm:$0xff]
        %v2392 = vld [vmem:[#allocation2 + $0x80] sm:$0xff]
        %v2393 = vld [vmem:[#allocation2 + $0x88] sm:$0xff]
        %v2394 = vld [vmem:[#allocation2 + $0x90] sm:$0xff]
        %v2395 = vld [vmem:[#allocation2 + $0x98] sm:$0xff]
        %v2396 = vld [vmem:[#allocation2 + $0xa0] sm:$0xff]
        %v2397 = vld [vmem:[#allocation2 + $0xa8] sm:$0xff]
        %v2398 = vld [vmem:[#allocation2 + $0xb0] sm:$0xff]
        %v2399 = vld [vmem:[#allocation2 + $0xb8] sm:$0xff]
        %v2400 = vld [vmem:[#allocation2 + $0xc0] sm:$0xff]
        %v2401 = vld [vmem:[#allocation2 + $0xc8] sm:$0xff]
        %v2402 = vld [vmem:[#allocation2 + $0xd0] sm:$0xff]
        %v2403 = vld [vmem:[#allocation2 + $0xd8] sm:$0xff]
        %v2404 = vld [vmem:[#allocation2 + $0xe0] sm:$0xff]
        %v2405 = vld [vmem:[#allocation2 + $0xe8] sm:$0xff]
        %v2406 = vld [vmem:[#allocation2 + $0xf0] sm:$0xff]
        %v2407 = vld [vmem:[#allocation2 + $0xf8] sm:$0xff]
        %v2408 = vld [vmem:[#allocation2 + $0x100] sm:$0xff]
        %v2409 = vld [vmem:[#allocation2 + $0x108] sm:$0xff]
        %v2410 = vld [vmem:[#allocation2 + $0x110] sm:$0xff]
        %v2411 = vld [vmem:[#allocation2 + $0x118] sm:$0xff]
        %v2412 = vld [vmem:[#allocation2 + $0x120] sm:$0xff]
        %v2413 = vld [vmem:[#allocation2 + $0x128] sm:$0xff]
        %v2414 = vld [vmem:[#allocation2 + $0x130] sm:$0xff]
        %v2415 = vld [vmem:[#allocation2 + $0x138] sm:$0xff]
        %v2416 = vld [vmem:[#allocation2 + $0x140] sm:$0xff]
        %v2417 = vld [vmem:[#allocation2 + $0x148] sm:$0xff]
        %v2418 = vld [vmem:[#allocation2 + $0x150] sm:$0xff]
        %v2419 = vld [vmem:[#allocation2 + $0x158] sm:$0xff]
        %v2420 = vld [vmem:[#allocation2 + $0x160] sm:$0xff]
        %v2421 = vld [vmem:[#allocation2 + $0x168] sm:$0xff]
        %v2422 = vld [vmem:[#allocation2 + $0x170] sm:$0xff]
        %v2423 = vld [vmem:[#allocation2 + $0x178] sm:$0xff]
        %v2424 = vld [vmem:[#allocation2 + $0x180] sm:$0xff]
        %v2425 = vld [vmem:[#allocation2 + $0x188] sm:$0xff]
        %v2426 = vld [vmem:[#allocation2 + $0x190] sm:$0xff]
        %v2427 = vld [vmem:[#allocation2 + $0x198] sm:$0xff]
        %v2428 = vld [vmem:[#allocation2 + $0x1a0] sm:$0xff]
        %v2429 = vld [vmem:[#allocation2 + $0x1a8] sm:$0xff]
        %v2430 = vld [vmem:[#allocation2 + $0x1b0] sm:$0xff]
        %v2431 = vld [vmem:[#allocation2 + $0x1b8] sm:$0xff]
        %v2432 = vadd.f32 %v2376, %v2238
        %v2433 = vadd.f32 %v2377, %v2240
        %v2434 = vadd.f32 %v2378, %v2242
        %v2435 = vadd.f32 %v2379, %v2244
        %v2436 = vadd.f32 %v2380, %v2248
        %v2437 = vadd.f32 %v2381, %v2250
        %v2438 = vadd.f32 %v2382, %v2252
        %v2439 = vadd.f32 %v2383, %v2254
        %v2440 = vadd.f32 %v2384, %v2258
        %v2441 = vadd.f32 %v2385, %v2260
        %v2442 = vadd.f32 %v2386, %v2262
        %v2443 = vadd.f32 %v2387, %v2264
        %v2444 = vadd.f32 %v2388, %v2268
        %v2445 = vadd.f32 %v2389, %v2270
        %v2446 = vadd.f32 %v2390, %v2272
        %v2447 = vadd.f32 %v2391, %v2274
        %v2448 = vadd.f32 %v2392, %v2278
        %v2449 = vadd.f32 %v2393, %v2280
        %v2450 = vadd.f32 %v2394, %v2282
        %v2451 = vadd.f32 %v2395, %v2284
        %v2452 = vadd.f32 %v2396, %v2288
        %v2453 = vadd.f32 %v2397, %v2290
        %v2454 = vadd.f32 %v2398, %v2292
        %v2455 = vadd.f32 %v2399, %v2294
        %v2456 = vadd.f32 %v2400, %v2298
        %v2457 = vadd.f32 %v2401, %v2300
        %v2458 = vadd.f32 %v2402, %v2302
        %v2459 = vadd.f32 %v2403, %v2304
        %v2460 = vadd.f32 %v2404, %v2308
        %v2461 = vadd.f32 %v2405, %v2310
        %v2462 = vadd.f32 %v2406, %v2312
        %v2463 = vadd.f32 %v2407, %v2314
        %v2464 = vadd.f32 %v2408, %v2318
        %v2465 = vadd.f32 %v2409, %v2320
        %v2466 = vadd.f32 %v2410, %v2322
        %v2467 = vadd.f32 %v2411, %v2324
        %v2468 = vadd.f32 %v2412, %v2328
        %v2469 = vadd.f32 %v2413, %v2330
        %v2470 = vadd.f32 %v2414, %v2332
        %v2471 = vadd.f32 %v2415, %v2334
        %v2472 = vadd.f32 %v2416, %v2338
        %v2473 = vadd.f32 %v2417, %v2340
        %v2474 = vadd.f32 %v2418, %v2342
        %v2475 = vadd.f32 %v2419, %v2344
        %v2476 = vadd.f32 %v2420, %v2348
        %v2477 = vadd.f32 %v2421, %v2350
        %v2478 = vadd.f32 %v2422, %v2352
        %v2479 = vadd.f32 %v2423, %v2354
        %v2480 = vadd.f32 %v2424, %v2358
        %v2481 = vadd.f32 %v2425, %v2360
        %v2482 = vadd.f32 %v2426, %v2362
        %v2483 = vadd.f32 %v2427, %v2364
        %v2484 = vadd.f32 %v2428, %v2368
        %v2485 = vadd.f32 %v2429, %v2370
        %v2486 = vadd.f32 %v2430, %v2372
        %v2487 = vadd.f32 %v2431, %v2374
        %2488 = vst [vmem:[#allocation2] sm:$0xff] %v2432
        %2489 = vst [vmem:[#allocation2 + $0x8] sm:$0xff] %v2433
        %2490 = vst [vmem:[#allocation2 + $0x10] sm:$0xff] %v2434
        %2491 = vst [vmem:[#allocation2 + $0x18] sm:$0xff] %v2435
        %2492 = vst [vmem:[#allocation2 + $0x20] sm:$0xff] %v2436
        %2493 = vst [vmem:[#allocation2 + $0x28] sm:$0xff] %v2437
        %2494 = vst [vmem:[#allocation2 + $0x30] sm:$0xff] %v2438
        %2495 = vst [vmem:[#allocation2 + $0x38] sm:$0xff] %v2439
        %2496 = vst [vmem:[#allocation2 + $0x40] sm:$0xff] %v2440
        %2497 = vst [vmem:[#allocation2 + $0x48] sm:$0xff] %v2441
        %2498 = vst [vmem:[#allocation2 + $0x50] sm:$0xff] %v2442
        %2499 = vst [vmem:[#allocation2 + $0x58] sm:$0xff] %v2443
        %2500 = vst [vmem:[#allocation2 + $0x60] sm:$0xff] %v2444
        %2501 = vst [vmem:[#allocation2 + $0x68] sm:$0xff] %v2445
        %2502 = vst [vmem:[#allocation2 + $0x70] sm:$0xff] %v2446
        %2503 = vst [vmem:[#allocation2 + $0x78] sm:$0xff] %v2447
        %2504 = vst [vmem:[#allocation2 + $0x80] sm:$0xff] %v2448
        %2505 = vst [vmem:[#allocation2 + $0x88] sm:$0xff] %v2449
        %2506 = vst [vmem:[#allocation2 + $0x90] sm:$0xff] %v2450
        %2507 = vst [vmem:[#allocation2 + $0x98] sm:$0xff] %v2451
        %2508 = vst [vmem:[#allocation2 + $0xa0] sm:$0xff] %v2452
        %2509 = vst [vmem:[#allocation2 + $0xa8] sm:$0xff] %v2453
        %2510 = vst [vmem:[#allocation2 + $0xb0] sm:$0xff] %v2454
        %2511 = vst [vmem:[#allocation2 + $0xb8] sm:$0xff] %v2455
        %2512 = vst [vmem:[#allocation2 + $0xc0] sm:$0xff] %v2456
        %2513 = vst [vmem:[#allocation2 + $0xc8] sm:$0xff] %v2457
        %2514 = vst [vmem:[#allocation2 + $0xd0] sm:$0xff] %v2458
        %2515 = vst [vmem:[#allocation2 + $0xd8] sm:$0xff] %v2459
        %2516 = vst [vmem:[#allocation2 + $0xe0] sm:$0xff] %v2460
        %2517 = vst [vmem:[#allocation2 + $0xe8] sm:$0xff] %v2461
        %2518 = vst [vmem:[#allocation2 + $0xf0] sm:$0xff] %v2462
        %2519 = vst [vmem:[#allocation2 + $0xf8] sm:$0xff] %v2463
        %2520 = vst [vmem:[#allocation2 + $0x100] sm:$0xff] %v2464
        %2521 = vst [vmem:[#allocation2 + $0x108] sm:$0xff] %v2465
        %2522 = vst [vmem:[#allocation2 + $0x110] sm:$0xff] %v2466
        %2523 = vst [vmem:[#allocation2 + $0x118] sm:$0xff] %v2467
        %2524 = vst [vmem:[#allocation2 + $0x120] sm:$0xff] %v2468
        %2525 = vst [vmem:[#allocation2 + $0x128] sm:$0xff] %v2469
        %2526 = vst [vmem:[#allocation2 + $0x130] sm:$0xff] %v2470
        %2527 = vst [vmem:[#allocation2 + $0x138] sm:$0xff] %v2471
        %2528 = vst [vmem:[#allocation2 + $0x140] sm:$0xff] %v2472
        %2529 = vst [vmem:[#allocation2 + $0x148] sm:$0xff] %v2473
        %2530 = vst [vmem:[#allocation2 + $0x150] sm:$0xff] %v2474
        %2531 = vst [vmem:[#allocation2 + $0x158] sm:$0xff] %v2475
        %2532 = vst [vmem:[#allocation2 + $0x160] sm:$0xff] %v2476
        %2533 = vst [vmem:[#allocation2 + $0x168] sm:$0xff] %v2477
        %2534 = vst [vmem:[#allocation2 + $0x170] sm:$0xff] %v2478
        %2535 = vst [vmem:[#allocation2 + $0x178] sm:$0xff] %v2479
        %2536 = vst [vmem:[#allocation2 + $0x180] sm:$0xff] %v2480
        %2537 = vst [vmem:[#allocation2 + $0x188] sm:$0xff] %v2481
        %2538 = vst [vmem:[#allocation2 + $0x190] sm:$0xff] %v2482
        %2539 = vst [vmem:[#allocation2 + $0x198] sm:$0xff] %v2483
        %2540 = vst [vmem:[#allocation2 + $0x1a0] sm:$0xff] %v2484
        %2541 = vst [vmem:[#allocation2 + $0x1a8] sm:$0xff] %v2485
        %2542 = vst [vmem:[#allocation2 + $0x1b0] sm:$0xff] %v2486
        %2543 = vst [vmem:[#allocation2 + $0x1b8] sm:$0xff] %v2487
        %v2544 = vld [vmem:[#allocation2] sm:$0xff]
        %v2545 = vld [vmem:[#allocation2 + $0x8] sm:$0xff]
        %v2546 = vld [vmem:[#allocation2 + $0x10] sm:$0xff]
        %v2547 = vld [vmem:[#allocation2 + $0x18] sm:$0xff]
        %v2548 = vld [vmem:[#allocation2 + $0x20] sm:$0xff]
        %v2549 = vld [vmem:[#allocation2 + $0x28] sm:$0xff]
        %v2550 = vld [vmem:[#allocation2 + $0x30] sm:$0xff]
        %v2551 = vld [vmem:[#allocation2 + $0x38] sm:$0xff]
        %v2552 = vld [vmem:[#allocation2 + $0x40] sm:$0xff]
        %v2553 = vld [vmem:[#allocation2 + $0x48] sm:$0xff]
        %v2554 = vld [vmem:[#allocation2 + $0x50] sm:$0xff]
        %v2555 = vld [vmem:[#allocation2 + $0x58] sm:$0xff]
        %v2556 = vld [vmem:[#allocation2 + $0x60] sm:$0xff]
        %v2557 = vld [vmem:[#allocation2 + $0x68] sm:$0xff]
        %v2558 = vld [vmem:[#allocation2 + $0x70] sm:$0xff]
        %v2559 = vld [vmem:[#allocation2 + $0x78] sm:$0xff]
        %v2560 = vld [vmem:[#allocation2 + $0x80] sm:$0xff]
        %v2561 = vld [vmem:[#allocation2 + $0x88] sm:$0xff]
        %v2562 = vld [vmem:[#allocation2 + $0x90] sm:$0xff]
        %v2563 = vld [vmem:[#allocation2 + $0x98] sm:$0xff]
        %v2564 = vld [vmem:[#allocation2 + $0xa0] sm:$0xff]
        %v2565 = vld [vmem:[#allocation2 + $0xa8] sm:$0xff]
        %v2566 = vld [vmem:[#allocation2 + $0xb0] sm:$0xff]
        %v2567 = vld [vmem:[#allocation2 + $0xb8] sm:$0xff]
        %v2568 = vld [vmem:[#allocation2 + $0xc0] sm:$0xff]
        %v2569 = vld [vmem:[#allocation2 + $0xc8] sm:$0xff]
        %v2570 = vld [vmem:[#allocation2 + $0xd0] sm:$0xff]
        %v2571 = vld [vmem:[#allocation2 + $0xd8] sm:$0xff]
        %v2572 = vld [vmem:[#allocation2 + $0xe0] sm:$0xff]
        %v2573 = vld [vmem:[#allocation2 + $0xe8] sm:$0xff]
        %v2574 = vld [vmem:[#allocation2 + $0xf0] sm:$0xff]
        %v2575 = vld [vmem:[#allocation2 + $0xf8] sm:$0xff]
        %v2576 = vld [vmem:[#allocation2 + $0x100] sm:$0xff]
        %v2577 = vld [vmem:[#allocation2 + $0x108] sm:$0xff]
        %v2578 = vld [vmem:[#allocation2 + $0x110] sm:$0xff]
        %v2579 = vld [vmem:[#allocation2 + $0x118] sm:$0xff]
        %v2580 = vld [vmem:[#allocation2 + $0x120] sm:$0xff]
        %v2581 = vld [vmem:[#allocation2 + $0x128] sm:$0xff]
        %v2582 = vld [vmem:[#allocation2 + $0x130] sm:$0xff]
        %v2583 = vld [vmem:[#allocation2 + $0x138] sm:$0xff]
        %v2584 = vld [vmem:[#allocation2 + $0x140] sm:$0xff]
        %v2585 = vld [vmem:[#allocation2 + $0x148] sm:$0xff]
        %v2586 = vld [vmem:[#allocation2 + $0x150] sm:$0xff]
        %v2587 = vld [vmem:[#allocation2 + $0x158] sm:$0xff]
        %v2588 = vld [vmem:[#allocation2 + $0x160] sm:$0xff]
        %v2589 = vld [vmem:[#allocation2 + $0x168] sm:$0xff]
        %v2590 = vld [vmem:[#allocation2 + $0x170] sm:$0xff]
        %v2591 = vld [vmem:[#allocation2 + $0x178] sm:$0xff]
        %v2592 = vld [vmem:[#allocation2 + $0x180] sm:$0xff]
        %v2593 = vld [vmem:[#allocation2 + $0x188] sm:$0xff]
        %v2594 = vld [vmem:[#allocation2 + $0x190] sm:$0xff]
        %v2595 = vld [vmem:[#allocation2 + $0x198] sm:$0xff]
        %v2596 = vld [vmem:[#allocation2 + $0x1a0] sm:$0xff]
        %v2597 = vld [vmem:[#allocation2 + $0x1a8] sm:$0xff]
        %v2598 = vld [vmem:[#allocation2 + $0x1b0] sm:$0xff]
        %v2599 = vld [vmem:[#allocation2 + $0x1b8] sm:$0xff]
        %v2600 = vmax.f32 %v2544, %v2545
        %v2601 = vmax.f32 %v2546, %v2547
        %v2602 = vmax.f32 %v2548, %v2549
        %v2603 = vmax.f32 %v2550, %v2551
        %v2604 = vmax.f32 %v2552, %v2553
        %v2605 = vmax.f32 %v2554, %v2555
        %v2606 = vmax.f32 %v2556, %v2557
        %v2607 = vmax.f32 %v2558, %v2559
        %v2608 = vmax.f32 %v2560, %v2561
        %v2609 = vmax.f32 %v2562, %v2563
        %v2610 = vmax.f32 %v2564, %v2565
        %v2611 = vmax.f32 %v2566, %v2567
        %v2612 = vmax.f32 %v2568, %v2569
        %v2613 = vmax.f32 %v2570, %v2571
        %v2614 = vmax.f32 %v2572, %v2573
        %v2615 = vmax.f32 %v2574, %v2575
        %v2616 = vmax.f32 %v2576, %v2577
        %v2617 = vmax.f32 %v2578, %v2579
        %v2618 = vmax.f32 %v2580, %v2581
        %v2619 = vmax.f32 %v2582, %v2583
        %v2620 = vmax.f32 %v2584, %v2585
        %v2621 = vmax.f32 %v2586, %v2587
        %v2622 = vmax.f32 %v2588, %v2589
        %v2623 = vmax.f32 %v2590, %v2591
        %v2624 = vmax.f32 %v2592, %v2593
        %v2625 = vmax.f32 %v2594, %v2595
        %v2626 = vmax.f32 %v2596, %v2597
        %v2627 = vmax.f32 %v2598, %v2599
        %v2628 = vld [vmem:[%s2] sm:$0x1]
        %v2630 = vlaneseq
        %v2631 = vshrl.u32 %v2630, 7
        %v2632 = vsub.s32 0, %v2631
        %v2633 = vrot.slane %v2628, %v2632
        %v2635 = vadd.f32 %v2600, %v2633
        %v2636 = vadd.f32 %v2601, %v2633
        %v2637 = vadd.f32 %v2602, %v2633
        %v2638 = vadd.f32 %v2603, %v2633
        %v2639 = vadd.f32 %v2604, %v2633
        %v2640 = vadd.f32 %v2605, %v2633
        %v2641 = vadd.f32 %v2606, %v2633
        %v2642 = vadd.f32 %v2607, %v2633
        %v2643 = vadd.f32 %v2608, %v2633
        %v2644 = vadd.f32 %v2609, %v2633
        %v2645 = vadd.f32 %v2610, %v2633
        %v2646 = vadd.f32 %v2611, %v2633
        %v2647 = vadd.f32 %v2612, %v2633
        %v2648 = vadd.f32 %v2613, %v2633
        %v2649 = vadd.f32 %v2614, %v2633
        %v2650 = vadd.f32 %v2615, %v2633
        %v2651 = vadd.f32 %v2616, %v2633
        %v2652 = vadd.f32 %v2617, %v2633
        %v2653 = vadd.f32 %v2618, %v2633
        %v2654 = vadd.f32 %v2619, %v2633
        %v2655 = vadd.f32 %v2620, %v2633
        %v2656 = vadd.f32 %v2621, %v2633
        %v2657 = vadd.f32 %v2622, %v2633
        %v2658 = vadd.f32 %v2623, %v2633
        %v2659 = vadd.f32 %v2624, %v2633
        %v2660 = vadd.f32 %v2625, %v2633
        %v2661 = vadd.f32 %v2626, %v2633
        %v2662 = vadd.f32 %v2627, %v2633
        %v2663 = vmax.f32 %v2635, 0.0
        %v2664 = vmax.f32 %v2636, 0.0
        %v2665 = vmax.f32 %v2637, 0.0
        %v2666 = vmax.f32 %v2638, 0.0
        %v2667 = vmax.f32 %v2639, 0.0
        %v2668 = vmax.f32 %v2640, 0.0
        %v2669 = vmax.f32 %v2641, 0.0
        %v2670 = vmax.f32 %v2642, 0.0
        %v2671 = vmax.f32 %v2643, 0.0
        %v2672 = vmax.f32 %v2644, 0.0
        %v2673 = vmax.f32 %v2645, 0.0
        %v2674 = vmax.f32 %v2646, 0.0
        %v2675 = vmax.f32 %v2647, 0.0
        %v2676 = vmax.f32 %v2648, 0.0
        %v2677 = vmax.f32 %v2649, 0.0
        %v2678 = vmax.f32 %v2650, 0.0
        %v2679 = vmax.f32 %v2651, 0.0
        %v2680 = vmax.f32 %v2652, 0.0
        %v2681 = vmax.f32 %v2653, 0.0
        %v2682 = vmax.f32 %v2654, 0.0
        %v2683 = vmax.f32 %v2655, 0.0
        %v2684 = vmax.f32 %v2656, 0.0
        %v2685 = vmax.f32 %v2657, 0.0
        %v2686 = vmax.f32 %v2658, 0.0
        %v2687 = vmax.f32 %v2659, 0.0
        %v2688 = vmax.f32 %v2660, 0.0
        %v2689 = vmax.f32 %v2661, 0.0
        %v2690 = vmax.f32 %v2662, 0.0
        %v2691 = vmax.f32 %v2663, %v2664
        %v2692 = vmax.f32 %v2665, %v2666
        %v2693 = vmax.f32 %v2667, %v2668
        %v2694 = vmax.f32 %v2669, %v2670
        %v2695 = vmax.f32 %v2671, %v2672
        %v2696 = vmax.f32 %v2673, %v2674
        %v2697 = vmax.f32 %v2675, %v2676
        %v2698 = vmax.f32 %v2677, %v2678
        %v2699 = vmax.f32 %v2679, %v2680
        %v2700 = vmax.f32 %v2681, %v2682
        %v2701 = vmax.f32 %v2683, %v2684
        %v2702 = vmax.f32 %v2685, %v2686
        %v2703 = vmax.f32 %v2687, %v2688
        %v2704 = vmax.f32 %v2689, %v2690
        %v2705 = vpack.c.bf16 %v2691, %v2691
        %v2706 = vpack.c.bf16 %v2692, %v2692
        %v2707 = vpack.c.bf16 %v2693, %v2693
        %v2708 = vpack.c.bf16 %v2694, %v2694
        %v2709 = vpack.c.bf16 %v2695, %v2695
        %v2710 = vpack.c.bf16 %v2696, %v2696
        %v2711 = vpack.c.bf16 %v2697, %v2697
        %v2712 = vpack.c.bf16 %v2698, %v2698
        %v2713 = vpack.c.bf16 %v2699, %v2699
        %v2714 = vpack.c.bf16 %v2700, %v2700
        %v2715 = vpack.c.bf16 %v2701, %v2701
        %v2716 = vpack.c.bf16 %v2702, %v2702
        %v2717 = vpack.c.bf16 %v2703, %v2703
        %v2718 = vpack.c.bf16 %v2704, %v2704
        %v2719 = vld [vmem:[%s3] sm:$0xff]
        %v2720 = vld [vmem:[%s3 + $0x8] sm:$0xff]
        %v2721 = vld [vmem:[%s3 + $0x10] sm:$0xff]
        %v2722 = vld [vmem:[%s3 + $0x18] sm:$0xff]
        %v2723 = vld [vmem:[%s3 + $0x20] sm:$0xff]
        %v2724 = vld [vmem:[%s3 + $0x28] sm:$0xff]
        %v2725 = vld [vmem:[%s3 + $0x30] sm:$0xff]
        %v2726 = vld [vmem:[%s3 + $0x38] sm:$0xff]
        %v2727 = vld [vmem:[%s3 + $0x40] sm:$0xff]
        %v2728 = vld [vmem:[%s3 + $0x48] sm:$0xff]
        %v2729 = vld [vmem:[%s3 + $0x50] sm:$0xff]
        %v2730 = vld [vmem:[%s3 + $0x58] sm:$0xff]
        %v2731 = vld [vmem:[%s3 + $0x60] sm:$0xff]
        %v2732 = vld [vmem:[%s3 + $0x68] sm:$0xff]
        %v2733 = vld [vmem:[%s3 + $0x70] sm:$0xff]
        %v2734 = vld [vmem:[%s3 + $0x78] sm:$0xff]
        %v2745 = vunpack.c.l.b16 %v2705
        %v2746 = vunpack.c.l.b16 %v2706
        %v2747 = vunpack.c.l.b16 %v2707
        %v2748 = vunpack.c.l.b16 %v2708
        %v2749 = vunpack.c.l.b16 %v2709
        %v2750 = vunpack.c.l.b16 %v2710
        %v2751 = vunpack.c.l.b16 %v2711
        %v2752 = vunpack.c.l.b16 %v2712
        %v2753 = vunpack.c.l.b16 %v2713
        %v2754 = vunpack.c.l.b16 %v2714
        %v2755 = vpack.c.b16 %v2746, %v2745
        %v2756 = vpack.c.b16 %v2748, %v2747
        %v2757 = vpack.c.b16 %v2750, %v2749
        %v2758 = vpack.c.b16 %v2752, %v2751
        %v2759 = vpack.c.b16 %v2754, %v2753
        %v2781 = vunpack.c.l.b16 %v2719
        %v2782 = vunpack.c.h.b16 %v2719
        %v2783 = vunpack.c.l.b16 %v2720
        %v2784 = vunpack.c.h.b16 %v2720
        %v2785 = vunpack.c.l.b16 %v2721
        %v2786 = vunpack.c.h.b16 %v2721
        %v2787 = vunpack.c.l.b16 %v2722
        %v2788 = vunpack.c.h.b16 %v2722
        %v2789 = vunpack.c.l.b16 %v2723
        %v2790 = vunpack.c.h.b16 %v2723
        %v2791 = vunpack.c.l.b16 %v2724
        %v2792 = vunpack.c.h.b16 %v2724
        %v2793 = vunpack.c.l.b16 %v2725
        %v2794 = vunpack.c.h.b16 %v2725
        %v2795 = vunpack.c.l.b16 %v2726
        %v2796 = vunpack.c.h.b16 %v2726
        %v2797 = vunpack.c.l.b16 %v2727
        %v2798 = vunpack.c.h.b16 %v2727
        %v2799 = vunpack.c.l.b16 %v2728
        %v2800 = vunpack.c.h.b16 %v2728
        %v2801 = vunpack.c.l.b16 %v2729
        %v2802 = vunpack.c.h.b16 %v2729
        %v2803 = vunpack.c.l.b16 %v2730
        %v2804 = vunpack.c.h.b16 %v2730
        %v2805 = vunpack.c.l.b16 %v2731
        %v2806 = vunpack.c.h.b16 %v2731
        %v2807 = vunpack.c.l.b16 %v2732
        %v2808 = vunpack.c.h.b16 %v2732
        %v2809 = vunpack.c.l.b16 %v2733
        %v2810 = vunpack.c.h.b16 %v2733
        %v2811 = vunpack.c.l.b16 %v2734
        %v2812 = vunpack.c.h.b16 %v2734
        %v2813 = vpack.c.b16 %v2783, %v2781
        %v2814 = vpack.c.b16 %v2784, %v2782
        %v2815 = vpack.c.b16 %v2787, %v2785
        %v2816 = vpack.c.b16 %v2788, %v2786
        %v2817 = vpack.c.b16 %v2791, %v2789
        %v2818 = vpack.c.b16 %v2792, %v2790
        %v2819 = vpack.c.b16 %v2795, %v2793
        %v2820 = vpack.c.b16 %v2796, %v2794
        %v2821 = vpack.c.b16 %v2799, %v2797
        %v2822 = vpack.c.b16 %v2800, %v2798
        %v2823 = vpack.c.b16 %v2803, %v2801
        %v2824 = vpack.c.b16 %v2804, %v2802
        %v2825 = vpack.c.b16 %v2807, %v2805
        %v2826 = vpack.c.b16 %v2808, %v2806
        %v2827 = vpack.c.b16 %v2811, %v2809
        %v2828 = vpack.c.b16 %v2812, %v2810
        %2845 = vmatprep.subr.bf16.mxu0 %v2814
        %2846 = vmatpush1.bf16.msra.mxu0 %v2813
        %2847 = vmatprep.subr.bf16.mxu0 %v2816
        %2848 = vmatpush1.bf16.msra.mxu0 %v2815
        %2849 = vmatprep.subr.bf16.mxu0 %v2818
        %2850 = vmatpush1.bf16.msra.mxu0 %v2817
        %2851 = vmatprep.subr.bf16.mxu0 %v2820
        %2852 = vmatpush1.bf16.msra.mxu0 %v2819
        %2853 = vmatprep.subr.bf16.mxu0 %v2822
        %2854 = vmatpush1.bf16.msra.mxu0 %v2821
        %2855 = vmatprep.subr.bf16.mxu0 %v2824
        %2856 = vmatpush1.bf16.msra.mxu0 %v2823
        %2857 = vmatprep.subr.bf16.mxu0 %v2826
        %2858 = vmatpush1.bf16.msra.mxu0 %v2825
        %2859 = vmatprep.subr.bf16.mxu0 %v2828
        %2860 = vmatpush1.bf16.msra.mxu0 %v2827
        %2861 = vmatprep.subr.bf16.mxu0 0
        %2862 = vmatpush1.bf16.msra.mxu0 0
        %2863 = vmatprep.subr.bf16.mxu0 0
        %2864 = vmatpush1.bf16.msra.mxu0 0
        %2865 = vmatprep.subr.bf16.mxu0 0
        %2866 = vmatpush1.bf16.msra.mxu0 0
        %2867 = vmatprep.subr.bf16.mxu0 0
        %2868 = vmatpush1.bf16.msra.mxu0 0
        %2869 = vmatprep.subr.bf16.mxu0 0
        %2870 = vmatpush1.bf16.msra.mxu0 0
        %2871 = vmatprep.subr.bf16.mxu0 0
        %2872 = vmatpush1.bf16.msra.mxu0 0
        %2873 = vmatprep.subr.bf16.mxu0 0
        %2874 = vmatpush1.bf16.msra.mxu0 0
        %2875 = vmatprep.subr.bf16.mxu0 0
        %2876 = vmatpush1.bf16.msra.mxu0 0
        %2877 = vmatprep.mubr.bf16.mxu0 0
        %2878 = vmatmul.mubr.bf16.gmra.mrb[0].mxu0 %v2755
        %v2879 = vpop.f32.mrb[0].mxu0
        %v2880 = vadd.f32 0.0, %v2879
        %v2881 = vpop.f32.mrb[0].mxu0
        %v2882 = vadd.f32 0.0, %v2881
        %v2883 = vpop.f32.mrb[0].mxu0
        %v2884 = vadd.f32 0.0, %v2883
        %v2885 = vpop.f32.mrb[0].mxu0
        %v2886 = vadd.f32 0.0, %v2885
        %2887 = vmatprep.mubr.bf16.mxu0 0
        %2888 = vmatmul.mubr.bf16.gmra.mrb[0].mxu0 %v2756
        %v2889 = vpop.f32.mrb[0].mxu0
        %v2890 = vadd.f32 0.0, %v2889
        %v2891 = vpop.f32.mrb[0].mxu0
        %v2892 = vadd.f32 0.0, %v2891
        %v2893 = vpop.f32.mrb[0].mxu0
        %v2894 = vadd.f32 0.0, %v2893
        %v2895 = vpop.f32.mrb[0].mxu0
        %v2896 = vadd.f32 0.0, %v2895
        %2897 = vmatprep.mubr.bf16.mxu0 0
        %2898 = vmatmul.mubr.bf16.gmra.mrb[0].mxu0 %v2757
        %v2899 = vpop.f32.mrb[0].mxu0
        %v2900 = vadd.f32 0.0, %v2899
        %v2901 = vpop.f32.mrb[0].mxu0
        %v2902 = vadd.f32 0.0, %v2901
        %v2903 = vpop.f32.mrb[0].mxu0
        %v2904 = vadd.f32 0.0, %v2903
        %v2905 = vpop.f32.mrb[0].mxu0
        %v2906 = vadd.f32 0.0, %v2905
        %2907 = vmatprep.mubr.bf16.mxu0 0
        %2908 = vmatmul.mubr.bf16.gmra.mrb[0].mxu0 %v2758
        %v2909 = vpop.f32.mrb[0].mxu0
        %v2910 = vadd.f32 0.0, %v2909
        %v2911 = vpop.f32.mrb[0].mxu0
        %v2912 = vadd.f32 0.0, %v2911
        %v2913 = vpop.f32.mrb[0].mxu0
        %v2914 = vadd.f32 0.0, %v2913
        %v2915 = vpop.f32.mrb[0].mxu0
        %v2916 = vadd.f32 0.0, %v2915
        %2917 = vmatprep.mubr.bf16.mxu0 0
        %2918 = vmatmul.mubr.bf16.gmra.mrb[0].mxu0 %v2759
        %v2919 = vpop.f32.mrb[0].mxu0
        %v2920 = vadd.f32 0.0, %v2919
        %v2921 = vpop.f32.mrb[0].mxu0
        %v2922 = vadd.f32 0.0, %v2921
        %v2923 = vpop.f32.mrb[0].mxu0
        %v2924 = vadd.f32 0.0, %v2923
        %v2925 = vpop.f32.mrb[0].mxu0
        %v2926 = vadd.f32 0.0, %v2925
        %2927 = vdwg.mxu0
        %2928 = vst [vmem:[#allocation3] sm:$0xff] %v2880
        %2929 = vst [vmem:[#allocation3 + $0x8] sm:$0xff] %v2882
        %2930 = vst [vmem:[#allocation3 + $0x10] sm:$0xff] %v2884
        %2931 = vst [vmem:[#allocation3 + $0x18] sm:$0xff] %v2886
        %2932 = vst [vmem:[#allocation3 + $0x20] sm:$0xff] %v2890
        %2933 = vst [vmem:[#allocation3 + $0x28] sm:$0xff] %v2892
        %2934 = vst [vmem:[#allocation3 + $0x30] sm:$0xff] %v2894
        %2935 = vst [vmem:[#allocation3 + $0x38] sm:$0xff] %v2896
        %2936 = vst [vmem:[#allocation3 + $0x40] sm:$0xff] %v2900
        %2937 = vst [vmem:[#allocation3 + $0x48] sm:$0xff] %v2902
        %2938 = vst [vmem:[#allocation3 + $0x50] sm:$0xff] %v2904
        %2939 = vst [vmem:[#allocation3 + $0x58] sm:$0xff] %v2906
        %2940 = vst [vmem:[#allocation3 + $0x60] sm:$0xff] %v2910
        %2941 = vst [vmem:[#allocation3 + $0x68] sm:$0xff] %v2912
        %2942 = vst [vmem:[#allocation3 + $0x70] sm:$0xff] %v2914
        %2943 = vst [vmem:[#allocation3 + $0x78] sm:$0xff] %v2916
        %2944 = vst [vmem:[#allocation3 + $0x80] sm:$0xff] %v2920
        %2945 = vst [vmem:[#allocation3 + $0x88] sm:$0xff] %v2922
        %2946 = vst [vmem:[#allocation3 + $0x90] sm:$0xff] %v2924
        %2947 = vst [vmem:[#allocation3 + $0x98] sm:$0xff] %v2926
        %s2948 = scalar_lea.vmem %s3, 128
        %v2949 = vld [vmem:[%s2948] sm:$0xff]
        %v2950 = vld [vmem:[%s2948 + $0x8] sm:$0xff]
        %v2951 = vld [vmem:[%s2948 + $0x10] sm:$0xff]
        %v2952 = vld [vmem:[%s2948 + $0x18] sm:$0xff]
        %v2953 = vld [vmem:[%s2948 + $0x20] sm:$0xff]
        %v2954 = vld [vmem:[%s2948 + $0x28] sm:$0xff]
        %v2955 = vld [vmem:[%s2948 + $0x30] sm:$0xff]
        %v2956 = vld [vmem:[%s2948 + $0x38] sm:$0xff]
        %v2957 = vld [vmem:[%s2948 + $0x40] sm:$0xff]
        %v2958 = vld [vmem:[%s2948 + $0x48] sm:$0xff]
        %v2959 = vld [vmem:[%s2948 + $0x50] sm:$0xff]
        %v2960 = vld [vmem:[%s2948 + $0x58] sm:$0xff]
        %v2961 = vld [vmem:[%s2948 + $0x60] sm:$0xff]
        %v2962 = vld [vmem:[%s2948 + $0x68] sm:$0xff]
        %v2963 = vld [vmem:[%s2948 + $0x70] sm:$0xff]
        %v2964 = vld [vmem:[%s2948 + $0x78] sm:$0xff]
        %v2966 = vunpack.c.l.b16 %v2715
        %v2967 = vpack.c.b16 %v2747, %v2746
        %v2968 = vpack.c.b16 %v2749, %v2748
        %v2969 = vpack.c.b16 %v2751, %v2750
        %v2970 = vpack.c.b16 %v2753, %v2752
        %v2971 = vpack.c.b16 %v2966, %v2754
        %v2993 = vunpack.c.l.b16 %v2949
        %v2994 = vunpack.c.h.b16 %v2949
        %v2995 = vunpack.c.l.b16 %v2950
        %v2996 = vunpack.c.h.b16 %v2950
        %v2997 = vunpack.c.l.b16 %v2951
        %v2998 = vunpack.c.h.b16 %v2951
        %v2999 = vunpack.c.l.b16 %v2952
        %v3000 = vunpack.c.h.b16 %v2952
        %v3001 = vunpack.c.l.b16 %v2953
        %v3002 = vunpack.c.h.b16 %v2953
        %v3003 = vunpack.c.l.b16 %v2954
        %v3004 = vunpack.c.h.b16 %v2954
        %v3005 = vunpack.c.l.b16 %v2955
        %v3006 = vunpack.c.h.b16 %v2955
        %v3007 = vunpack.c.l.b16 %v2956
        %v3008 = vunpack.c.h.b16 %v2956
        %v3009 = vunpack.c.l.b16 %v2957
        %v3010 = vunpack.c.h.b16 %v2957
        %v3011 = vunpack.c.l.b16 %v2958
        %v3012 = vunpack.c.h.b16 %v2958
        %v3013 = vunpack.c.l.b16 %v2959
        %v3014 = vunpack.c.h.b16 %v2959
        %v3015 = vunpack.c.l.b16 %v2960
        %v3016 = vunpack.c.h.b16 %v2960
        %v3017 = vunpack.c.l.b16 %v2961
        %v3018 = vunpack.c.h.b16 %v2961
        %v3019 = vunpack.c.l.b16 %v2962
        %v3020 = vunpack.c.h.b16 %v2962
        %v3021 = vunpack.c.l.b16 %v2963
        %v3022 = vunpack.c.h.b16 %v2963
        %v3023 = vunpack.c.l.b16 %v2964
        %v3024 = vunpack.c.h.b16 %v2964
        %v3025 = vpack.c.b16 %v2995, %v2993
        %v3026 = vpack.c.b16 %v2996, %v2994
        %v3027 = vpack.c.b16 %v2999, %v2997
        %v3028 = vpack.c.b16 %v3000, %v2998
        %v3029 = vpack.c.b16 %v3003, %v3001
        %v3030 = vpack.c.b16 %v3004, %v3002
        %v3031 = vpack.c.b16 %v3007, %v3005
        %v3032 = vpack.c.b16 %v3008, %v3006
        %v3033 = vpack.c.b16 %v3011, %v3009
        %v3034 = vpack.c.b16 %v3012, %v3010
        %v3035 = vpack.c.b16 %v3015, %v3013
        %v3036 = vpack.c.b16 %v3016, %v3014
        %v3037 = vpack.c.b16 %v3019, %v3017
        %v3038 = vpack.c.b16 %v3020, %v3018
        %v3039 = vpack.c.b16 %v3023, %v3021
        %v3040 = vpack.c.b16 %v3024, %v3022
        %3057 = vmatprep.subr.bf16.mxu0 %v3026
        %3058 = vmatpush1.bf16.msra.mxu0 %v3025
        %3059 = vmatprep.subr.bf16.mxu0 %v3028
        %3060 = vmatpush1.bf16.msra.mxu0 %v3027
        %3061 = vmatprep.subr.bf16.mxu0 %v3030
        %3062 = vmatpush1.bf16.msra.mxu0 %v3029
        %3063 = vmatprep.subr.bf16.mxu0 %v3032
        %3064 = vmatpush1.bf16.msra.mxu0 %v3031
        %3065 = vmatprep.subr.bf16.mxu0 %v3034
        %3066 = vmatpush1.bf16.msra.mxu0 %v3033
        %3067 = vmatprep.subr.bf16.mxu0 %v3036
        %3068 = vmatpush1.bf16.msra.mxu0 %v3035
        %3069 = vmatprep.subr.bf16.mxu0 %v3038
        %3070 = vmatpush1.bf16.msra.mxu0 %v3037
        %3071 = vmatprep.subr.bf16.mxu0 %v3040
        %3072 = vmatpush1.bf16.msra.mxu0 %v3039
        %3073 = vmatprep.subr.bf16.mxu0 0
        %3074 = vmatpush1.bf16.msra.mxu0 0
        %3075 = vmatprep.subr.bf16.mxu0 0
        %3076 = vmatpush1.bf16.msra.mxu0 0
        %3077 = vmatprep.subr.bf16.mxu0 0
        %3078 = vmatpush1.bf16.msra.mxu0 0
        %3079 = vmatprep.subr.bf16.mxu0 0
        %3080 = vmatpush1.bf16.msra.mxu0 0
        %3081 = vmatprep.subr.bf16.mxu0 0
        %3082 = vmatpush1.bf16.msra.mxu0 0
        %3083 = vmatprep.subr.bf16.mxu0 0
        %3084 = vmatpush1.bf16.msra.mxu0 0
        %3085 = vmatprep.subr.bf16.mxu0 0
        %3086 = vmatpush1.bf16.msra.mxu0 0
        %3087 = vmatprep.subr.bf16.mxu0 0
        %3088 = vmatpush1.bf16.msra.mxu0 0
        %3089 = vmatprep.mubr.bf16.mxu0 0
        %3090 = vmatmul.mubr.bf16.gmra.mrb[0].mxu0 %v2967
        %v3091 = vpop.f32.mrb[0].mxu0
        %v3092 = vadd.f32 0.0, %v3091
        %v3093 = vpop.f32.mrb[0].mxu0
        %v3094 = vadd.f32 0.0, %v3093
        %v3095 = vpop.f32.mrb[0].mxu0
        %v3096 = vadd.f32 0.0, %v3095
        %v3097 = vpop.f32.mrb[0].mxu0
        %v3098 = vadd.f32 0.0, %v3097
        %3099 = vmatprep.mubr.bf16.mxu0 0
        %3100 = vmatmul.mubr.bf16.gmra.mrb[0].mxu0 %v2968
        %v3101 = vpop.f32.mrb[0].mxu0
        %v3102 = vadd.f32 0.0, %v3101
        %v3103 = vpop.f32.mrb[0].mxu0
        %v3104 = vadd.f32 0.0, %v3103
        %v3105 = vpop.f32.mrb[0].mxu0
        %v3106 = vadd.f32 0.0, %v3105
        %v3107 = vpop.f32.mrb[0].mxu0
        %v3108 = vadd.f32 0.0, %v3107
        %3109 = vmatprep.mubr.bf16.mxu0 0
        %3110 = vmatmul.mubr.bf16.gmra.mrb[0].mxu0 %v2969
        %v3111 = vpop.f32.mrb[0].mxu0
        %v3112 = vadd.f32 0.0, %v3111
        %v3113 = vpop.f32.mrb[0].mxu0
        %v3114 = vadd.f32 0.0, %v3113
        %v3115 = vpop.f32.mrb[0].mxu0
        %v3116 = vadd.f32 0.0, %v3115
        %v3117 = vpop.f32.mrb[0].mxu0
        %v3118 = vadd.f32 0.0, %v3117
        %3119 = vmatprep.mubr.bf16.mxu0 0
        %3120 = vmatmul.mubr.bf16.gmra.mrb[0].mxu0 %v2970
        %v3121 = vpop.f32.mrb[0].mxu0
        %v3122 = vadd.f32 0.0, %v3121
        %v3123 = vpop.f32.mrb[0].mxu0
        %v3124 = vadd.f32 0.0, %v3123
        %v3125 = vpop.f32.mrb[0].mxu0
        %v3126 = vadd.f32 0.0, %v3125
        %v3127 = vpop.f32.mrb[0].mxu0
        %v3128 = vadd.f32 0.0, %v3127
        %3129 = vmatprep.mubr.bf16.mxu0 0
        %3130 = vmatmul.mubr.bf16.gmra.mrb[0].mxu0 %v2971
        %v3131 = vpop.f32.mrb[0].mxu0
        %v3132 = vadd.f32 0.0, %v3131
        %v3133 = vpop.f32.mrb[0].mxu0
        %v3134 = vadd.f32 0.0, %v3133
        %v3135 = vpop.f32.mrb[0].mxu0
        %v3136 = vadd.f32 0.0, %v3135
        %v3137 = vpop.f32.mrb[0].mxu0
        %v3138 = vadd.f32 0.0, %v3137
        %3139 = vdwg.mxu0
        %v3140 = vld [vmem:[#allocation3] sm:$0xff]
        %v3141 = vld [vmem:[#allocation3 + $0x8] sm:$0xff]
        %v3142 = vld [vmem:[#allocation3 + $0x10] sm:$0xff]
        %v3143 = vld [vmem:[#allocation3 + $0x18] sm:$0xff]
        %v3144 = vld [vmem:[#allocation3 + $0x20] sm:$0xff]
        %v3145 = vld [vmem:[#allocation3 + $0x28] sm:$0xff]
        %v3146 = vld [vmem:[#allocation3 + $0x30] sm:$0xff]
        %v3147 = vld [vmem:[#allocation3 + $0x38] sm:$0xff]
        %v3148 = vld [vmem:[#allocation3 + $0x40] sm:$0xff]
        %v3149 = vld [vmem:[#allocation3 + $0x48] sm:$0xff]
        %v3150 = vld [vmem:[#allocation3 + $0x50] sm:$0xff]
        %v3151 = vld [vmem:[#allocation3 + $0x58] sm:$0xff]
        %v3152 = vld [vmem:[#allocation3 + $0x60] sm:$0xff]
        %v3153 = vld [vmem:[#allocation3 + $0x68] sm:$0xff]
        %v3154 = vld [vmem:[#allocation3 + $0x70] sm:$0xff]
        %v3155 = vld [vmem:[#allocation3 + $0x78] sm:$0xff]
        %v3156 = vld [vmem:[#allocation3 + $0x80] sm:$0xff]
        %v3157 = vld [vmem:[#allocation3 + $0x88] sm:$0xff]
        %v3158 = vld [vmem:[#allocation3 + $0x90] sm:$0xff]
        %v3159 = vld [vmem:[#allocation3 + $0x98] sm:$0xff]
        %v3160 = vadd.f32 %v3140, %v3092
        %v3161 = vadd.f32 %v3141, %v3094
        %v3162 = vadd.f32 %v3142, %v3096
        %v3163 = vadd.f32 %v3143, %v3098
        %v3164 = vadd.f32 %v3144, %v3102
        %v3165 = vadd.f32 %v3145, %v3104
        %v3166 = vadd.f32 %v3146, %v3106
        %v3167 = vadd.f32 %v3147, %v3108
        %v3168 = vadd.f32 %v3148, %v3112
        %v3169 = vadd.f32 %v3149, %v3114
        %v3170 = vadd.f32 %v3150, %v3116
        %v3171 = vadd.f32 %v3151, %v3118
        %v3172 = vadd.f32 %v3152, %v3122
        %v3173 = vadd.f32 %v3153, %v3124
        %v3174 = vadd.f32 %v3154, %v3126
        %v3175 = vadd.f32 %v3155, %v3128
        %v3176 = vadd.f32 %v3156, %v3132
        %v3177 = vadd.f32 %v3157, %v3134
        %v3178 = vadd.f32 %v3158, %v3136
        %v3179 = vadd.f32 %v3159, %v3138
        %3180 = vst [vmem:[#allocation3] sm:$0xff] %v3160
        %3181 = vst [vmem:[#allocation3 + $0x8] sm:$0xff] %v3161
        %3182 = vst [vmem:[#allocation3 + $0x10] sm:$0xff] %v3162
        %3183 = vst [vmem:[#allocation3 + $0x18] sm:$0xff] %v3163
        %3184 = vst [vmem:[#allocation3 + $0x20] sm:$0xff] %v3164
        %3185 = vst [vmem:[#allocation3 + $0x28] sm:$0xff] %v3165
        %3186 = vst [vmem:[#allocation3 + $0x30] sm:$0xff] %v3166
        %3187 = vst [vmem:[#allocation3 + $0x38] sm:$0xff] %v3167
        %3188 = vst [vmem:[#allocation3 + $0x40] sm:$0xff] %v3168
        %3189 = vst [vmem:[#allocation3 + $0x48] sm:$0xff] %v3169
        %3190 = vst [vmem:[#allocation3 + $0x50] sm:$0xff] %v3170
        %3191 = vst [vmem:[#allocation3 + $0x58] sm:$0xff] %v3171
        %3192 = vst [vmem:[#allocation3 + $0x60] sm:$0xff] %v3172
        %3193 = vst [vmem:[#allocation3 + $0x68] sm:$0xff] %v3173
        %3194 = vst [vmem:[#allocation3 + $0x70] sm:$0xff] %v3174
        %3195 = vst [vmem:[#allocation3 + $0x78] sm:$0xff] %v3175
        %3196 = vst [vmem:[#allocation3 + $0x80] sm:$0xff] %v3176
        %3197 = vst [vmem:[#allocation3 + $0x88] sm:$0xff] %v3177
        %3198 = vst [vmem:[#allocation3 + $0x90] sm:$0xff] %v3178
        %3199 = vst [vmem:[#allocation3 + $0x98] sm:$0xff] %v3179
        %s3200 = scalar_lea.vmem %s3, 256
        %v3201 = vld [vmem:[%s3200] sm:$0xff]
        %v3202 = vld [vmem:[%s3200 + $0x8] sm:$0xff]
        %v3203 = vld [vmem:[%s3200 + $0x10] sm:$0xff]
        %v3204 = vld [vmem:[%s3200 + $0x18] sm:$0xff]
        %v3205 = vld [vmem:[%s3200 + $0x20] sm:$0xff]
        %v3206 = vld [vmem:[%s3200 + $0x28] sm:$0xff]
        %v3207 = vld [vmem:[%s3200 + $0x30] sm:$0xff]
        %v3208 = vld [vmem:[%s3200 + $0x38] sm:$0xff]
        %v3209 = vld [vmem:[%s3200 + $0x40] sm:$0xff]
        %v3210 = vld [vmem:[%s3200 + $0x48] sm:$0xff]
        %v3211 = vld [vmem:[%s3200 + $0x50] sm:$0xff]
        %v3212 = vld [vmem:[%s3200 + $0x58] sm:$0xff]
        %v3213 = vld [vmem:[%s3200 + $0x60] sm:$0xff]
        %v3214 = vld [vmem:[%s3200 + $0x68] sm:$0xff]
        %v3215 = vld [vmem:[%s3200 + $0x70] sm:$0xff]
        %v3216 = vld [vmem:[%s3200 + $0x78] sm:$0xff]
        %v3218 = vunpack.c.l.b16 %v2716
        %v3219 = vpack.c.b16 %v3218, %v2966
        %v3237 = vunpack.c.l.b16 %v3201
        %v3238 = vunpack.c.h.b16 %v3201
        %v3239 = vunpack.c.l.b16 %v3202
        %v3240 = vunpack.c.h.b16 %v3202
        %v3241 = vunpack.c.l.b16 %v3203
        %v3242 = vunpack.c.h.b16 %v3203
        %v3243 = vunpack.c.l.b16 %v3204
        %v3244 = vunpack.c.h.b16 %v3204
        %v3245 = vunpack.c.l.b16 %v3205
        %v3246 = vunpack.c.h.b16 %v3205
        %v3247 = vunpack.c.l.b16 %v3206
        %v3248 = vunpack.c.h.b16 %v3206
        %v3249 = vunpack.c.l.b16 %v3207
        %v3250 = vunpack.c.h.b16 %v3207
        %v3251 = vunpack.c.l.b16 %v3208
        %v3252 = vunpack.c.h.b16 %v3208
        %v3253 = vunpack.c.l.b16 %v3209
        %v3254 = vunpack.c.h.b16 %v3209
        %v3255 = vunpack.c.l.b16 %v3210
        %v3256 = vunpack.c.h.b16 %v3210
        %v3257 = vunpack.c.l.b16 %v3211
        %v3258 = vunpack.c.h.b16 %v3211
        %v3259 = vunpack.c.l.b16 %v3212
        %v3260 = vunpack.c.h.b16 %v3212
        %v3261 = vunpack.c.l.b16 %v3213
        %v3262 = vunpack.c.h.b16 %v3213
        %v3263 = vunpack.c.l.b16 %v3214
        %v3264 = vunpack.c.h.b16 %v3214
        %v3265 = vunpack.c.l.b16 %v3215
        %v3266 = vunpack.c.h.b16 %v3215
        %v3267 = vunpack.c.l.b16 %v3216
        %v3268 = vunpack.c.h.b16 %v3216
        %v3269 = vpack.c.b16 %v3239, %v3237
        %v3270 = vpack.c.b16 %v3240, %v3238
        %v3271 = vpack.c.b16 %v3243, %v3241
        %v3272 = vpack.c.b16 %v3244, %v3242
        %v3273 = vpack.c.b16 %v3247, %v3245
        %v3274 = vpack.c.b16 %v3248, %v3246
        %v3275 = vpack.c.b16 %v3251, %v3249
        %v3276 = vpack.c.b16 %v3252, %v3250
        %v3277 = vpack.c.b16 %v3255, %v3253
        %v3278 = vpack.c.b16 %v3256, %v3254
        %v3279 = vpack.c.b16 %v3259, %v3257
        %v3280 = vpack.c.b16 %v3260, %v3258
        %v3281 = vpack.c.b16 %v3263, %v3261
        %v3282 = vpack.c.b16 %v3264, %v3262
        %v3283 = vpack.c.b16 %v3267, %v3265
        %v3284 = vpack.c.b16 %v3268, %v3266
        %3301 = vmatprep.subr.bf16.mxu0 %v3270
        %3302 = vmatpush1.bf16.msra.mxu0 %v3269
        %3303 = vmatprep.subr.bf16.mxu0 %v3272
        %3304 = vmatpush1.bf16.msra.mxu0 %v3271
        %3305 = vmatprep.subr.bf16.mxu0 %v3274
        %3306 = vmatpush1.bf16.msra.mxu0 %v3273
        %3307 = vmatprep.subr.bf16.mxu0 %v3276
        %3308 = vmatpush1.bf16.msra.mxu0 %v3275
        %3309 = vmatprep.subr.bf16.mxu0 %v3278
        %3310 = vmatpush1.bf16.msra.mxu0 %v3277
        %3311 = vmatprep.subr.bf16.mxu0 %v3280
        %3312 = vmatpush1.bf16.msra.mxu0 %v3279
        %3313 = vmatprep.subr.bf16.mxu0 %v3282
        %3314 = vmatpush1.bf16.msra.mxu0 %v3281
        %3315 = vmatprep.subr.bf16.mxu0 %v3284
        %3316 = vmatpush1.bf16.msra.mxu0 %v3283
        %3317 = vmatprep.subr.bf16.mxu0 0
        %3318 = vmatpush1.bf16.msra.mxu0 0
        %3319 = vmatprep.subr.bf16.mxu0 0
        %3320 = vmatpush1.bf16.msra.mxu0 0
        %3321 = vmatprep.subr.bf16.mxu0 0
        %3322 = vmatpush1.bf16.msra.mxu0 0
        %3323 = vmatprep.subr.bf16.mxu0 0
        %3324 = vmatpush1.bf16.msra.mxu0 0
        %3325 = vmatprep.subr.bf16.mxu0 0
        %3326 = vmatpush1.bf16.msra.mxu0 0
        %3327 = vmatprep.subr.bf16.mxu0 0
        %3328 = vmatpush1.bf16.msra.mxu0 0
        %3329 = vmatprep.subr.bf16.mxu0 0
        %3330 = vmatpush1.bf16.msra.mxu0 0
        %3331 = vmatprep.subr.bf16.mxu0 0
        %3332 = vmatpush1.bf16.msra.mxu0 0
        %3333 = vmatprep.mubr.bf16.mxu0 0
        %3334 = vmatmul.mubr.bf16.gmra.mrb[0].mxu0 %v2756
        %v3335 = vpop.f32.mrb[0].mxu0
        %v3336 = vadd.f32 0.0, %v3335
        %v3337 = vpop.f32.mrb[0].mxu0
        %v3338 = vadd.f32 0.0, %v3337
        %v3339 = vpop.f32.mrb[0].mxu0
        %v3340 = vadd.f32 0.0, %v3339
        %v3341 = vpop.f32.mrb[0].mxu0
        %v3342 = vadd.f32 0.0, %v3341
        %3343 = vmatprep.mubr.bf16.mxu0 0
        %3344 = vmatmul.mubr.bf16.gmra.mrb[0].mxu0 %v2757
        %v3345 = vpop.f32.mrb[0].mxu0
        %v3346 = vadd.f32 0.0, %v3345
        %v3347 = vpop.f32.mrb[0].mxu0
        %v3348 = vadd.f32 0.0, %v3347
        %v3349 = vpop.f32.mrb[0].mxu0
        %v3350 = vadd.f32 0.0, %v3349
        %v3351 = vpop.f32.mrb[0].mxu0
        %v3352 = vadd.f32 0.0, %v3351
        %3353 = vmatprep.mubr.bf16.mxu0 0
        %3354 = vmatmul.mubr.bf16.gmra.mrb[0].mxu0 %v2758
        %v3355 = vpop.f32.mrb[0].mxu0
        %v3356 = vadd.f32 0.0, %v3355
        %v3357 = vpop.f32.mrb[0].mxu0
        %v3358 = vadd.f32 0.0, %v3357
        %v3359 = vpop.f32.mrb[0].mxu0
        %v3360 = vadd.f32 0.0, %v3359
        %v3361 = vpop.f32.mrb[0].mxu0
        %v3362 = vadd.f32 0.0, %v3361
        %3363 = vmatprep.mubr.bf16.mxu0 0
        %3364 = vmatmul.mubr.bf16.gmra.mrb[0].mxu0 %v2759
        %v3365 = vpop.f32.mrb[0].mxu0
        %v3366 = vadd.f32 0.0, %v3365
        %v3367 = vpop.f32.mrb[0].mxu0
        %v3368 = vadd.f32 0.0, %v3367
        %v3369 = vpop.f32.mrb[0].mxu0
        %v3370 = vadd.f32 0.0, %v3369
        %v3371 = vpop.f32.mrb[0].mxu0
        %v3372 = vadd.f32 0.0, %v3371
        %3373 = vmatprep.mubr.bf16.mxu0 0
        %3374 = vmatmul.mubr.bf16.gmra.mrb[0].mxu0 %v3219
        %v3375 = vpop.f32.mrb[0].mxu0
        %v3376 = vadd.f32 0.0, %v3375
        %v3377 = vpop.f32.mrb[0].mxu0
        %v3378 = vadd.f32 0.0, %v3377
        %v3379 = vpop.f32.mrb[0].mxu0
        %v3380 = vadd.f32 0.0, %v3379
        %v3381 = vpop.f32.mrb[0].mxu0
        %v3382 = vadd.f32 0.0, %v3381
        %3383 = vdwg.mxu0
        %v3384 = vld [vmem:[#allocation3] sm:$0xff]
        %v3385 = vld [vmem:[#allocation3 + $0x8] sm:$0xff]
        %v3386 = vld [vmem:[#allocation3 + $0x10] sm:$0xff]
        %v3387 = vld [vmem:[#allocation3 + $0x18] sm:$0xff]
        %v3388 = vld [vmem:[#allocation3 + $0x20] sm:$0xff]
        %v3389 = vld [vmem:[#allocation3 + $0x28] sm:$0xff]
        %v3390 = vld [vmem:[#allocation3 + $0x30] sm:$0xff]
        %v3391 = vld [vmem:[#allocation3 + $0x38] sm:$0xff]
        %v3392 = vld [vmem:[#allocation3 + $0x40] sm:$0xff]
        %v3393 = vld [vmem:[#allocation3 + $0x48] sm:$0xff]
        %v3394 = vld [vmem:[#allocation3 + $0x50] sm:$0xff]
        %v3395 = vld [vmem:[#allocation3 + $0x58] sm:$0xff]
        %v3396 = vld [vmem:[#allocation3 + $0x60] sm:$0xff]
        %v3397 = vld [vmem:[#allocation3 + $0x68] sm:$0xff]
        %v3398 = vld [vmem:[#allocation3 + $0x70] sm:$0xff]
        %v3399 = vld [vmem:[#allocation3 + $0x78] sm:$0xff]
        %v3400 = vld [vmem:[#allocation3 + $0x80] sm:$0xff]
        %v3401 = vld [vmem:[#allocation3 + $0x88] sm:$0xff]
        %v3402 = vld [vmem:[#allocation3 + $0x90] sm:$0xff]
        %v3403 = vld [vmem:[#allocation3 + $0x98] sm:$0xff]
        %v3404 = vadd.f32 %v3384, %v3336
        %v3405 = vadd.f32 %v3385, %v3338
        %v3406 = vadd.f32 %v3386, %v3340
        %v3407 = vadd.f32 %v3387, %v3342
        %v3408 = vadd.f32 %v3388, %v3346
        %v3409 = vadd.f32 %v3389, %v3348
        %v3410 = vadd.f32 %v3390, %v3350
        %v3411 = vadd.f32 %v3391, %v3352
        %v3412 = vadd.f32 %v3392, %v3356
        %v3413 = vadd.f32 %v3393, %v3358
        %v3414 = vadd.f32 %v3394, %v3360
        %v3415 = vadd.f32 %v3395, %v3362
        %v3416 = vadd.f32 %v3396, %v3366
        %v3417 = vadd.f32 %v3397, %v3368
        %v3418 = vadd.f32 %v3398, %v3370
        %v3419 = vadd.f32 %v3399, %v3372
        %v3420 = vadd.f32 %v3400, %v3376
        %v3421 = vadd.f32 %v3401, %v3378
        %v3422 = vadd.f32 %v3402, %v3380
        %v3423 = vadd.f32 %v3403, %v3382
        %3424 = vst [vmem:[#allocation3] sm:$0xff] %v3404
        %3425 = vst [vmem:[#allocation3 + $0x8] sm:$0xff] %v3405
        %3426 = vst [vmem:[#allocation3 + $0x10] sm:$0xff] %v3406
        %3427 = vst [vmem:[#allocation3 + $0x18] sm:$0xff] %v3407
        %3428 = vst [vmem:[#allocation3 + $0x20] sm:$0xff] %v3408
        %3429 = vst [vmem:[#allocation3 + $0x28] sm:$0xff] %v3409
        %3430 = vst [vmem:[#allocation3 + $0x30] sm:$0xff] %v3410
        %3431 = vst [vmem:[#allocation3 + $0x38] sm:$0xff] %v3411
        %3432 = vst [vmem:[#allocation3 + $0x40] sm:$0xff] %v3412
        %3433 = vst [vmem:[#allocation3 + $0x48] sm:$0xff] %v3413
        %3434 = vst [vmem:[#allocation3 + $0x50] sm:$0xff] %v3414
        %3435 = vst [vmem:[#allocation3 + $0x58] sm:$0xff] %v3415
        %3436 = vst [vmem:[#allocation3 + $0x60] sm:$0xff] %v3416
        %3437 = vst [vmem:[#allocation3 + $0x68] sm:$0xff] %v3417
        %3438 = vst [vmem:[#allocation3 + $0x70] sm:$0xff] %v3418
        %3439 = vst [vmem:[#allocation3 + $0x78] sm:$0xff] %v3419
        %3440 = vst [vmem:[#allocation3 + $0x80] sm:$0xff] %v3420
        %3441 = vst [vmem:[#allocation3 + $0x88] sm:$0xff] %v3421
        %3442 = vst [vmem:[#allocation3 + $0x90] sm:$0xff] %v3422
        %3443 = vst [vmem:[#allocation3 + $0x98] sm:$0xff] %v3423
        %s3444 = scalar_lea.vmem %s3, 384
        %v3445 = vld [vmem:[%s3444] sm:$0xff]
        %v3446 = vld [vmem:[%s3444 + $0x8] sm:$0xff]
        %v3447 = vld [vmem:[%s3444 + $0x10] sm:$0xff]
        %v3448 = vld [vmem:[%s3444 + $0x18] sm:$0xff]
        %v3449 = vld [vmem:[%s3444 + $0x20] sm:$0xff]
        %v3450 = vld [vmem:[%s3444 + $0x28] sm:$0xff]
        %v3451 = vld [vmem:[%s3444 + $0x30] sm:$0xff]
        %v3452 = vld [vmem:[%s3444 + $0x38] sm:$0xff]
        %v3453 = vld [vmem:[%s3444 + $0x40] sm:$0xff]
        %v3454 = vld [vmem:[%s3444 + $0x48] sm:$0xff]
        %v3455 = vld [vmem:[%s3444 + $0x50] sm:$0xff]
        %v3456 = vld [vmem:[%s3444 + $0x58] sm:$0xff]
        %v3457 = vld [vmem:[%s3444 + $0x60] sm:$0xff]
        %v3458 = vld [vmem:[%s3444 + $0x68] sm:$0xff]
        %v3459 = vld [vmem:[%s3444 + $0x70] sm:$0xff]
        %v3460 = vld [vmem:[%s3444 + $0x78] sm:$0xff]
        %v3462 = vunpack.c.l.b16 %v2717
        %v3463 = vpack.c.b16 %v3462, %v3218
        %v3481 = vunpack.c.l.b16 %v3445
        %v3482 = vunpack.c.h.b16 %v3445
        %v3483 = vunpack.c.l.b16 %v3446
        %v3484 = vunpack.c.h.b16 %v3446
        %v3485 = vunpack.c.l.b16 %v3447
        %v3486 = vunpack.c.h.b16 %v3447
        %v3487 = vunpack.c.l.b16 %v3448
        %v3488 = vunpack.c.h.b16 %v3448
        %v3489 = vunpack.c.l.b16 %v3449
        %v3490 = vunpack.c.h.b16 %v3449
        %v3491 = vunpack.c.l.b16 %v3450
        %v3492 = vunpack.c.h.b16 %v3450
        %v3493 = vunpack.c.l.b16 %v3451
        %v3494 = vunpack.c.h.b16 %v3451
        %v3495 = vunpack.c.l.b16 %v3452
        %v3496 = vunpack.c.h.b16 %v3452
        %v3497 = vunpack.c.l.b16 %v3453
        %v3498 = vunpack.c.h.b16 %v3453
        %v3499 = vunpack.c.l.b16 %v3454
        %v3500 = vunpack.c.h.b16 %v3454
        %v3501 = vunpack.c.l.b16 %v3455
        %v3502 = vunpack.c.h.b16 %v3455
        %v3503 = vunpack.c.l.b16 %v3456
        %v3504 = vunpack.c.h.b16 %v3456
        %v3505 = vunpack.c.l.b16 %v3457
        %v3506 = vunpack.c.h.b16 %v3457
        %v3507 = vunpack.c.l.b16 %v3458
        %v3508 = vunpack.c.h.b16 %v3458
        %v3509 = vunpack.c.l.b16 %v3459
        %v3510 = vunpack.c.h.b16 %v3459
        %v3511 = vunpack.c.l.b16 %v3460
        %v3512 = vunpack.c.h.b16 %v3460
        %v3513 = vpack.c.b16 %v3483, %v3481
        %v3514 = vpack.c.b16 %v3484, %v3482
        %v3515 = vpack.c.b16 %v3487, %v3485
        %v3516 = vpack.c.b16 %v3488, %v3486
        %v3517 = vpack.c.b16 %v3491, %v3489
        %v3518 = vpack.c.b16 %v3492, %v3490
        %v3519 = vpack.c.b16 %v3495, %v3493
        %v3520 = vpack.c.b16 %v3496, %v3494
        %v3521 = vpack.c.b16 %v3499, %v3497
        %v3522 = vpack.c.b16 %v3500, %v3498
        %v3523 = vpack.c.b16 %v3503, %v3501
        %v3524 = vpack.c.b16 %v3504, %v3502
        %v3525 = vpack.c.b16 %v3507, %v3505
        %v3526 = vpack.c.b16 %v3508, %v3506
        %v3527 = vpack.c.b16 %v3511, %v3509
        %v3528 = vpack.c.b16 %v3512, %v3510
        %3545 = vmatprep.subr.bf16.mxu0 %v3514
        %3546 = vmatpush1.bf16.msra.mxu0 %v3513
        %3547 = vmatprep.subr.bf16.mxu0 %v3516
        %3548 = vmatpush1.bf16.msra.mxu0 %v3515
        %3549 = vmatprep.subr.bf16.mxu0 %v3518
        %3550 = vmatpush1.bf16.msra.mxu0 %v3517
        %3551 = vmatprep.subr.bf16.mxu0 %v3520
        %3552 = vmatpush1.bf16.msra.mxu0 %v3519
        %3553 = vmatprep.subr.bf16.mxu0 %v3522
        %3554 = vmatpush1.bf16.msra.mxu0 %v3521
        %3555 = vmatprep.subr.bf16.mxu0 %v3524
        %3556 = vmatpush1.bf16.msra.mxu0 %v3523
        %3557 = vmatprep.subr.bf16.mxu0 %v3526
        %3558 = vmatpush1.bf16.msra.mxu0 %v3525
        %3559 = vmatprep.subr.bf16.mxu0 %v3528
        %3560 = vmatpush1.bf16.msra.mxu0 %v3527
        %3561 = vmatprep.subr.bf16.mxu0 0
        %3562 = vmatpush1.bf16.msra.mxu0 0
        %3563 = vmatprep.subr.bf16.mxu0 0
        %3564 = vmatpush1.bf16.msra.mxu0 0
        %3565 = vmatprep.subr.bf16.mxu0 0
        %3566 = vmatpush1.bf16.msra.mxu0 0
        %3567 = vmatprep.subr.bf16.mxu0 0
        %3568 = vmatpush1.bf16.msra.mxu0 0
        %3569 = vmatprep.subr.bf16.mxu0 0
        %3570 = vmatpush1.bf16.msra.mxu0 0
        %3571 = vmatprep.subr.bf16.mxu0 0
        %3572 = vmatpush1.bf16.msra.mxu0 0
        %3573 = vmatprep.subr.bf16.mxu0 0
        %3574 = vmatpush1.bf16.msra.mxu0 0
        %3575 = vmatprep.subr.bf16.mxu0 0
        %3576 = vmatpush1.bf16.msra.mxu0 0
        %3577 = vmatprep.mubr.bf16.mxu0 0
        %3578 = vmatmul.mubr.bf16.gmra.mrb[0].mxu0 %v2968
        %v3579 = vpop.f32.mrb[0].mxu0
        %v3580 = vadd.f32 0.0, %v3579
        %v3581 = vpop.f32.mrb[0].mxu0
        %v3582 = vadd.f32 0.0, %v3581
        %v3583 = vpop.f32.mrb[0].mxu0
        %v3584 = vadd.f32 0.0, %v3583
        %v3585 = vpop.f32.mrb[0].mxu0
        %v3586 = vadd.f32 0.0, %v3585
        %3587 = vmatprep.mubr.bf16.mxu0 0
        %3588 = vmatmul.mubr.bf16.gmra.mrb[0].mxu0 %v2969
        %v3589 = vpop.f32.mrb[0].mxu0
        %v3590 = vadd.f32 0.0, %v3589
        %v3591 = vpop.f32.mrb[0].mxu0
        %v3592 = vadd.f32 0.0, %v3591
        %v3593 = vpop.f32.mrb[0].mxu0
        %v3594 = vadd.f32 0.0, %v3593
        %v3595 = vpop.f32.mrb[0].mxu0
        %v3596 = vadd.f32 0.0, %v3595
        %3597 = vmatprep.mubr.bf16.mxu0 0
        %3598 = vmatmul.mubr.bf16.gmra.mrb[0].mxu0 %v2970
        %v3599 = vpop.f32.mrb[0].mxu0
        %v3600 = vadd.f32 0.0, %v3599
        %v3601 = vpop.f32.mrb[0].mxu0
        %v3602 = vadd.f32 0.0, %v3601
        %v3603 = vpop.f32.mrb[0].mxu0
        %v3604 = vadd.f32 0.0, %v3603
        %v3605 = vpop.f32.mrb[0].mxu0
        %v3606 = vadd.f32 0.0, %v3605
        %3607 = vmatprep.mubr.bf16.mxu0 0
        %3608 = vmatmul.mubr.bf16.gmra.mrb[0].mxu0 %v2971
        %v3609 = vpop.f32.mrb[0].mxu0
        %v3610 = vadd.f32 0.0, %v3609
        %v3611 = vpop.f32.mrb[0].mxu0
        %v3612 = vadd.f32 0.0, %v3611
        %v3613 = vpop.f32.mrb[0].mxu0
        %v3614 = vadd.f32 0.0, %v3613
        %v3615 = vpop.f32.mrb[0].mxu0
        %v3616 = vadd.f32 0.0, %v3615
        %3617 = vmatprep.mubr.bf16.mxu0 0
        %3618 = vmatmul.mubr.bf16.gmra.mrb[0].mxu0 %v3463
        %v3619 = vpop.f32.mrb[0].mxu0
        %v3620 = vadd.f32 0.0, %v3619
        %v3621 = vpop.f32.mrb[0].mxu0
        %v3622 = vadd.f32 0.0, %v3621
        %v3623 = vpop.f32.mrb[0].mxu0
        %v3624 = vadd.f32 0.0, %v3623
        %v3625 = vpop.f32.mrb[0].mxu0
        %v3626 = vadd.f32 0.0, %v3625
        %3627 = vdwg.mxu0
        %v3628 = vld [vmem:[#allocation3] sm:$0xff]
        %v3629 = vld [vmem:[#allocation3 + $0x8] sm:$0xff]
        %v3630 = vld [vmem:[#allocation3 + $0x10] sm:$0xff]
        %v3631 = vld [vmem:[#allocation3 + $0x18] sm:$0xff]
        %v3632 = vld [vmem:[#allocation3 + $0x20] sm:$0xff]
        %v3633 = vld [vmem:[#allocation3 + $0x28] sm:$0xff]
        %v3634 = vld [vmem:[#allocation3 + $0x30] sm:$0xff]
        %v3635 = vld [vmem:[#allocation3 + $0x38] sm:$0xff]
        %v3636 = vld [vmem:[#allocation3 + $0x40] sm:$0xff]
        %v3637 = vld [vmem:[#allocation3 + $0x48] sm:$0xff]
        %v3638 = vld [vmem:[#allocation3 + $0x50] sm:$0xff]
        %v3639 = vld [vmem:[#allocation3 + $0x58] sm:$0xff]
        %v3640 = vld [vmem:[#allocation3 + $0x60] sm:$0xff]
        %v3641 = vld [vmem:[#allocation3 + $0x68] sm:$0xff]
        %v3642 = vld [vmem:[#allocation3 + $0x70] sm:$0xff]
        %v3643 = vld [vmem:[#allocation3 + $0x78] sm:$0xff]
        %v3644 = vld [vmem:[#allocation3 + $0x80] sm:$0xff]
        %v3645 = vld [vmem:[#allocation3 + $0x88] sm:$0xff]
        %v3646 = vld [vmem:[#allocation3 + $0x90] sm:$0xff]
        %v3647 = vld [vmem:[#allocation3 + $0x98] sm:$0xff]
        %v3648 = vadd.f32 %v3628, %v3580
        %v3649 = vadd.f32 %v3629, %v3582
        %v3650 = vadd.f32 %v3630, %v3584
        %v3651 = vadd.f32 %v3631, %v3586
        %v3652 = vadd.f32 %v3632, %v3590
        %v3653 = vadd.f32 %v3633, %v3592
        %v3654 = vadd.f32 %v3634, %v3594
        %v3655 = vadd.f32 %v3635, %v3596
        %v3656 = vadd.f32 %v3636, %v3600
        %v3657 = vadd.f32 %v3637, %v3602
        %v3658 = vadd.f32 %v3638, %v3604
        %v3659 = vadd.f32 %v3639, %v3606
        %v3660 = vadd.f32 %v3640, %v3610
        %v3661 = vadd.f32 %v3641, %v3612
        %v3662 = vadd.f32 %v3642, %v3614
        %v3663 = vadd.f32 %v3643, %v3616
        %v3664 = vadd.f32 %v3644, %v3620
        %v3665 = vadd.f32 %v3645, %v3622
        %v3666 = vadd.f32 %v3646, %v3624
        %v3667 = vadd.f32 %v3647, %v3626
        %3668 = vst [vmem:[#allocation3] sm:$0xff] %v3648
        %3669 = vst [vmem:[#allocation3 + $0x8] sm:$0xff] %v3649
        %3670 = vst [vmem:[#allocation3 + $0x10] sm:$0xff] %v3650
        %3671 = vst [vmem:[#allocation3 + $0x18] sm:$0xff] %v3651
        %3672 = vst [vmem:[#allocation3 + $0x20] sm:$0xff] %v3652
        %3673 = vst [vmem:[#allocation3 + $0x28] sm:$0xff] %v3653
        %3674 = vst [vmem:[#allocation3 + $0x30] sm:$0xff] %v3654
        %3675 = vst [vmem:[#allocation3 + $0x38] sm:$0xff] %v3655
        %3676 = vst [vmem:[#allocation3 + $0x40] sm:$0xff] %v3656
        %3677 = vst [vmem:[#allocation3 + $0x48] sm:$0xff] %v3657
        %3678 = vst [vmem:[#allocation3 + $0x50] sm:$0xff] %v3658
        %3679 = vst [vmem:[#allocation3 + $0x58] sm:$0xff] %v3659
        %3680 = vst [vmem:[#allocation3 + $0x60] sm:$0xff] %v3660
        %3681 = vst [vmem:[#allocation3 + $0x68] sm:$0xff] %v3661
        %3682 = vst [vmem:[#allocation3 + $0x70] sm:$0xff] %v3662
        %3683 = vst [vmem:[#allocation3 + $0x78] sm:$0xff] %v3663
        %3684 = vst [vmem:[#allocation3 + $0x80] sm:$0xff] %v3664
        %3685 = vst [vmem:[#allocation3 + $0x88] sm:$0xff] %v3665
        %3686 = vst [vmem:[#allocation3 + $0x90] sm:$0xff] %v3666
        %3687 = vst [vmem:[#allocation3 + $0x98] sm:$0xff] %v3667
        %s3688 = scalar_lea.vmem %s3, 512
        %v3689 = vld [vmem:[%s3688] sm:$0xff]
        %v3690 = vld [vmem:[%s3688 + $0x8] sm:$0xff]
        %v3691 = vld [vmem:[%s3688 + $0x10] sm:$0xff]
        %v3692 = vld [vmem:[%s3688 + $0x18] sm:$0xff]
        %v3693 = vld [vmem:[%s3688 + $0x20] sm:$0xff]
        %v3694 = vld [vmem:[%s3688 + $0x28] sm:$0xff]
        %v3695 = vld [vmem:[%s3688 + $0x30] sm:$0xff]
        %v3696 = vld [vmem:[%s3688 + $0x38] sm:$0xff]
        %v3697 = vld [vmem:[%s3688 + $0x40] sm:$0xff]
        %v3698 = vld [vmem:[%s3688 + $0x48] sm:$0xff]
        %v3699 = vld [vmem:[%s3688 + $0x50] sm:$0xff]
        %v3700 = vld [vmem:[%s3688 + $0x58] sm:$0xff]
        %v3701 = vld [vmem:[%s3688 + $0x60] sm:$0xff]
        %v3702 = vld [vmem:[%s3688 + $0x68] sm:$0xff]
        %v3703 = vld [vmem:[%s3688 + $0x70] sm:$0xff]
        %v3704 = vld [vmem:[%s3688 + $0x78] sm:$0xff]
        %v3706 = vunpack.c.l.b16 %v2718
        %v3707 = vpack.c.b16 %v3706, %v3462
        %v3725 = vunpack.c.l.b16 %v3689
        %v3726 = vunpack.c.h.b16 %v3689
        %v3727 = vunpack.c.l.b16 %v3690
        %v3728 = vunpack.c.h.b16 %v3690
        %v3729 = vunpack.c.l.b16 %v3691
        %v3730 = vunpack.c.h.b16 %v3691
        %v3731 = vunpack.c.l.b16 %v3692
        %v3732 = vunpack.c.h.b16 %v3692
        %v3733 = vunpack.c.l.b16 %v3693
        %v3734 = vunpack.c.h.b16 %v3693
        %v3735 = vunpack.c.l.b16 %v3694
        %v3736 = vunpack.c.h.b16 %v3694
        %v3737 = vunpack.c.l.b16 %v3695
        %v3738 = vunpack.c.h.b16 %v3695
        %v3739 = vunpack.c.l.b16 %v3696
        %v3740 = vunpack.c.h.b16 %v3696
        %v3741 = vunpack.c.l.b16 %v3697
        %v3742 = vunpack.c.h.b16 %v3697
        %v3743 = vunpack.c.l.b16 %v3698
        %v3744 = vunpack.c.h.b16 %v3698
        %v3745 = vunpack.c.l.b16 %v3699
        %v3746 = vunpack.c.h.b16 %v3699
        %v3747 = vunpack.c.l.b16 %v3700
        %v3748 = vunpack.c.h.b16 %v3700
        %v3749 = vunpack.c.l.b16 %v3701
        %v3750 = vunpack.c.h.b16 %v3701
        %v3751 = vunpack.c.l.b16 %v3702
        %v3752 = vunpack.c.h.b16 %v3702
        %v3753 = vunpack.c.l.b16 %v3703
        %v3754 = vunpack.c.h.b16 %v3703
        %v3755 = vunpack.c.l.b16 %v3704
        %v3756 = vunpack.c.h.b16 %v3704
        %v3757 = vpack.c.b16 %v3727, %v3725
        %v3758 = vpack.c.b16 %v3728, %v3726
        %v3759 = vpack.c.b16 %v3731, %v3729
        %v3760 = vpack.c.b16 %v3732, %v3730
        %v3761 = vpack.c.b16 %v3735, %v3733
        %v3762 = vpack.c.b16 %v3736, %v3734
        %v3763 = vpack.c.b16 %v3739, %v3737
        %v3764 = vpack.c.b16 %v3740, %v3738
        %v3765 = vpack.c.b16 %v3743, %v3741
        %v3766 = vpack.c.b16 %v3744, %v3742
        %v3767 = vpack.c.b16 %v3747, %v3745
        %v3768 = vpack.c.b16 %v3748, %v3746
        %v3769 = vpack.c.b16 %v3751, %v3749
        %v3770 = vpack.c.b16 %v3752, %v3750
        %v3771 = vpack.c.b16 %v3755, %v3753
        %v3772 = vpack.c.b16 %v3756, %v3754
        %3789 = vmatprep.subr.bf16.mxu0 %v3758
        %3790 = vmatpush1.bf16.msra.mxu0 %v3757
        %3791 = vmatprep.subr.bf16.mxu0 %v3760
        %3792 = vmatpush1.bf16.msra.mxu0 %v3759
        %3793 = vmatprep.subr.bf16.mxu0 %v3762
        %3794 = vmatpush1.bf16.msra.mxu0 %v3761
        %3795 = vmatprep.subr.bf16.mxu0 %v3764
        %3796 = vmatpush1.bf16.msra.mxu0 %v3763
        %3797 = vmatprep.subr.bf16.mxu0 %v3766
        %3798 = vmatpush1.bf16.msra.mxu0 %v3765
        %3799 = vmatprep.subr.bf16.mxu0 %v3768
        %3800 = vmatpush1.bf16.msra.mxu0 %v3767
        %3801 = vmatprep.subr.bf16.mxu0 %v3770
        %3802 = vmatpush1.bf16.msra.mxu0 %v3769
        %3803 = vmatprep.subr.bf16.mxu0 %v3772
        %3804 = vmatpush1.bf16.msra.mxu0 %v3771
        %3805 = vmatprep.subr.bf16.mxu0 0
        %3806 = vmatpush1.bf16.msra.mxu0 0
        %3807 = vmatprep.subr.bf16.mxu0 0
        %3808 = vmatpush1.bf16.msra.mxu0 0
        %3809 = vmatprep.subr.bf16.mxu0 0
        %3810 = vmatpush1.bf16.msra.mxu0 0
        %3811 = vmatprep.subr.bf16.mxu0 0
        %3812 = vmatpush1.bf16.msra.mxu0 0
        %3813 = vmatprep.subr.bf16.mxu0 0
        %3814 = vmatpush1.bf16.msra.mxu0 0
        %3815 = vmatprep.subr.bf16.mxu0 0
        %3816 = vmatpush1.bf16.msra.mxu0 0
        %3817 = vmatprep.subr.bf16.mxu0 0
        %3818 = vmatpush1.bf16.msra.mxu0 0
        %3819 = vmatprep.subr.bf16.mxu0 0
        %3820 = vmatpush1.bf16.msra.mxu0 0
        %3821 = vmatprep.mubr.bf16.mxu0 0
        %3822 = vmatmul.mubr.bf16.gmra.mrb[0].mxu0 %v2757
        %v3823 = vpop.f32.mrb[0].mxu0
        %v3824 = vadd.f32 0.0, %v3823
        %v3825 = vpop.f32.mrb[0].mxu0
        %v3826 = vadd.f32 0.0, %v3825
        %v3827 = vpop.f32.mrb[0].mxu0
        %v3828 = vadd.f32 0.0, %v3827
        %v3829 = vpop.f32.mrb[0].mxu0
        %v3830 = vadd.f32 0.0, %v3829
        %3831 = vmatprep.mubr.bf16.mxu0 0
        %3832 = vmatmul.mubr.bf16.gmra.mrb[0].mxu0 %v2758
        %v3833 = vpop.f32.mrb[0].mxu0
        %v3834 = vadd.f32 0.0, %v3833
        %v3835 = vpop.f32.mrb[0].mxu0
        %v3836 = vadd.f32 0.0, %v3835
        %v3837 = vpop.f32.mrb[0].mxu0
        %v3838 = vadd.f32 0.0, %v3837
        %v3839 = vpop.f32.mrb[0].mxu0
        %v3840 = vadd.f32 0.0, %v3839
        %3841 = vmatprep.mubr.bf16.mxu0 0
        %3842 = vmatmul.mubr.bf16.gmra.mrb[0].mxu0 %v2759
        %v3843 = vpop.f32.mrb[0].mxu0
        %v3844 = vadd.f32 0.0, %v3843
        %v3845 = vpop.f32.mrb[0].mxu0
        %v3846 = vadd.f32 0.0, %v3845
        %v3847 = vpop.f32.mrb[0].mxu0
        %v3848 = vadd.f32 0.0, %v3847
        %v3849 = vpop.f32.mrb[0].mxu0
        %v3850 = vadd.f32 0.0, %v3849
        %3851 = vmatprep.mubr.bf16.mxu0 0
        %3852 = vmatmul.mubr.bf16.gmra.mrb[0].mxu0 %v3219
        %v3853 = vpop.f32.mrb[0].mxu0
        %v3854 = vadd.f32 0.0, %v3853
        %v3855 = vpop.f32.mrb[0].mxu0
        %v3856 = vadd.f32 0.0, %v3855
        %v3857 = vpop.f32.mrb[0].mxu0
        %v3858 = vadd.f32 0.0, %v3857
        %v3859 = vpop.f32.mrb[0].mxu0
        %v3860 = vadd.f32 0.0, %v3859
        %3861 = vmatprep.mubr.bf16.mxu0 0
        %3862 = vmatmul.mubr.bf16.gmra.mrb[0].mxu0 %v3707
        %v3863 = vpop.f32.mrb[0].mxu0
        %v3864 = vadd.f32 0.0, %v3863
        %v3865 = vpop.f32.mrb[0].mxu0
        %v3866 = vadd.f32 0.0, %v3865
        %v3867 = vpop.f32.mrb[0].mxu0
        %v3868 = vadd.f32 0.0, %v3867
        %v3869 = vpop.f32.mrb[0].mxu0
        %v3870 = vadd.f32 0.0, %v3869
        %3871 = vdwg.mxu0
        %v3872 = vld [vmem:[#allocation3] sm:$0xff]
        %v3873 = vld [vmem:[#allocation3 + $0x8] sm:$0xff]
        %v3874 = vld [vmem:[#allocation3 + $0x10] sm:$0xff]
        %v3875 = vld [vmem:[#allocation3 + $0x18] sm:$0xff]
        %v3876 = vld [vmem:[#allocation3 + $0x20] sm:$0xff]
        %v3877 = vld [vmem:[#allocation3 + $0x28] sm:$0xff]
        %v3878 = vld [vmem:[#allocation3 + $0x30] sm:$0xff]
        %v3879 = vld [vmem:[#allocation3 + $0x38] sm:$0xff]
        %v3880 = vld [vmem:[#allocation3 + $0x40] sm:$0xff]
        %v3881 = vld [vmem:[#allocation3 + $0x48] sm:$0xff]
        %v3882 = vld [vmem:[#allocation3 + $0x50] sm:$0xff]
        %v3883 = vld [vmem:[#allocation3 + $0x58] sm:$0xff]
        %v3884 = vld [vmem:[#allocation3 + $0x60] sm:$0xff]
        %v3885 = vld [vmem:[#allocation3 + $0x68] sm:$0xff]
        %v3886 = vld [vmem:[#allocation3 + $0x70] sm:$0xff]
        %v3887 = vld [vmem:[#allocation3 + $0x78] sm:$0xff]
        %v3888 = vld [vmem:[#allocation3 + $0x80] sm:$0xff]
        %v3889 = vld [vmem:[#allocation3 + $0x88] sm:$0xff]
        %v3890 = vld [vmem:[#allocation3 + $0x90] sm:$0xff]
        %v3891 = vld [vmem:[#allocation3 + $0x98] sm:$0xff]
        %v3892 = vadd.f32 %v3872, %v3824
        %v3893 = vadd.f32 %v3873, %v3826
        %v3894 = vadd.f32 %v3874, %v3828
        %v3895 = vadd.f32 %v3875, %v3830
        %v3896 = vadd.f32 %v3876, %v3834
        %v3897 = vadd.f32 %v3877, %v3836
        %v3898 = vadd.f32 %v3878, %v3838
        %v3899 = vadd.f32 %v3879, %v3840
        %v3900 = vadd.f32 %v3880, %v3844
        %v3901 = vadd.f32 %v3881, %v3846
        %v3902 = vadd.f32 %v3882, %v3848
        %v3903 = vadd.f32 %v3883, %v3850
        %v3904 = vadd.f32 %v3884, %v3854
        %v3905 = vadd.f32 %v3885, %v3856
        %v3906 = vadd.f32 %v3886, %v3858
        %v3907 = vadd.f32 %v3887, %v3860
        %v3908 = vadd.f32 %v3888, %v3864
        %v3909 = vadd.f32 %v3889, %v3866
        %v3910 = vadd.f32 %v3890, %v3868
        %v3911 = vadd.f32 %v3891, %v3870
        %3912 = vst [vmem:[#allocation3] sm:$0xff] %v3892
        %3913 = vst [vmem:[#allocation3 + $0x8] sm:$0xff] %v3893
        %3914 = vst [vmem:[#allocation3 + $0x10] sm:$0xff] %v3894
        %3915 = vst [vmem:[#allocation3 + $0x18] sm:$0xff] %v3895
        %3916 = vst [vmem:[#allocation3 + $0x20] sm:$0xff] %v3896
        %3917 = vst [vmem:[#allocation3 + $0x28] sm:$0xff] %v3897
        %3918 = vst [vmem:[#allocation3 + $0x30] sm:$0xff] %v3898
        %3919 = vst [vmem:[#allocation3 + $0x38] sm:$0xff] %v3899
        %3920 = vst [vmem:[#allocation3 + $0x40] sm:$0xff] %v3900
        %3921 = vst [vmem:[#allocation3 + $0x48] sm:$0xff] %v3901
        %3922 = vst [vmem:[#allocation3 + $0x50] sm:$0xff] %v3902
        %3923 = vst [vmem:[#allocation3 + $0x58] sm:$0xff] %v3903
        %3924 = vst [vmem:[#allocation3 + $0x60] sm:$0xff] %v3904
        %3925 = vst [vmem:[#allocation3 + $0x68] sm:$0xff] %v3905
        %3926 = vst [vmem:[#allocation3 + $0x70] sm:$0xff] %v3906
        %3927 = vst [vmem:[#allocation3 + $0x78] sm:$0xff] %v3907
        %3928 = vst [vmem:[#allocation3 + $0x80] sm:$0xff] %v3908
        %3929 = vst [vmem:[#allocation3 + $0x88] sm:$0xff] %v3909
        %3930 = vst [vmem:[#allocation3 + $0x90] sm:$0xff] %v3910
        %3931 = vst [vmem:[#allocation3 + $0x98] sm:$0xff] %v3911
        %v3932 = vld [vmem:[#allocation3] sm:$0xff]
        %v3933 = vld [vmem:[#allocation3 + $0x8] sm:$0xff]
        %v3934 = vld [vmem:[#allocation3 + $0x10] sm:$0xff]
        %v3935 = vld [vmem:[#allocation3 + $0x18] sm:$0xff]
        %v3936 = vld [vmem:[#allocation3 + $0x20] sm:$0xff]
        %v3937 = vld [vmem:[#allocation3 + $0x28] sm:$0xff]
        %v3938 = vld [vmem:[#allocation3 + $0x30] sm:$0xff]
        %v3939 = vld [vmem:[#allocation3 + $0x38] sm:$0xff]
        %v3940 = vld [vmem:[#allocation3 + $0x40] sm:$0xff]
        %v3941 = vld [vmem:[#allocation3 + $0x48] sm:$0xff]
        %v3942 = vld [vmem:[#allocation3 + $0x50] sm:$0xff]
        %v3943 = vld [vmem:[#allocation3 + $0x58] sm:$0xff]
        %v3944 = vld [vmem:[#allocation3 + $0x60] sm:$0xff]
        %v3945 = vld [vmem:[#allocation3 + $0x68] sm:$0xff]
        %v3946 = vld [vmem:[#allocation3 + $0x70] sm:$0xff]
        %v3947 = vld [vmem:[#allocation3 + $0x78] sm:$0xff]
        %v3948 = vld [vmem:[#allocation3 + $0x80] sm:$0xff]
        %v3949 = vld [vmem:[#allocation3 + $0x88] sm:$0xff]
        %v3950 = vld [vmem:[#allocation3 + $0x90] sm:$0xff]
        %v3951 = vld [vmem:[#allocation3 + $0x98] sm:$0xff]
        %v3952 = vmax.f32 %v3932, %v3933
        %v3953 = vmax.f32 %v3934, %v3935
        %v3954 = vmax.f32 %v3936, %v3937
        %v3955 = vmax.f32 %v3938, %v3939
        %v3956 = vmax.f32 %v3940, %v3941
        %v3957 = vmax.f32 %v3942, %v3943
        %v3958 = vmax.f32 %v3944, %v3945
        %v3959 = vmax.f32 %v3946, %v3947
        %v3960 = vmax.f32 %v3948, %v3949
        %v3961 = vmax.f32 %v3950, %v3951
        %v3962 = vld [vmem:[%s4] sm:$0x1]
        %v3964 = vlaneseq
        %v3965 = vshrl.u32 %v3964, 7
        %v3966 = vsub.s32 0, %v3965
        %v3967 = vrot.slane %v3962, %v3966
        %v3969 = vadd.f32 %v3952, %v3967
        %v3970 = vadd.f32 %v3953, %v3967
        %v3971 = vadd.f32 %v3954, %v3967
        %v3972 = vadd.f32 %v3955, %v3967
        %v3973 = vadd.f32 %v3956, %v3967
        %v3974 = vadd.f32 %v3957, %v3967
        %v3975 = vadd.f32 %v3958, %v3967
        %v3976 = vadd.f32 %v3959, %v3967
        %v3977 = vadd.f32 %v3960, %v3967
        %v3978 = vadd.f32 %v3961, %v3967
        %v3979 = vmax.f32 %v3969, 0.0
        %v3980 = vmax.f32 %v3970, 0.0
        %v3981 = vmax.f32 %v3971, 0.0
        %v3982 = vmax.f32 %v3972, 0.0
        %v3983 = vmax.f32 %v3973, 0.0
        %v3984 = vmax.f32 %v3974, 0.0
        %v3985 = vmax.f32 %v3975, 0.0
        %v3986 = vmax.f32 %v3976, 0.0
        %v3987 = vmax.f32 %v3977, 0.0
        %v3988 = vmax.f32 %v3978, 0.0
        %v3989 = vmax.f32 %v3979, %v3980
        %v3990 = vmax.f32 %v3981, %v3982
        %v3991 = vmax.f32 %v3983, %v3984
        %v3992 = vmax.f32 %v3985, %v3986
        %v3993 = vmax.f32 %v3987, %v3988
        %v3994 = vpack.c.bf16 %v3989, %v3989
        %v3995 = vpack.c.bf16 %v3990, %v3990
        %v3996 = vpack.c.bf16 %v3991, %v3991
        %v3997 = vpack.c.bf16 %v3992, %v3992
        %v3998 = vpack.c.bf16 %v3993, %v3993
        %v3999 = vld [vmem:[%s5] sm:$0xf]
        %v4000 = vld [vmem:[%s5 + $0x4] sm:$0xf]
        %v4001 = vld [vmem:[%s5 + $0x8] sm:$0xf]
        %v4002 = vld [vmem:[%s5 + $0xc] sm:$0xf]
        %v4003 = vld [vmem:[%s5 + $0x10] sm:$0xf]
        %v4004 = vld [vmem:[%s5 + $0x14] sm:$0xf]
        %v4005 = vld [vmem:[%s5 + $0x18] sm:$0xf]
        %v4006 = vld [vmem:[%s5 + $0x1c] sm:$0xf]
        %v4007 = vld [vmem:[%s5 + $0x20] sm:$0xf]
        %v4008 = vld [vmem:[%s5 + $0x24] sm:$0xf]
        %v4009 = vld [vmem:[%s5 + $0x28] sm:$0xf]
        %v4010 = vld [vmem:[%s5 + $0x2c] sm:$0xf]
        %v4011 = vld [vmem:[%s5 + $0x30] sm:$0xf]
        %v4012 = vld [vmem:[%s5 + $0x34] sm:$0xf]
        %v4013 = vld [vmem:[%s5 + $0x38] sm:$0xf]
        %v4014 = vld [vmem:[%s5 + $0x3c] sm:$0xf]
        %s4015 = scalar_lea.vmem %s5, 64
        %v4016 = vld [vmem:[%s4015] sm:$0xf]
        %v4017 = vld [vmem:[%s4015 + $0x4] sm:$0xf]
        %v4018 = vld [vmem:[%s4015 + $0x8] sm:$0xf]
        %v4019 = vld [vmem:[%s4015 + $0xc] sm:$0xf]
        %v4020 = vld [vmem:[%s4015 + $0x10] sm:$0xf]
        %v4021 = vld [vmem:[%s4015 + $0x14] sm:$0xf]
        %v4022 = vld [vmem:[%s4015 + $0x18] sm:$0xf]
        %v4023 = vld [vmem:[%s4015 + $0x1c] sm:$0xf]
        %v4024 = vld [vmem:[%s4015 + $0x20] sm:$0xf]
        %v4025 = vld [vmem:[%s4015 + $0x24] sm:$0xf]
        %v4026 = vld [vmem:[%s4015 + $0x28] sm:$0xf]
        %v4027 = vld [vmem:[%s4015 + $0x2c] sm:$0xf]
        %v4028 = vld [vmem:[%s4015 + $0x30] sm:$0xf]
        %v4029 = vld [vmem:[%s4015 + $0x34] sm:$0xf]
        %v4030 = vld [vmem:[%s4015 + $0x38] sm:$0xf]
        %v4031 = vld [vmem:[%s4015 + $0x3c] sm:$0xf]
        %v4048 = vunpack.c.l.b16 %v4016
        %v4049 = vunpack.c.l.b16 %v4017
        %v4050 = vunpack.c.l.b16 %v4018
        %v4051 = vunpack.c.l.b16 %v4019
        %v4052 = vunpack.c.l.b16 %v4020
        %v4053 = vunpack.c.l.b16 %v4021
        %v4054 = vunpack.c.l.b16 %v4022
        %v4055 = vunpack.c.l.b16 %v4023
        %v4056 = vunpack.c.l.b16 %v4024
        %v4057 = vunpack.c.l.b16 %v4025
        %v4058 = vunpack.c.l.b16 %v4026
        %v4059 = vunpack.c.l.b16 %v4027
        %v4060 = vunpack.c.l.b16 %v4028
        %v4061 = vunpack.c.l.b16 %v4029
        %v4062 = vunpack.c.l.b16 %v4030
        %v4063 = vunpack.c.l.b16 %v4031
        %v4064 = vpack.c.b16 %v4049, %v4048
        %v4065 = vpack.c.b16 %v4051, %v4050
        %v4066 = vpack.c.b16 %v4053, %v4052
        %v4067 = vpack.c.b16 %v4055, %v4054
        %v4068 = vpack.c.b16 %v4057, %v4056
        %v4069 = vpack.c.b16 %v4059, %v4058
        %v4070 = vpack.c.b16 %v4061, %v4060
        %v4071 = vpack.c.b16 %v4063, %v4062
        %4080 = vmatprep.subr.bf16.mxu0 0
        %4081 = vmatpush1.bf16.msra.mxu0 %v4064
        %4082 = vmatprep.subr.bf16.mxu0 0
        %4083 = vmatpush1.bf16.msra.mxu0 %v4065
        %4084 = vmatprep.subr.bf16.mxu0 0
        %4085 = vmatpush1.bf16.msra.mxu0 %v4066
        %4086 = vmatprep.subr.bf16.mxu0 0
        %4087 = vmatpush1.bf16.msra.mxu0 %v4067
        %4088 = vmatprep.subr.bf16.mxu0 0
        %4089 = vmatpush1.bf16.msra.mxu0 %v4068
        %4090 = vmatprep.subr.bf16.mxu0 0
        %4091 = vmatpush1.bf16.msra.mxu0 %v4069
        %4092 = vmatprep.subr.bf16.mxu0 0
        %4093 = vmatpush1.bf16.msra.mxu0 %v4070
        %4094 = vmatprep.subr.bf16.mxu0 0
        %4095 = vmatpush1.bf16.msra.mxu0 %v4071
        %4096 = vmatprep.subr.bf16.mxu0 0
        %4097 = vmatpush1.bf16.msra.mxu0 0
        %4098 = vmatprep.subr.bf16.mxu0 0
        %4099 = vmatpush1.bf16.msra.mxu0 0
        %4100 = vmatprep.subr.bf16.mxu0 0
        %4101 = vmatpush1.bf16.msra.mxu0 0
        %4102 = vmatprep.subr.bf16.mxu0 0
        %4103 = vmatpush1.bf16.msra.mxu0 0
        %4104 = vmatprep.subr.bf16.mxu0 0
        %4105 = vmatpush1.bf16.msra.mxu0 0
        %4106 = vmatprep.subr.bf16.mxu0 0
        %4107 = vmatpush1.bf16.msra.mxu0 0
        %4108 = vmatprep.subr.bf16.mxu0 0
        %4109 = vmatpush1.bf16.msra.mxu0 0
        %4110 = vmatprep.subr.bf16.mxu0 0
        %4111 = vmatpush1.bf16.msra.mxu0 0
        %4112 = vmatprep.mubr.bf16.mxu0 0
        %4113 = vmatmul.mubr.bf16.gmra.mrb[0].mxu0 %v3995
        %v4114 = vpop.f32.mrb[0].mxu0
        %v4115 = vadd.f32 0.0, %v4114
        %v4116 = vpop.f32.mrb[0].mxu0
        %v4117 = vpop.f32.mrb[0].mxu0
        %v4118 = vpop.f32.mrb[0].mxu0
        %4119 = vdwg.mxu0
        %v4136 = vunpack.c.l.b16 %v3999
        %v4137 = vunpack.c.l.b16 %v4000
        %v4138 = vunpack.c.l.b16 %v4001
        %v4139 = vunpack.c.l.b16 %v4002
        %v4140 = vunpack.c.l.b16 %v4003
        %v4141 = vunpack.c.l.b16 %v4004
        %v4142 = vunpack.c.l.b16 %v4005
        %v4143 = vunpack.c.l.b16 %v4006
        %v4144 = vunpack.c.l.b16 %v4007
        %v4145 = vunpack.c.l.b16 %v4008
        %v4146 = vunpack.c.l.b16 %v4009
        %v4147 = vunpack.c.l.b16 %v4010
        %v4148 = vunpack.c.l.b16 %v4011
        %v4149 = vunpack.c.l.b16 %v4012
        %v4150 = vunpack.c.l.b16 %v4013
        %v4151 = vunpack.c.l.b16 %v4014
        %v4152 = vpack.c.b16 %v4137, %v4136
        %v4153 = vpack.c.b16 %v4139, %v4138
        %v4154 = vpack.c.b16 %v4141, %v4140
        %v4155 = vpack.c.b16 %v4143, %v4142
        %v4156 = vpack.c.b16 %v4145, %v4144
        %v4157 = vpack.c.b16 %v4147, %v4146
        %v4158 = vpack.c.b16 %v4149, %v4148
        %v4159 = vpack.c.b16 %v4151, %v4150
        %4168 = vmatprep.subr.bf16.mxu0 0
        %4169 = vmatpush1.bf16.msra.mxu0 %v4152
        %4170 = vmatprep.subr.bf16.mxu0 0
        %4171 = vmatpush1.bf16.msra.mxu0 %v4153
        %4172 = vmatprep.subr.bf16.mxu0 0
        %4173 = vmatpush1.bf16.msra.mxu0 %v4154
        %4174 = vmatprep.subr.bf16.mxu0 0
        %4175 = vmatpush1.bf16.msra.mxu0 %v4155
        %4176 = vmatprep.subr.bf16.mxu0 0
        %4177 = vmatpush1.bf16.msra.mxu0 %v4156
        %4178 = vmatprep.subr.bf16.mxu0 0
        %4179 = vmatpush1.bf16.msra.mxu0 %v4157
        %4180 = vmatprep.subr.bf16.mxu0 0
        %4181 = vmatpush1.bf16.msra.mxu0 %v4158
        %4182 = vmatprep.subr.bf16.mxu0 0
        %4183 = vmatpush1.bf16.msra.mxu0 %v4159
        %4184 = vmatprep.subr.bf16.mxu0 0
        %4185 = vmatpush1.bf16.msra.mxu0 0
        %4186 = vmatprep.subr.bf16.mxu0 0
        %4187 = vmatpush1.bf16.msra.mxu0 0
        %4188 = vmatprep.subr.bf16.mxu0 0
        %4189 = vmatpush1.bf16.msra.mxu0 0
        %4190 = vmatprep.subr.bf16.mxu0 0
        %4191 = vmatpush1.bf16.msra.mxu0 0
        %4192 = vmatprep.subr.bf16.mxu0 0
        %4193 = vmatpush1.bf16.msra.mxu0 0
        %4194 = vmatprep.subr.bf16.mxu0 0
        %4195 = vmatpush1.bf16.msra.mxu0 0
        %4196 = vmatprep.subr.bf16.mxu0 0
        %4197 = vmatpush1.bf16.msra.mxu0 0
        %4198 = vmatprep.subr.bf16.mxu0 0
        %4199 = vmatpush1.bf16.msra.mxu0 0
        %4200 = vmatprep.mubr.bf16.mxu0 0
        %4201 = vmatmul.mubr.bf16.gmra.mrb[0].mxu0 %v3994
        %v4202 = vpop.f32.mrb[0].mxu0
        %v4203 = vadd.f32 %v4115, %v4202
        %v4204 = vpop.f32.mrb[0].mxu0
        %v4205 = vpop.f32.mrb[0].mxu0
        %v4206 = vpop.f32.mrb[0].mxu0
        %4207 = vdwg.mxu0
        %s4208 = scalar_lea.vmem %s5, 128
        %v4209 = vld [vmem:[%s4208] sm:$0xf]
        %v4210 = vld [vmem:[%s4208 + $0x4] sm:$0xf]
        %v4211 = vld [vmem:[%s4208 + $0x8] sm:$0xf]
        %v4212 = vld [vmem:[%s4208 + $0xc] sm:$0xf]
        %v4213 = vld [vmem:[%s4208 + $0x10] sm:$0xf]
        %v4214 = vld [vmem:[%s4208 + $0x14] sm:$0xf]
        %v4215 = vld [vmem:[%s4208 + $0x18] sm:$0xf]
        %v4216 = vld [vmem:[%s4208 + $0x1c] sm:$0xf]
        %v4217 = vld [vmem:[%s4208 + $0x20] sm:$0xf]
        %v4218 = vld [vmem:[%s4208 + $0x24] sm:$0xf]
        %v4219 = vld [vmem:[%s4208 + $0x28] sm:$0xf]
        %v4220 = vld [vmem:[%s4208 + $0x2c] sm:$0xf]
        %v4221 = vld [vmem:[%s4208 + $0x30] sm:$0xf]
        %v4222 = vld [vmem:[%s4208 + $0x34] sm:$0xf]
        %v4223 = vld [vmem:[%s4208 + $0x38] sm:$0xf]
        %v4224 = vld [vmem:[%s4208 + $0x3c] sm:$0xf]
        %v4241 = vunpack.c.l.b16 %v4209
        %v4242 = vunpack.c.l.b16 %v4210
        %v4243 = vunpack.c.l.b16 %v4211
        %v4244 = vunpack.c.l.b16 %v4212
        %v4245 = vunpack.c.l.b16 %v4213
        %v4246 = vunpack.c.l.b16 %v4214
        %v4247 = vunpack.c.l.b16 %v4215
        %v4248 = vunpack.c.l.b16 %v4216
        %v4249 = vunpack.c.l.b16 %v4217
        %v4250 = vunpack.c.l.b16 %v4218
        %v4251 = vunpack.c.l.b16 %v4219
        %v4252 = vunpack.c.l.b16 %v4220
        %v4253 = vunpack.c.l.b16 %v4221
        %v4254 = vunpack.c.l.b16 %v4222
        %v4255 = vunpack.c.l.b16 %v4223
        %v4256 = vunpack.c.l.b16 %v4224
        %v4257 = vpack.c.b16 %v4242, %v4241
        %v4258 = vpack.c.b16 %v4244, %v4243
        %v4259 = vpack.c.b16 %v4246, %v4245
        %v4260 = vpack.c.b16 %v4248, %v4247
        %v4261 = vpack.c.b16 %v4250, %v4249
        %v4262 = vpack.c.b16 %v4252, %v4251
        %v4263 = vpack.c.b16 %v4254, %v4253
        %v4264 = vpack.c.b16 %v4256, %v4255
        %4273 = vmatprep.subr.bf16.mxu0 0
        %4274 = vmatpush1.bf16.msra.mxu0 %v4257
        %4275 = vmatprep.subr.bf16.mxu0 0
        %4276 = vmatpush1.bf16.msra.mxu0 %v4258
        %4277 = vmatprep.subr.bf16.mxu0 0
        %4278 = vmatpush1.bf16.msra.mxu0 %v4259
        %4279 = vmatprep.subr.bf16.mxu0 0
        %4280 = vmatpush1.bf16.msra.mxu0 %v4260
        %4281 = vmatprep.subr.bf16.mxu0 0
        %4282 = vmatpush1.bf16.msra.mxu0 %v4261
        %4283 = vmatprep.subr.bf16.mxu0 0
        %4284 = vmatpush1.bf16.msra.mxu0 %v4262
        %4285 = vmatprep.subr.bf16.mxu0 0
        %4286 = vmatpush1.bf16.msra.mxu0 %v4263
        %4287 = vmatprep.subr.bf16.mxu0 0
        %4288 = vmatpush1.bf16.msra.mxu0 %v4264
        %4289 = vmatprep.subr.bf16.mxu0 0
        %4290 = vmatpush1.bf16.msra.mxu0 0
        %4291 = vmatprep.subr.bf16.mxu0 0
        %4292 = vmatpush1.bf16.msra.mxu0 0
        %4293 = vmatprep.subr.bf16.mxu0 0
        %4294 = vmatpush1.bf16.msra.mxu0 0
        %4295 = vmatprep.subr.bf16.mxu0 0
        %4296 = vmatpush1.bf16.msra.mxu0 0
        %4297 = vmatprep.subr.bf16.mxu0 0
        %4298 = vmatpush1.bf16.msra.mxu0 0
        %4299 = vmatprep.subr.bf16.mxu0 0
        %4300 = vmatpush1.bf16.msra.mxu0 0
        %4301 = vmatprep.subr.bf16.mxu0 0
        %4302 = vmatpush1.bf16.msra.mxu0 0
        %4303 = vmatprep.subr.bf16.mxu0 0
        %4304 = vmatpush1.bf16.msra.mxu0 0
        %4305 = vmatprep.mubr.bf16.mxu0 0
        %4306 = vmatmul.mubr.bf16.gmra.mrb[0].mxu0 %v3996
        %v4307 = vpop.f32.mrb[0].mxu0
        %v4308 = vadd.f32 0.0, %v4307
        %v4309 = vpop.f32.mrb[0].mxu0
        %v4310 = vpop.f32.mrb[0].mxu0
        %v4311 = vpop.f32.mrb[0].mxu0
        %4312 = vdwg.mxu0
        %v4313 = vadd.f32 %v4203, %v4308
        %s4314 = scalar_lea.vmem %s5, 192
        %v4315 = vld [vmem:[%s4314] sm:$0xf]
        %v4316 = vld [vmem:[%s4314 + $0x4] sm:$0xf]
        %v4317 = vld [vmem:[%s4314 + $0x8] sm:$0xf]
        %v4318 = vld [vmem:[%s4314 + $0xc] sm:$0xf]
        %v4319 = vld [vmem:[%s4314 + $0x10] sm:$0xf]
        %v4320 = vld [vmem:[%s4314 + $0x14] sm:$0xf]
        %v4321 = vld [vmem:[%s4314 + $0x18] sm:$0xf]
        %v4322 = vld [vmem:[%s4314 + $0x1c] sm:$0xf]
        %v4323 = vld [vmem:[%s4314 + $0x20] sm:$0xf]
        %v4324 = vld [vmem:[%s4314 + $0x24] sm:$0xf]
        %v4325 = vld [vmem:[%s4314 + $0x28] sm:$0xf]
        %v4326 = vld [vmem:[%s4314 + $0x2c] sm:$0xf]
        %v4327 = vld [vmem:[%s4314 + $0x30] sm:$0xf]
        %v4328 = vld [vmem:[%s4314 + $0x34] sm:$0xf]
        %v4329 = vld [vmem:[%s4314 + $0x38] sm:$0xf]
        %v4330 = vld [vmem:[%s4314 + $0x3c] sm:$0xf]
        %v4347 = vunpack.c.l.b16 %v4315
        %v4348 = vunpack.c.l.b16 %v4316
        %v4349 = vunpack.c.l.b16 %v4317
        %v4350 = vunpack.c.l.b16 %v4318
        %v4351 = vunpack.c.l.b16 %v4319
        %v4352 = vunpack.c.l.b16 %v4320
        %v4353 = vunpack.c.l.b16 %v4321
        %v4354 = vunpack.c.l.b16 %v4322
        %v4355 = vunpack.c.l.b16 %v4323
        %v4356 = vunpack.c.l.b16 %v4324
        %v4357 = vunpack.c.l.b16 %v4325
        %v4358 = vunpack.c.l.b16 %v4326
        %v4359 = vunpack.c.l.b16 %v4327
        %v4360 = vunpack.c.l.b16 %v4328
        %v4361 = vunpack.c.l.b16 %v4329
        %v4362 = vunpack.c.l.b16 %v4330
        %v4363 = vpack.c.b16 %v4348, %v4347
        %v4364 = vpack.c.b16 %v4350, %v4349
        %v4365 = vpack.c.b16 %v4352, %v4351
        %v4366 = vpack.c.b16 %v4354, %v4353
        %v4367 = vpack.c.b16 %v4356, %v4355
        %v4368 = vpack.c.b16 %v4358, %v4357
        %v4369 = vpack.c.b16 %v4360, %v4359
        %v4370 = vpack.c.b16 %v4362, %v4361
        %4379 = vmatprep.subr.bf16.mxu0 0
        %4380 = vmatpush1.bf16.msra.mxu0 %v4363
        %4381 = vmatprep.subr.bf16.mxu0 0
        %4382 = vmatpush1.bf16.msra.mxu0 %v4364
        %4383 = vmatprep.subr.bf16.mxu0 0
        %4384 = vmatpush1.bf16.msra.mxu0 %v4365
        %4385 = vmatprep.subr.bf16.mxu0 0
        %4386 = vmatpush1.bf16.msra.mxu0 %v4366
        %4387 = vmatprep.subr.bf16.mxu0 0
        %4388 = vmatpush1.bf16.msra.mxu0 %v4367
        %4389 = vmatprep.subr.bf16.mxu0 0
        %4390 = vmatpush1.bf16.msra.mxu0 %v4368
        %4391 = vmatprep.subr.bf16.mxu0 0
        %4392 = vmatpush1.bf16.msra.mxu0 %v4369
        %4393 = vmatprep.subr.bf16.mxu0 0
        %4394 = vmatpush1.bf16.msra.mxu0 %v4370
        %4395 = vmatprep.subr.bf16.mxu0 0
        %4396 = vmatpush1.bf16.msra.mxu0 0
        %4397 = vmatprep.subr.bf16.mxu0 0
        %4398 = vmatpush1.bf16.msra.mxu0 0
        %4399 = vmatprep.subr.bf16.mxu0 0
        %4400 = vmatpush1.bf16.msra.mxu0 0
        %4401 = vmatprep.subr.bf16.mxu0 0
        %4402 = vmatpush1.bf16.msra.mxu0 0
        %4403 = vmatprep.subr.bf16.mxu0 0
        %4404 = vmatpush1.bf16.msra.mxu0 0
        %4405 = vmatprep.subr.bf16.mxu0 0
        %4406 = vmatpush1.bf16.msra.mxu0 0
        %4407 = vmatprep.subr.bf16.mxu0 0
        %4408 = vmatpush1.bf16.msra.mxu0 0
        %4409 = vmatprep.subr.bf16.mxu0 0
        %4410 = vmatpush1.bf16.msra.mxu0 0
        %4411 = vmatprep.mubr.bf16.mxu0 0
        %4412 = vmatmul.mubr.bf16.gmra.mrb[0].mxu0 %v3997
        %v4413 = vpop.f32.mrb[0].mxu0
        %v4414 = vadd.f32 0.0, %v4413
        %v4415 = vpop.f32.mrb[0].mxu0
        %v4416 = vpop.f32.mrb[0].mxu0
        %v4417 = vpop.f32.mrb[0].mxu0
        %4418 = vdwg.mxu0
        %v4419 = vadd.f32 %v4313, %v4414
        %s4420 = scalar_lea.vmem %s5, 256
        %v4421 = vld [vmem:[%s4420] sm:$0xf]
        %v4422 = vld [vmem:[%s4420 + $0x4] sm:$0xf]
        %v4423 = vld [vmem:[%s4420 + $0x8] sm:$0xf]
        %v4424 = vld [vmem:[%s4420 + $0xc] sm:$0xf]
        %v4425 = vld [vmem:[%s4420 + $0x10] sm:$0xf]
        %v4426 = vld [vmem:[%s4420 + $0x14] sm:$0xf]
        %v4427 = vld [vmem:[%s4420 + $0x18] sm:$0xf]
        %v4428 = vld [vmem:[%s4420 + $0x1c] sm:$0xf]
        %v4429 = vld [vmem:[%s4420 + $0x20] sm:$0xf]
        %v4430 = vld [vmem:[%s4420 + $0x24] sm:$0xf]
        %v4431 = vld [vmem:[%s4420 + $0x28] sm:$0xf]
        %v4432 = vld [vmem:[%s4420 + $0x2c] sm:$0xf]
        %v4433 = vld [vmem:[%s4420 + $0x30] sm:$0xf]
        %v4434 = vld [vmem:[%s4420 + $0x34] sm:$0xf]
        %v4435 = vld [vmem:[%s4420 + $0x38] sm:$0xf]
        %v4436 = vld [vmem:[%s4420 + $0x3c] sm:$0xf]
        %v4453 = vunpack.c.l.b16 %v4421
        %v4454 = vunpack.c.l.b16 %v4422
        %v4455 = vunpack.c.l.b16 %v4423
        %v4456 = vunpack.c.l.b16 %v4424
        %v4457 = vunpack.c.l.b16 %v4425
        %v4458 = vunpack.c.l.b16 %v4426
        %v4459 = vunpack.c.l.b16 %v4427
        %v4460 = vunpack.c.l.b16 %v4428
        %v4461 = vunpack.c.l.b16 %v4429
        %v4462 = vunpack.c.l.b16 %v4430
        %v4463 = vunpack.c.l.b16 %v4431
        %v4464 = vunpack.c.l.b16 %v4432
        %v4465 = vunpack.c.l.b16 %v4433
        %v4466 = vunpack.c.l.b16 %v4434
        %v4467 = vunpack.c.l.b16 %v4435
        %v4468 = vunpack.c.l.b16 %v4436
        %v4469 = vpack.c.b16 %v4454, %v4453
        %v4470 = vpack.c.b16 %v4456, %v4455
        %v4471 = vpack.c.b16 %v4458, %v4457
        %v4472 = vpack.c.b16 %v4460, %v4459
        %v4473 = vpack.c.b16 %v4462, %v4461
        %v4474 = vpack.c.b16 %v4464, %v4463
        %v4475 = vpack.c.b16 %v4466, %v4465
        %v4476 = vpack.c.b16 %v4468, %v4467
        %4485 = vmatprep.subr.bf16.mxu0 0
        %4486 = vmatpush1.bf16.msra.mxu0 %v4469
        %4487 = vmatprep.subr.bf16.mxu0 0
        %4488 = vmatpush1.bf16.msra.mxu0 %v4470
        %4489 = vmatprep.subr.bf16.mxu0 0
        %4490 = vmatpush1.bf16.msra.mxu0 %v4471
        %4491 = vmatprep.subr.bf16.mxu0 0
        %4492 = vmatpush1.bf16.msra.mxu0 %v4472
        %4493 = vmatprep.subr.bf16.mxu0 0
        %4494 = vmatpush1.bf16.msra.mxu0 %v4473
        %4495 = vmatprep.subr.bf16.mxu0 0
        %4496 = vmatpush1.bf16.msra.mxu0 %v4474
        %4497 = vmatprep.subr.bf16.mxu0 0
        %4498 = vmatpush1.bf16.msra.mxu0 %v4475
        %4499 = vmatprep.subr.bf16.mxu0 0
        %4500 = vmatpush1.bf16.msra.mxu0 %v4476
        %4501 = vmatprep.subr.bf16.mxu0 0
        %4502 = vmatpush1.bf16.msra.mxu0 0
        %4503 = vmatprep.subr.bf16.mxu0 0
        %4504 = vmatpush1.bf16.msra.mxu0 0
        %4505 = vmatprep.subr.bf16.mxu0 0
        %4506 = vmatpush1.bf16.msra.mxu0 0
        %4507 = vmatprep.subr.bf16.mxu0 0
        %4508 = vmatpush1.bf16.msra.mxu0 0
        %4509 = vmatprep.subr.bf16.mxu0 0
        %4510 = vmatpush1.bf16.msra.mxu0 0
        %4511 = vmatprep.subr.bf16.mxu0 0
        %4512 = vmatpush1.bf16.msra.mxu0 0
        %4513 = vmatprep.subr.bf16.mxu0 0
        %4514 = vmatpush1.bf16.msra.mxu0 0
        %4515 = vmatprep.subr.bf16.mxu0 0
        %4516 = vmatpush1.bf16.msra.mxu0 0
        %4517 = vmatprep.mubr.bf16.mxu0 0
        %4518 = vmatmul.mubr.bf16.gmra.mrb[0].mxu0 %v3998
        %v4519 = vpop.f32.mrb[0].mxu0
        %v4520 = vadd.f32 0.0, %v4519
        %v4521 = vpop.f32.mrb[0].mxu0
        %v4522 = vpop.f32.mrb[0].mxu0
        %v4523 = vpop.f32.mrb[0].mxu0
        %4524 = vdwg.mxu0
        %v4525 = vadd.f32 %v4419, %v4520
        %v4526 = vld [vmem:[%s6] sm:$0x1]
        %v4528 = vlaneseq
        %v4529 = vshrl.u32 %v4528, 7
        %v4530 = vsub.s32 0, %v4529
        %v4531 = vrot.slane %v4526, %v4530
        %v4533 = vadd.f32 %v4525, %v4531
        %v4534 = vmax.f32 %v4533, 0.0
        %v4535 = vpack.c.bf16 %v4534, %v4534
        %v4536 = vld [vmem:[%s7] sm:$0xf]
        %v4537 = vld [vmem:[%s7 + $0x4] sm:$0xf]
        %v4538 = vld [vmem:[%s7 + $0x8] sm:$0xf]
        %v4539 = vld [vmem:[%s7 + $0xc] sm:$0xf]
        %v4540 = vld [vmem:[%s7 + $0x10] sm:$0xf]
        %v4541 = vld [vmem:[%s7 + $0x14] sm:$0xf]
        %v4542 = vld [vmem:[%s7 + $0x18] sm:$0xf]
        %v4543 = vld [vmem:[%s7 + $0x1c] sm:$0xf]
        %v4544 = vld [vmem:[%s7 + $0x20] sm:$0xf]
        %v4545 = vld [vmem:[%s7 + $0x24] sm:$0xf]
        %v4546 = vld [vmem:[%s7 + $0x28] sm:$0xf]
        %v4547 = vld [vmem:[%s7 + $0x2c] sm:$0xf]
        %v4548 = vld [vmem:[%s7 + $0x30] sm:$0xf]
        %v4549 = vld [vmem:[%s7 + $0x34] sm:$0xf]
        %v4550 = vld [vmem:[%s7 + $0x38] sm:$0xf]
        %v4551 = vld [vmem:[%s7 + $0x3c] sm:$0xf]
        %v4552 = vld [vmem:[%s8] sm:$0x1]
        %v4554 = vlaneseq
        %v4555 = vshrl.u32 %v4554, 7
        %v4556 = vsub.s32 0, %v4555
        %v4557 = vrot.slane %v4552, %v4556
        %v4575 = vunpack.c.l.b16 %v4536
        %v4576 = vunpack.c.l.b16 %v4537
        %v4577 = vunpack.c.l.b16 %v4538
        %v4578 = vunpack.c.l.b16 %v4539
        %v4579 = vunpack.c.l.b16 %v4540
        %v4580 = vunpack.c.l.b16 %v4541
        %v4581 = vunpack.c.l.b16 %v4542
        %v4582 = vunpack.c.l.b16 %v4543
        %v4583 = vunpack.c.l.b16 %v4544
        %v4584 = vunpack.c.l.b16 %v4545
        %v4585 = vunpack.c.l.b16 %v4546
        %v4586 = vunpack.c.l.b16 %v4547
        %v4587 = vunpack.c.l.b16 %v4548
        %v4588 = vunpack.c.l.b16 %v4549
        %v4589 = vunpack.c.l.b16 %v4550
        %v4590 = vunpack.c.l.b16 %v4551
        %v4591 = vpack.c.b16 %v4576, %v4575
        %v4592 = vpack.c.b16 %v4578, %v4577
        %v4593 = vpack.c.b16 %v4580, %v4579
        %v4594 = vpack.c.b16 %v4582, %v4581
        %v4595 = vpack.c.b16 %v4584, %v4583
        %v4596 = vpack.c.b16 %v4586, %v4585
        %v4597 = vpack.c.b16 %v4588, %v4587
        %v4598 = vpack.c.b16 %v4590, %v4589
        %4607 = vmatprep.subr.bf16.mxu0 0
        %4608 = vmatpush1.bf16.msra.mxu0 %v4591
        %4609 = vmatprep.subr.bf16.mxu0 0
        %4610 = vmatpush1.bf16.msra.mxu0 %v4592
        %4611 = vmatprep.subr.bf16.mxu0 0
        %4612 = vmatpush1.bf16.msra.mxu0 %v4593
        %4613 = vmatprep.subr.bf16.mxu0 0
        %4614 = vmatpush1.bf16.msra.mxu0 %v4594
        %4615 = vmatprep.subr.bf16.mxu0 0
        %4616 = vmatpush1.bf16.msra.mxu0 %v4595
        %4617 = vmatprep.subr.bf16.mxu0 0
        %4618 = vmatpush1.bf16.msra.mxu0 %v4596
        %4619 = vmatprep.subr.bf16.mxu0 0
        %4620 = vmatpush1.bf16.msra.mxu0 %v4597
        %4621 = vmatprep.subr.bf16.mxu0 0
        %4622 = vmatpush1.bf16.msra.mxu0 %v4598
        %4623 = vmatprep.subr.bf16.mxu0 0
        %4624 = vmatpush1.bf16.msra.mxu0 0
        %4625 = vmatprep.subr.bf16.mxu0 0
        %4626 = vmatpush1.bf16.msra.mxu0 0
        %4627 = vmatprep.subr.bf16.mxu0 0
        %4628 = vmatpush1.bf16.msra.mxu0 0
        %4629 = vmatprep.subr.bf16.mxu0 0
        %4630 = vmatpush1.bf16.msra.mxu0 0
        %4631 = vmatprep.subr.bf16.mxu0 0
        %4632 = vmatpush1.bf16.msra.mxu0 0
        %4633 = vmatprep.subr.bf16.mxu0 0
        %4634 = vmatpush1.bf16.msra.mxu0 0
        %4635 = vmatprep.subr.bf16.mxu0 0
        %4636 = vmatpush1.bf16.msra.mxu0 0
        %4637 = vmatprep.subr.bf16.mxu0 0
        %4638 = vmatpush1.bf16.msra.mxu0 0
        %4639 = vmatprep.mubr.bf16.mxu0 0
        %4640 = vmatmul.mubr.bf16.gmra.mrb[0].mxu0 %v4535
        %v4641 = vpop.f32.mrb[0].mxu0
        %v4642 = vadd.f32 %v4557, %v4641
        %v4643 = vpop.f32.mrb[0].mxu0
        %v4644 = vpop.f32.mrb[0].mxu0
        %v4645 = vpop.f32.mrb[0].mxu0
        %4646 = vdwg.mxu0
        %v4647 = vmax.f32 %v4642, 0.0
        %v4648 = vpack.c.bf16 %v4647, %v4647
        %v4649 = vld [vmem:[#allocation8] sm:$0xf]
        %v4650 = vld [vmem:[#allocation8 + $0x4] sm:$0xf]
        %v4651 = vld [vmem:[#allocation8 + $0x8] sm:$0xf]
        %v4652 = vld [vmem:[#allocation8 + $0xc] sm:$0xf]
        %v4653 = vld [vmem:[#allocation8 + $0x10] sm:$0xf]
        %v4654 = vld [vmem:[#allocation8 + $0x14] sm:$0xf]
        %v4655 = vld [vmem:[#allocation8 + $0x18] sm:$0xf]
        %v4656 = vld [vmem:[#allocation8 + $0x1c] sm:$0xf]
        %v4657 = vld [vmem:[#allocation8 + $0x20] sm:$0xf]
        %v4658 = vld [vmem:[#allocation8 + $0x24] sm:$0xf]
        %v4659 = vld [vmem:[#allocation8 + $0x28] sm:$0xf]
        %v4660 = vld [vmem:[#allocation8 + $0x2c] sm:$0xf]
        %v4661 = vld [vmem:[#allocation8 + $0x30] sm:$0xf]
        %v4662 = vld [vmem:[#allocation8 + $0x34] sm:$0xf]
        %v4663 = vld [vmem:[#allocation8 + $0x38] sm:$0xf]
        %v4664 = vld [vmem:[#allocation8 + $0x3c] sm:$0xf]
        %v4665 = vld [vmem:[%s10] sm:$0x1]
        %v4667 = vlaneseq
        %v4668 = vshrl.u32 %v4667, 7
        %v4669 = vsub.s32 0, %v4668
        %v4670 = vrot.slane %v4665, %v4669
        %v4688 = vunpack.c.l.b16 %v4649
        %v4689 = vunpack.c.l.b16 %v4650
        %v4690 = vunpack.c.l.b16 %v4651
        %v4691 = vunpack.c.l.b16 %v4652
        %v4692 = vunpack.c.l.b16 %v4653
        %v4693 = vunpack.c.l.b16 %v4654
        %v4694 = vunpack.c.l.b16 %v4655
        %v4695 = vunpack.c.l.b16 %v4656
        %v4696 = vunpack.c.l.b16 %v4657
        %v4697 = vunpack.c.l.b16 %v4658
        %v4698 = vunpack.c.l.b16 %v4659
        %v4699 = vunpack.c.l.b16 %v4660
        %v4700 = vunpack.c.l.b16 %v4661
        %v4701 = vunpack.c.l.b16 %v4662
        %v4702 = vunpack.c.l.b16 %v4663
        %v4703 = vunpack.c.l.b16 %v4664
        %v4704 = vpack.c.b16 %v4689, %v4688
        %v4705 = vpack.c.b16 %v4691, %v4690
        %v4706 = vpack.c.b16 %v4693, %v4692
        %v4707 = vpack.c.b16 %v4695, %v4694
        %v4708 = vpack.c.b16 %v4697, %v4696
        %v4709 = vpack.c.b16 %v4699, %v4698
        %v4710 = vpack.c.b16 %v4701, %v4700
        %v4711 = vpack.c.b16 %v4703, %v4702
        %4720 = vmatprep.subr.bf16.mxu0 0
        %4721 = vmatpush1.bf16.msra.mxu0 %v4704
        %4722 = vmatprep.subr.bf16.mxu0 0
        %4723 = vmatpush1.bf16.msra.mxu0 %v4705
        %4724 = vmatprep.subr.bf16.mxu0 0
        %4725 = vmatpush1.bf16.msra.mxu0 %v4706
        %4726 = vmatprep.subr.bf16.mxu0 0
        %4727 = vmatpush1.bf16.msra.mxu0 %v4707
        %4728 = vmatprep.subr.bf16.mxu0 0
        %4729 = vmatpush1.bf16.msra.mxu0 %v4708
        %4730 = vmatprep.subr.bf16.mxu0 0
        %4731 = vmatpush1.bf16.msra.mxu0 %v4709
        %4732 = vmatprep.subr.bf16.mxu0 0
        %4733 = vmatpush1.bf16.msra.mxu0 %v4710
        %4734 = vmatprep.subr.bf16.mxu0 0
        %4735 = vmatpush1.bf16.msra.mxu0 %v4711
        %4736 = vmatprep.subr.bf16.mxu0 0
        %4737 = vmatpush1.bf16.msra.mxu0 0
        %4738 = vmatprep.subr.bf16.mxu0 0
        %4739 = vmatpush1.bf16.msra.mxu0 0
        %4740 = vmatprep.subr.bf16.mxu0 0
        %4741 = vmatpush1.bf16.msra.mxu0 0
        %4742 = vmatprep.subr.bf16.mxu0 0
        %4743 = vmatpush1.bf16.msra.mxu0 0
        %4744 = vmatprep.subr.bf16.mxu0 0
        %4745 = vmatpush1.bf16.msra.mxu0 0
        %4746 = vmatprep.subr.bf16.mxu0 0
        %4747 = vmatpush1.bf16.msra.mxu0 0
        %4748 = vmatprep.subr.bf16.mxu0 0
        %4749 = vmatpush1.bf16.msra.mxu0 0
        %4750 = vmatprep.subr.bf16.mxu0 0
        %4751 = vmatpush1.bf16.msra.mxu0 0
        %4752 = vmatprep.mubr.bf16.mxu0 0
        %4753 = vmatmul.mubr.bf16.gmra.mrb[0].mxu0 %v4648
        %v4754 = vpop.f32.mrb[0].mxu0
        %v4755 = vadd.f32 %v4670, %v4754
        %v4756 = vpop.f32.mrb[0].mxu0
        %v4757 = vpop.f32.mrb[0].mxu0
        %v4758 = vpop.f32.mrb[0].mxu0
        %4759 = vdwg.mxu0
        %4760 = vst [vmem:[%s572] sm:$0xff] %v4755
        %s4761 = sand.u32 %s271, 1
        %s4762 = scalar_lea.sflag [#allocation7], %s4761
        %s4763 = sand.u32 %s271, 1
        %s4764 = smul.addr %s4763, 8
        %s4765 = scalar_lea.vmem [#allocation10], %s4764
        // Predicated region
        $region111: #{lenet5_forward.1} parent=97 // pred_check
          %p4766 = pneg %p281
        $region112: #{lenet5_forward.1} parent=97 // pred_check_branch
          %4768 = sbr.rel (%p4766) target = $region114
        $region113: #{lenet5_forward.1} parent=97 // pred_region
          %s4770 = ssub.s32 128, 128
          %4771 = vsyncadd %s4762, %s4770
          %s4772 = smul.addr %s27, 128
          %s4773 = scalar_lea.hbm %s11, %s4772
          %s4775 = sshll.u32 %s4765, 4
          %s4776 = int_to_ptr.vmem [resolvable:$true] %s4775
          %4778 = dma.vmem_to_hbm [thread:$0]  %s4776, 128, %s4773, %s4762
        $region114: #{lenet5_forward.1} parent=97 // pred_fallthru
          _
      $region98: #{lenet5_forward.1} parent=5 // pred_fallthru
        _
      %p4779 = scmp.le.s32.totalorder 2, %s22
      // Predicated region
      $region115: #{lenet5_forward.1} parent=5 // pred_check
        %p4780 = pneg %p4779
      $region116: #{lenet5_forward.1} parent=5 // pred_check_branch
        %4782 = sbr.rel (%p4780) target = $region118
      $region117: #{lenet5_forward.1} parent=5 // pred_region
        %s4783 = ssub.s32 %s22, 2
        // Predicated region
        $region119: #{lenet5_forward.1} parent=117 // pred_check
          %p4784 = pneg %p287
        $region120: #{lenet5_forward.1} parent=117 // pred_check_branch
          %4786 = sbr.rel (%p4784) target = $region122
        $region121: #{lenet5_forward.1} parent=117 // pred_region
          %s4787 = sand.u32 %s272, 1
          %s4788 = scalar_lea.sflag [#allocation7], %s4787
          %s4789 = sand.u32 %s272, 1
          %s4790 = smul.addr %s4789, 8
          %s4791 = scalar_lea.vmem [#allocation10], %s4790
          %4792 = dma.done %s4788, 128
        $region122: #{lenet5_forward.1} parent=117 // pred_fallthru
          _
      $region118: #{lenet5_forward.1} parent=5 // pred_fallthru
        _
    $region6: #{lenet5_forward.1} parent=1 // loop_footer
      %s26 = sadd.s32 1, %s22
    $region7: #{lenet5_forward.1} parent=1 // loop_footer_branch
      %21 = sbr.rel target = $region3
    $region8: #{lenet5_forward.1} parent=1 // loop_exit
      _
    %4793 = vsyncpa [#allocation6], 1
    %s4794 = scalar_lea.sflag [#allocation6], 1
    %4795 = vsyncpa %s4794, 1
    %4796 = vsyncpa [#allocation9], 1
    %4797 = vsyncpa [#allocation7], 1
    %s4798 = scalar_lea.sflag [#allocation7], 1
    %4799 = vsyncpa %s4798, 1

</llo_original>
